<compile_context>
chip_gen: v5e
topology: v5e:2x2
jax: 0.10.0
libtpu: 0.0.40
codegen_flags: <defaults>
</compile_context>

<pallas_src>
import functools

import jax
import jax.numpy as jnp
from jax.experimental import pallas as pl
from jax.experimental.pallas import tpu as pltpu

NEG_SLOPE = 0.01   # nn.LeakyReLU() default
BN_EPS = 1e-5      # nn.BatchNorm2d default


def _make_kernel(kh, kw, stride, t_oh, ow, w_pad, c_in, flat):
    """Fused conv (+ BN shift + LeakyReLU) over one input row-band."""
    taps = [(i, j) for i in range(kh) for j in range(kw)]

    def kernel(x_ref, w_ref, shift_ref, o_ref, acc_ref):
        # x_ref (flat, stride==1): (1, band_rows*W_pad, C_in)  bf16
        # x_ref (general stride):  (1, band_rows, W_pad, C_in) bf16
        # w_ref:                   (KH*KW, C_in, C_out_p)      bf16 (BN scale folded)
        # shift_ref:               (1, C_out_p)                f32
        # o_ref:                   (1, M, C_out_p)             f32
        # acc_ref:                 (M, C_out_p)                f32 VMEM scratch
        m = acc_ref.shape[0]
        for t, (i, j) in enumerate(taps):
            if flat:
                # stride == 1: output pixel p reads input element p + i*W_pad + j,
                # so each tap is a pure offset slice of the flattened band.
                a = x_ref[0, pl.ds(i * w_pad + j, m), :]
            else:
                # general stride: strided 2-D window, flattened to (t_oh*ow, C_in)
                xb = x_ref[0]
                a = jax.lax.slice(
                    xb, (i, j, 0),
                    (i + (t_oh - 1) * stride + 1, j + (ow - 1) * stride + 1, c_in),
                    (stride, stride, 1)).reshape(t_oh * ow, c_in)
            contrib = jnp.dot(a, w_ref[t], preferred_element_type=jnp.float32)
            if t == 0:
                acc_ref[...] = contrib
            else:
                acc_ref[...] += contrib
        y = acc_ref[...] + shift_ref[...]
        o_ref[0] = jnp.where(y > 0, y, NEG_SLOPE * y)

    return kernel


def _round_up(x, m):
    return (x + m - 1) // m * m


@functools.partial(jax.jit, static_argnames=("stride", "padding"))
def conv_bn_act(x_nchw, weight, gamma, beta, running_mean, running_var,
                stride=1, padding=0):
    """x_nchw: (N, C_in, H, W); weight: (C_out, C_in, KH, KW) (PyTorch layouts)."""
    n, c_in, h, w = x_nchw.shape
    c_out, c_in_w, kh, kw = weight.shape
    assert c_in == c_in_w

    oh = (h + 2 * padding - kh) // stride + 1
    ow = (w + 2 * padding - kw) // stride + 1
    w_pad = w + 2 * padding
    c_out_p = _round_up(c_out, 128)             # lane-dense output channels

    # --- static tiling: ~512 output pixels (matmul M rows) per grid step ----
    t_oh = max(1, min(oh, -(-512 // ow)))       # output rows per band
    num_bands = -(-oh // t_oh)
    oh_p = num_bands * t_oh

    flat = (stride == 1)
    if flat:
        # Flattened (rows*width) band; one extra zero row so the bottom-right
        # taps of the (discarded) rightmost columns never read out of bounds.
        band_rows = t_oh + kh - 1 + (1 if kw > 1 else 0)
        m_block = t_oh * w_pad                  # includes w_pad-ow throwaway cols
        h_rows_needed = (num_bands - 1) * t_oh + band_rows
    else:
        band_rows = (t_oh - 1) * stride + kh
        m_block = t_oh * ow
        h_rows_needed = (num_bands - 1) * t_oh * stride + band_rows

    # --- glue (plain JAX): NHWC + bf16 + pad + overlapping row-bands --------
    x_nhwc = jnp.transpose(x_nchw, (0, 2, 3, 1)).astype(jnp.bfloat16)
    extra_rows = max(0, h_rows_needed - (h + 2 * padding))
    x_p = jnp.pad(x_nhwc, ((0, 0), (padding, padding + extra_rows),
                           (padding, padding), (0, 0)))
    step = t_oh * stride
    bands = [x_p[:, b * step: b * step + band_rows] for b in range(num_bands)]
    x_bands = jnp.stack(bands, axis=1)          # (N, bands, band_rows, W_pad, C_in)
    if flat:
        x_in = x_bands.reshape(n * num_bands, band_rows * w_pad, c_in)
        x_spec = pl.BlockSpec((1, band_rows * w_pad, c_in), lambda g: (g, 0, 0))
    else:
        x_in = x_bands.reshape(n * num_bands, band_rows, w_pad, c_in)
        x_spec = pl.BlockSpec((1, band_rows, w_pad, c_in), lambda g: (g, 0, 0, 0))

    # --- BN folding: scale into the weight (bf16), shift kept in f32 --------
    scale = gamma.astype(jnp.float32) / jnp.sqrt(running_var.astype(jnp.float32) + BN_EPS)
    shift = beta.astype(jnp.float32) - running_mean.astype(jnp.float32) * scale
    w_hwio = jnp.transpose(weight, (2, 3, 1, 0)).astype(jnp.float32) * scale
    w_folded = w_hwio.reshape(kh * kw, c_in, c_out).astype(jnp.bfloat16)
    w_p = jnp.zeros((kh * kw, c_in, c_out_p), jnp.bfloat16).at[:, :, :c_out].set(w_folded)
    shift_p = jnp.zeros((1, c_out_p), jnp.float32).at[0, :c_out].set(shift)

    # --- VMEM budget: double-buffered band + out tile, resident weight ------
    band_bytes = band_rows * w_pad * c_in * 2
    out_bytes = m_block * c_out_p * 4
    need = 2 * band_bytes + 3 * out_bytes + kh * kw * c_in * c_out_p * 2
    vmem_limit = int(min(48 * 2 ** 20, max(16 * 2 ** 20, 2 * need)))

    kernel = _make_kernel(kh, kw, stride, t_oh, ow, w_pad, c_in, flat)

    out_p = pl.pallas_call(
        kernel,
        out_shape=jax.ShapeDtypeStruct((n * num_bands, m_block, c_out_p), jnp.float32),
        grid_spec=pltpu.PrefetchScalarGridSpec(
            num_scalar_prefetch=0,
            grid=(n * num_bands,),
            in_specs=[
                x_spec,
                pl.BlockSpec((kh * kw, c_in, c_out_p), lambda g: (0, 0, 0)),
                pl.BlockSpec((1, c_out_p), lambda g: (0, 0)),
            ],
            out_specs=pl.BlockSpec((1, m_block, c_out_p), lambda g: (g, 0, 0)),
            scratch_shapes=[pltpu.VMEM((m_block, c_out_p), jnp.float32)],
        ),
        compiler_params=pltpu.CompilerParams(
            dimension_semantics=("parallel",),
            vmem_limit_bytes=vmem_limit),
    )(x_in, w_p, shift_p)

    if flat:
        out = out_p.reshape(n, oh_p, w_pad, c_out_p)[:, :oh, :ow, :c_out]
    else:
        out = out_p.reshape(n, oh_p, ow, c_out_p)[:, :oh, :, :c_out]
    return jnp.transpose(out, (0, 3, 1, 2))     # back to NCHW


def _reference_f32(x, weight, gamma, beta, mean, var, stride, padding):
    """Pure-f32 PyTorch-equivalent semantics (conv -> eval-BN -> LeakyReLU)."""
    y = jax.lax.conv_general_dilated(
        x.astype(jnp.float32), weight.astype(jnp.float32),
        window_strides=(stride, stride),
        padding=[(padding, padding), (padding, padding)],
        dimension_numbers=("NCHW", "OIHW", "NCHW"),
        precision=jax.lax.Precision.HIGHEST)
    scale = gamma / jnp.sqrt(var + BN_EPS)
    shift = beta - mean * scale
    y = y * scale[None, :, None, None] + shift[None, :, None, None]
    return jnp.where(y > 0, y, NEG_SLOPE * y)


def _reference_bf16(x, weight, gamma, beta, mean, var, stride, padding):
    """Emulates the kernel's numerics: bf16 inputs / scale-folded bf16 weight, f32 acc."""
    scale = gamma / jnp.sqrt(var + BN_EPS)
    shift = beta - mean * scale
    w_folded = (weight.astype(jnp.float32) * scale[:, None, None, None]
                ).astype(jnp.bfloat16).astype(jnp.float32)
    xb = x.astype(jnp.bfloat16).astype(jnp.float32)
    y = jax.lax.conv_general_dilated(
        xb, w_folded, window_strides=(stride, stride),
        padding=[(padding, padding), (padding, padding)],
        dimension_numbers=("NCHW", "OIHW", "NCHW"),
        precision=jax.lax.Precision.HIGHEST)
    y = y + shift[None, :, None, None]
    return jnp.where(y > 0, y, NEG_SLOPE * y)


if __name__ == "__main__":
    key = jax.random.PRNGKey(0)
    k_x, k_w, k_g, k_b, k_m, k_v = jax.random.split(key, 6)

    N, C_IN, H, W = 2, 4, 16, 16
    C_OUT, KH, KW = 8, 3, 3
    STRIDE, PADDING = 1, 1

    x = jax.random.normal(k_x, (N, C_IN, H, W), jnp.float32)
    weight = jax.random.normal(k_w, (C_OUT, C_IN, KH, KW), jnp.float32) * 0.1
    gamma = jax.random.uniform(k_g, (C_OUT,), jnp.float32, 0.5, 1.5)
    beta = jax.random.normal(k_b, (C_OUT,), jnp.float32) * 0.1
    running_mean = jax.random.normal(k_m, (C_OUT,), jnp.float32) * 0.1
    running_var = jax.random.uniform(k_v, (C_OUT,), jnp.float32, 0.5, 1.5)

    out = conv_bn_act(x, weight, gamma, beta, running_mean, running_var,
                      stride=STRIDE, padding=PADDING)
    out = jax.block_until_ready(out)
    assert out.shape == (N, C_OUT, H, W), out.shape

    # Tight check against a reference with the kernel's exact input rounding.
    ref_tight = _reference_bf16(x, weight, gamma, beta, running_mean, running_var,
                                STRIDE, PADDING)
    assert jnp.allclose(out, ref_tight, atol=1e-3, rtol=1e-3), \
        float(jnp.max(jnp.abs(out - ref_tight)))

    # Looser semantic check against the pure-f32 PyTorch-equivalent reference
    # (bf16 MXU inputs -> relaxed tolerance).
    ref_f32 = _reference_f32(x, weight, gamma, beta, running_mean, running_var,
                             STRIDE, PADDING)
    assert jnp.allclose(out, ref_f32, atol=6e-2, rtol=6e-2), \
        float(jnp.max(jnp.abs(out - ref_f32)))

    print("KERNEL_OK")
</pallas_src>

<mosaic_0001>
module attributes {stable_mosaic.version = 11 : i64} {
  func.func @kernel(%arg0: i32, %arg1: memref<1x342x4xbf16, #tpu.memory_space<vmem>>, %arg2: memref<9x4x128xbf16, #tpu.memory_space<vmem>>, %arg3: memref<1x128xf32, #tpu.memory_space<vmem>>, %arg4: memref<1x288x128xf32, #tpu.memory_space<vmem>>, %arg5: memref<288x128xf32, #tpu.memory_space<vmem>>) attributes {dimension_semantics = [#tpu.dimension_semantics<parallel>], iteration_bounds = array<i64: 2>, scalar_prefetch = 0 : i64, scratch_operands = 1 : i64, tpu.core_type = #tpu.core_type<tc>, window_params = [{transform_indices = @transform_0, window_bounds = array<i64: 1, 342, 4>}, {pipeline_mode = #tpu.pipeline_mode<synchronous>, transform_indices = @transform_1, window_bounds = array<i64: 9, 4, 128>}, {pipeline_mode = #tpu.pipeline_mode<synchronous>, transform_indices = @transform_2, window_bounds = array<i64: 1, 128>}, {transform_indices = @transform_3, window_bounds = array<i64: 1, 288, 128>}]} {
    %c0 = arith.constant 0 : index
    %c0_0 = arith.constant 0 : index
    %c0_1 = arith.constant 0 : index
    %0 = vector.load %arg1[%c0, %c0_0, %c0_1] : memref<1x342x4xbf16, #tpu.memory_space<vmem>>, vector<1x288x4xbf16>
    %1 = vector.shape_cast %0 : vector<1x288x4xbf16> to vector<288x4xbf16>
    %c0_2 = arith.constant 0 : index
    %c0_3 = arith.constant 0 : index
    %c0_4 = arith.constant 0 : index
    %2 = vector.load %arg2[%c0_2, %c0_3, %c0_4] : memref<9x4x128xbf16, #tpu.memory_space<vmem>>, vector<1x4x128xbf16>
    %3 = vector.shape_cast %2 : vector<1x4x128xbf16> to vector<4x128xbf16>
    %cst = arith.constant dense<0.000000e+00> : vector<288x128xf32>
    %4 = tpu.matmul %1, %3, %cst {dimension_numbers = #tpu.dot_dimension_numbers<[1], [0], [0], [1], [0, 0, 1, 1], [], []>} : vector<288x4xbf16>, vector<4x128xbf16>, vector<288x128xf32> -> vector<288x128xf32>
    %c0_5 = arith.constant 0 : index
    %c0_6 = arith.constant 0 : index
    %5 = vector.load %arg5[%c0_5, %c0_6] : memref<288x128xf32, #tpu.memory_space<vmem>>, vector<288x128xf32>
    tpu.vector_store %arg5[%c0_5, %c0_6], %4 {strides = array<i32>} : memref<288x128xf32, #tpu.memory_space<vmem>>, vector<288x128xf32>,
    %c0_7 = arith.constant 0 : index
    %c1 = arith.constant 1 : index
    %c0_8 = arith.constant 0 : index
    %6 = vector.load %arg1[%c0_7, %c1, %c0_8] : memref<1x342x4xbf16, #tpu.memory_space<vmem>>, vector<1x288x4xbf16>
    %7 = vector.shape_cast %6 : vector<1x288x4xbf16> to vector<288x4xbf16>
    %c1_9 = arith.constant 1 : index
    %c0_10 = arith.constant 0 : index
    %c0_11 = arith.constant 0 : index
    %8 = vector.load %arg2[%c1_9, %c0_10, %c0_11] : memref<9x4x128xbf16, #tpu.memory_space<vmem>>, vector<1x4x128xbf16>
    %9 = vector.shape_cast %8 : vector<1x4x128xbf16> to vector<4x128xbf16>
    %cst_12 = arith.constant dense<0.000000e+00> : vector<288x128xf32>
    %10 = tpu.matmul %7, %9, %cst_12 {dimension_numbers = #tpu.dot_dimension_numbers<[1], [0], [0], [1], [0, 0, 1, 1], [], []>} : vector<288x4xbf16>, vector<4x128xbf16>, vector<288x128xf32> -> vector<288x128xf32>
    %c0_13 = arith.constant 0 : index
    %c0_14 = arith.constant 0 : index
    %11 = vector.load %arg5[%c0_13, %c0_14] : memref<288x128xf32, #tpu.memory_space<vmem>>, vector<288x128xf32>
    %12 = arith.addf %11, %10 : vector<288x128xf32>
    %c0_15 = arith.constant 0 : index
    %c0_16 = arith.constant 0 : index
    %13 = vector.load %arg5[%c0_15, %c0_16] : memref<288x128xf32, #tpu.memory_space<vmem>>, vector<288x128xf32>
    tpu.vector_store %arg5[%c0_15, %c0_16], %12 {strides = array<i32>} : memref<288x128xf32, #tpu.memory_space<vmem>>, vector<288x128xf32>,
    %c0_17 = arith.constant 0 : index
    %c2 = arith.constant 2 : index
    %c0_18 = arith.constant 0 : index
    %14 = vector.load %arg1[%c0_17, %c2, %c0_18] : memref<1x342x4xbf16, #tpu.memory_space<vmem>>, vector<1x288x4xbf16>
    %15 = vector.shape_cast %14 : vector<1x288x4xbf16> to vector<288x4xbf16>
    %c2_19 = arith.constant 2 : index
    %c0_20 = arith.constant 0 : index
    %c0_21 = arith.constant 0 : index
    %16 = vector.load %arg2[%c2_19, %c0_20, %c0_21] : memref<9x4x128xbf16, #tpu.memory_space<vmem>>, vector<1x4x128xbf16>
    %17 = vector.shape_cast %16 : vector<1x4x128xbf16> to vector<4x128xbf16>
    %cst_22 = arith.constant dense<0.000000e+00> : vector<288x128xf32>
    %18 = tpu.matmul %15, %17, %cst_22 {dimension_numbers = #tpu.dot_dimension_numbers<[1], [0], [0], [1], [0, 0, 1, 1], [], []>} : vector<288x4xbf16>, vector<4x128xbf16>, vector<288x128xf32> -> vector<288x128xf32>
    %c0_23 = arith.constant 0 : index
    %c0_24 = arith.constant 0 : index
    %19 = vector.load %arg5[%c0_23, %c0_24] : memref<288x128xf32, #tpu.memory_space<vmem>>, vector<288x128xf32>
    %20 = arith.addf %19, %18 : vector<288x128xf32>
    %c0_25 = arith.constant 0 : index
    %c0_26 = arith.constant 0 : index
    %21 = vector.load %arg5[%c0_25, %c0_26] : memref<288x128xf32, #tpu.memory_space<vmem>>, vector<288x128xf32>
    tpu.vector_store %arg5[%c0_25, %c0_26], %20 {strides = array<i32>} : memref<288x128xf32, #tpu.memory_space<vmem>>, vector<288x128xf32>,
    %c0_27 = arith.constant 0 : index
    %c18 = arith.constant 18 : index
    %c0_28 = arith.constant 0 : index
    %22 = vector.load %arg1[%c0_27, %c18, %c0_28] : memref<1x342x4xbf16, #tpu.memory_space<vmem>>, vector<1x288x4xbf16>
    %23 = vector.shape_cast %22 : vector<1x288x4xbf16> to vector<288x4xbf16>
    %c3 = arith.constant 3 : index
    %c0_29 = arith.constant 0 : index
    %c0_30 = arith.constant 0 : index
    %24 = vector.load %arg2[%c3, %c0_29, %c0_30] : memref<9x4x128xbf16, #tpu.memory_space<vmem>>, vector<1x4x128xbf16>
    %25 = vector.shape_cast %24 : vector<1x4x128xbf16> to vector<4x128xbf16>
    %cst_31 = arith.constant dense<0.000000e+00> : vector<288x128xf32>
    %26 = tpu.matmul %23, %25, %cst_31 {dimension_numbers = #tpu.dot_dimension_numbers<[1], [0], [0], [1], [0, 0, 1, 1], [], []>} : vector<288x4xbf16>, vector<4x128xbf16>, vector<288x128xf32> -> vector<288x128xf32>
    %c0_32 = arith.constant 0 : index
    %c0_33 = arith.constant 0 : index
    %27 = vector.load %arg5[%c0_32, %c0_33] : memref<288x128xf32, #tpu.memory_space<vmem>>, vector<288x128xf32>
    %28 = arith.addf %27, %26 : vector<288x128xf32>
    %c0_34 = arith.constant 0 : index
    %c0_35 = arith.constant 0 : index
    %29 = vector.load %arg5[%c0_34, %c0_35] : memref<288x128xf32, #tpu.memory_space<vmem>>, vector<288x128xf32>
    tpu.vector_store %arg5[%c0_34, %c0_35], %28 {strides = array<i32>} : memref<288x128xf32, #tpu.memory_space<vmem>>, vector<288x128xf32>,
    %c0_36 = arith.constant 0 : index
    %c19 = arith.constant 19 : index
    %c0_37 = arith.constant 0 : index
    %30 = vector.load %arg1[%c0_36, %c19, %c0_37] : memref<1x342x4xbf16, #tpu.memory_space<vmem>>, vector<1x288x4xbf16>
    %31 = vector.shape_cast %30 : vector<1x288x4xbf16> to vector<288x4xbf16>
    %c4 = arith.constant 4 : index
    %c0_38 = arith.constant 0 : index
    %c0_39 = arith.constant 0 : index
    %32 = vector.load %arg2[%c4, %c0_38, %c0_39] : memref<9x4x128xbf16, #tpu.memory_space<vmem>>, vector<1x4x128xbf16>
    %33 = vector.shape_cast %32 : vector<1x4x128xbf16> to vector<4x128xbf16>
    %cst_40 = arith.constant dense<0.000000e+00> : vector<288x128xf32>
    %34 = tpu.matmul %31, %33, %cst_40 {dimension_numbers = #tpu.dot_dimension_numbers<[1], [0], [0], [1], [0, 0, 1, 1], [], []>} : vector<288x4xbf16>, vector<4x128xbf16>, vector<288x128xf32> -> vector<288x128xf32>
    %c0_41 = arith.constant 0 : index
    %c0_42 = arith.constant 0 : index
    %35 = vector.load %arg5[%c0_41, %c0_42] : memref<288x128xf32, #tpu.memory_space<vmem>>, vector<288x128xf32>
    %36 = arith.addf %35, %34 : vector<288x128xf32>
    %c0_43 = arith.constant 0 : index
    %c0_44 = arith.constant 0 : index
    %37 = vector.load %arg5[%c0_43, %c0_44] : memref<288x128xf32, #tpu.memory_space<vmem>>, vector<288x128xf32>
    tpu.vector_store %arg5[%c0_43, %c0_44], %36 {strides = array<i32>} : memref<288x128xf32, #tpu.memory_space<vmem>>, vector<288x128xf32>,
    %c0_45 = arith.constant 0 : index
    %c20 = arith.constant 20 : index
    %c0_46 = arith.constant 0 : index
    %38 = vector.load %arg1[%c0_45, %c20, %c0_46] : memref<1x342x4xbf16, #tpu.memory_space<vmem>>, vector<1x288x4xbf16>
    %39 = vector.shape_cast %38 : vector<1x288x4xbf16> to vector<288x4xbf16>
    %c5 = arith.constant 5 : index
    %c0_47 = arith.constant 0 : index
    %c0_48 = arith.constant 0 : index
    %40 = vector.load %arg2[%c5, %c0_47, %c0_48] : memref<9x4x128xbf16, #tpu.memory_space<vmem>>, vector<1x4x128xbf16>
    %41 = vector.shape_cast %40 : vector<1x4x128xbf16> to vector<4x128xbf16>
    %cst_49 = arith.constant dense<0.000000e+00> : vector<288x128xf32>
    %42 = tpu.matmul %39, %41, %cst_49 {dimension_numbers = #tpu.dot_dimension_numbers<[1], [0], [0], [1], [0, 0, 1, 1], [], []>} : vector<288x4xbf16>, vector<4x128xbf16>, vector<288x128xf32> -> vector<288x128xf32>
    %c0_50 = arith.constant 0 : index
    %c0_51 = arith.constant 0 : index
    %43 = vector.load %arg5[%c0_50, %c0_51] : memref<288x128xf32, #tpu.memory_space<vmem>>, vector<288x128xf32>
    %44 = arith.addf %43, %42 : vector<288x128xf32>
    %c0_52 = arith.constant 0 : index
    %c0_53 = arith.constant 0 : index
    %45 = vector.load %arg5[%c0_52, %c0_53] : memref<288x128xf32, #tpu.memory_space<vmem>>, vector<288x128xf32>
    tpu.vector_store %arg5[%c0_52, %c0_53], %44 {strides = array<i32>} : memref<288x128xf32, #tpu.memory_space<vmem>>, vector<288x128xf32>,
    %c0_54 = arith.constant 0 : index
    %c36 = arith.constant 36 : index
    %c0_55 = arith.constant 0 : index
    %46 = vector.load %arg1[%c0_54, %c36, %c0_55] : memref<1x342x4xbf16, #tpu.memory_space<vmem>>, vector<1x288x4xbf16>
    %47 = vector.shape_cast %46 : vector<1x288x4xbf16> to vector<288x4xbf16>
    %c6 = arith.constant 6 : index
    %c0_56 = arith.constant 0 : index
    %c0_57 = arith.constant 0 : index
    %48 = vector.load %arg2[%c6, %c0_56, %c0_57] : memref<9x4x128xbf16, #tpu.memory_space<vmem>>, vector<1x4x128xbf16>
    %49 = vector.shape_cast %48 : vector<1x4x128xbf16> to vector<4x128xbf16>
    %cst_58 = arith.constant dense<0.000000e+00> : vector<288x128xf32>
    %50 = tpu.matmul %47, %49, %cst_58 {dimension_numbers = #tpu.dot_dimension_numbers<[1], [0], [0], [1], [0, 0, 1, 1], [], []>} : vector<288x4xbf16>, vector<4x128xbf16>, vector<288x128xf32> -> vector<288x128xf32>
    %c0_59 = arith.constant 0 : index
    %c0_60 = arith.constant 0 : index
    %51 = vector.load %arg5[%c0_59, %c0_60] : memref<288x128xf32, #tpu.memory_space<vmem>>, vector<288x128xf32>
    %52 = arith.addf %51, %50 : vector<288x128xf32>
    %c0_61 = arith.constant 0 : index
    %c0_62 = arith.constant 0 : index
    %53 = vector.load %arg5[%c0_61, %c0_62] : memref<288x128xf32, #tpu.memory_space<vmem>>, vector<288x128xf32>
    tpu.vector_store %arg5[%c0_61, %c0_62], %52 {strides = array<i32>} : memref<288x128xf32, #tpu.memory_space<vmem>>, vector<288x128xf32>,
    %c0_63 = arith.constant 0 : index
    %c37 = arith.constant 37 : index
    %c0_64 = arith.constant 0 : index
    %54 = vector.load %arg1[%c0_63, %c37, %c0_64] : memref<1x342x4xbf16, #tpu.memory_space<vmem>>, vector<1x288x4xbf16>
    %55 = vector.shape_cast %54 : vector<1x288x4xbf16> to vector<288x4xbf16>
    %c7 = arith.constant 7 : index
    %c0_65 = arith.constant 0 : index
    %c0_66 = arith.constant 0 : index
    %56 = vector.load %arg2[%c7, %c0_65, %c0_66] : memref<9x4x128xbf16, #tpu.memory_space<vmem>>, vector<1x4x128xbf16>
    %57 = vector.shape_cast %56 : vector<1x4x128xbf16> to vector<4x128xbf16>
    %cst_67 = arith.constant dense<0.000000e+00> : vector<288x128xf32>
    %58 = tpu.matmul %55, %57, %cst_67 {dimension_numbers = #tpu.dot_dimension_numbers<[1], [0], [0], [1], [0, 0, 1, 1], [], []>} : vector<288x4xbf16>, vector<4x128xbf16>, vector<288x128xf32> -> vector<288x128xf32>
    %c0_68 = arith.constant 0 : index
    %c0_69 = arith.constant 0 : index
    %59 = vector.load %arg5[%c0_68, %c0_69] : memref<288x128xf32, #tpu.memory_space<vmem>>, vector<288x128xf32>
    %60 = arith.addf %59, %58 : vector<288x128xf32>
    %c0_70 = arith.constant 0 : index
    %c0_71 = arith.constant 0 : index
    %61 = vector.load %arg5[%c0_70, %c0_71] : memref<288x128xf32, #tpu.memory_space<vmem>>, vector<288x128xf32>
    tpu.vector_store %arg5[%c0_70, %c0_71], %60 {strides = array<i32>} : memref<288x128xf32, #tpu.memory_space<vmem>>, vector<288x128xf32>,
    %c0_72 = arith.constant 0 : index
    %c38 = arith.constant 38 : index
    %c0_73 = arith.constant 0 : index
    %62 = vector.load %arg1[%c0_72, %c38, %c0_73] : memref<1x342x4xbf16, #tpu.memory_space<vmem>>, vector<1x288x4xbf16>
    %63 = vector.shape_cast %62 : vector<1x288x4xbf16> to vector<288x4xbf16>
    %c8 = arith.constant 8 : index
    %c0_74 = arith.constant 0 : index
    %c0_75 = arith.constant 0 : index
    %64 = vector.load %arg2[%c8, %c0_74, %c0_75] : memref<9x4x128xbf16, #tpu.memory_space<vmem>>, vector<1x4x128xbf16>
    %65 = vector.shape_cast %64 : vector<1x4x128xbf16> to vector<4x128xbf16>
    %cst_76 = arith.constant dense<0.000000e+00> : vector<288x128xf32>
    %66 = tpu.matmul %63, %65, %cst_76 {dimension_numbers = #tpu.dot_dimension_numbers<[1], [0], [0], [1], [0, 0, 1, 1], [], []>} : vector<288x4xbf16>, vector<4x128xbf16>, vector<288x128xf32> -> vector<288x128xf32>
    %c0_77 = arith.constant 0 : index
    %c0_78 = arith.constant 0 : index
    %67 = vector.load %arg5[%c0_77, %c0_78] : memref<288x128xf32, #tpu.memory_space<vmem>>, vector<288x128xf32>
    %68 = arith.addf %67, %66 : vector<288x128xf32>
    %c0_79 = arith.constant 0 : index
    %c0_80 = arith.constant 0 : index
    %69 = vector.load %arg5[%c0_79, %c0_80] : memref<288x128xf32, #tpu.memory_space<vmem>>, vector<288x128xf32>
    tpu.vector_store %arg5[%c0_79, %c0_80], %68 {strides = array<i32>} : memref<288x128xf32, #tpu.memory_space<vmem>>, vector<288x128xf32>,
    %c0_81 = arith.constant 0 : index
    %c0_82 = arith.constant 0 : index
    %70 = vector.load %arg5[%c0_81, %c0_82] : memref<288x128xf32, #tpu.memory_space<vmem>>, vector<288x128xf32>
    %c0_83 = arith.constant 0 : index
    %c0_84 = arith.constant 0 : index
    %71 = vector.load %arg3[%c0_83, %c0_84] : memref<1x128xf32, #tpu.memory_space<vmem>>, vector<1x128xf32>
    %72 = vector.broadcast %71 : vector<1x128xf32> to vector<288x128xf32>
    %73 = arith.addf %70, %72 : vector<288x128xf32>
    %cst_85 = arith.constant 0.000000e+00 : f32
    %74 = vector.broadcast %cst_85 : f32 to vector<288x128xf32>
    %75 = arith.cmpf ogt, %73, %74 : vector<288x128xf32>
    %cst_86 = arith.constant 0.00999999977 : f32
    %76 = vector.broadcast %cst_86 : f32 to vector<288x128xf32>
    %77 = arith.mulf %76, %73 : vector<288x128xf32>
    %78 = arith.select %75, %73, %77 : vector<288x128xi1>, vector<288x128xf32>
    %c0_87 = arith.constant 0 : index
    %c0_88 = arith.constant 0 : index
    %c0_89 = arith.constant 0 : index
    %79 = vector.load %arg4[%c0_87, %c0_88, %c0_89] : memref<1x288x128xf32, #tpu.memory_space<vmem>>, vector<1x288x128xf32>
    %80 = vector.shape_cast %79 : vector<1x288x128xf32> to vector<288x128xf32>
    %81 = vector.shape_cast %78 : vector<288x128xf32> to vector<1x288x128xf32>
    tpu.vector_store %arg4[%c0_87, %c0_88, %c0_89], %81 {strides = array<i32>} : memref<1x288x128xf32, #tpu.memory_space<vmem>>, vector<1x288x128xf32>,
    return
  }
  func.func @transform_0(%arg0: i32) -> (i32, i32, i32) {
    %c0_i32 = arith.constant 0 : i32
    %c0_i32_0 = arith.constant 0 : i32
    %c0_i32_1 = arith.constant 0 : i32
    return %arg0, %c0_i32, %c0_i32_0 : i32, i32, i32
  }
  func.func @transform_1(%arg0: i32) -> (i32, i32, i32) {
    %c0_i32 = arith.constant 0 : i32
    %c0_i32_0 = arith.constant 0 : i32
    %c0_i32_1 = arith.constant 0 : i32
    %c0_i32_2 = arith.constant 0 : i32
    return %c0_i32, %c0_i32_0, %c0_i32_1 : i32, i32, i32
  }
  func.func @transform_2(%arg0: i32) -> (i32, i32) {
    %c0_i32 = arith.constant 0 : i32
    %c0_i32_0 = arith.constant 0 : i32
    %c0_i32_1 = arith.constant 0 : i32
    return %c0_i32, %c0_i32_0 : i32, i32
  }
  func.func @transform_3(%arg0: i32) -> (i32, i32, i32) {
    %c0_i32 = arith.constant 0 : i32
    %c0_i32_0 = arith.constant 0 : i32
    %c0_i32_1 = arith.constant 0 : i32
    return %arg0, %c0_i32, %c0_i32_0 : i32, i32, i32
  }
}

</mosaic_0001>

<llo_original>
// kernel: conv_bn_act.1
$region0: #{conv_bn_act.1}
  #allocation0 [shape = 'u32[]', space=smem, size = 0x4, offset = 0x4, fixed_abs, tag = 'smem constant byte address 0x4 - core index']
  #allocation1 [shape = 'u32[72,128]{1,0:T(1,128)}', space=vmem, size = 0x9000, scoped, tag = 'internal scratch']
  #allocation2 [shape = 'f32[288,128]{1,0:T(8,128)}', space=vmem, size = 0x24000, scoped, tag = 'scratch operand']
  %s0 = inlined_call_operand.vmem [shape: bf16[2,342,4], index: 0, kind: input, shape index: {}]
  %s1 = inlined_call_operand.vmem [shape: bf16[9,4,128], index: 1, kind: input, shape index: {}]
  %s2 = inlined_call_operand.vmem [shape: f32[1,128], index: 2, kind: input, shape index: {}]
  %s3 = inlined_call_operand.vmem [shape: f32[2,288,128], index: 3, kind: output, shape index: {}]
  %s4 = sld [smem:[#allocation0]]
  $region45: #{conv_bn_act.1} parent=0
    _
  %s6 = ssub.s32 1, %s4
  %s7 = scalar_select 0, %s6, %s4
  loop: start=0, step=1, limit=4
  $region2: #{conv_bn_act.1} parent=0 // loop_pre_header
    _
  $region3: #{conv_bn_act.1} parent=0 // loop_header
    %s9 = sphi 0, %s13
    %p10 = scmp.ge.s32.totalorder %s9, 4
    %s19 = sphi 0, %s21
    %s22 = sphi 0, %s19
    %s23 = sphi 0, %s22
    %s39 = sphi 0, %s23
    %s43 = sphi 0, %s43
    %s45 = sphi 0, %s43
    %s46 = sphi 0, %s45
    %s60 = sphi 0, %s46
    %s64 = sphi 0, %s64
    %s66 = sphi 0, %s64
    %s67 = sphi 0, %s66
    %s81 = sphi 0, %s67
    %s87 = sphi 0, %s89
    %s90 = sphi 0, %s87
    %s91 = sphi 0, %s90
    %s107 = sphi 0, %s91
  $region4: #{conv_bn_act.1} parent=0 // loop_header_branch
    %12 = sbr.rel (%p10) target = $region8
  $region5: #{conv_bn_act.1} parent=0 // loop_body
    %s14 = ssub.s32 %s9, 1
    %s15 = ssub.s32 %s9, 2
    %s16 = sadd.s32 %s9, 1
    %s17 = ssub.s32 %s9, %s16
    %p18 = scmp.eq.s32.totalorder %s17, 0
    %s20 = sadd.s32 %s19, 1
    %s21 = scalar_select %p18, %s19, %s20
    %p24 = pneg %p18
    %p25 = scmp.eq.s32.totalorder %s9, 1
    %p26 = por %p24, %p25
    %p27 = scmp.ne.s32.totalorder %s19, %s22
    %p28 = scmp.eq.s32.totalorder %s9, 0
    %p29 = por %p27, %p28
    %p30 = scmp.ne.s32.totalorder %s19, %s22
    %p31 = scmp.eq.s32.totalorder %s14, 1
    %p32 = por %p30, %p31
    %p33 = scmp.ne.s32.totalorder %s22, %s23
    %p34 = scmp.eq.s32.totalorder %s14, 0
    %p35 = por %p33, %p34
    %p36 = scmp.ne.s32.totalorder %s22, %s23
    %p37 = scmp.eq.s32.totalorder %s15, 1
    %p38 = por %p36, %p37
    %p40 = scmp.ne.s32.totalorder %s23, %s39
    %p41 = scmp.eq.s32.totalorder %s15, 0
    %p42 = por %p40, %p41
    %s44 = sadd.s32 %s43, 1
    %p47 = scmp.eq.s32.totalorder %s9, 1
    %p48 = scmp.ne.s32.totalorder %s43, %s45
    %p49 = scmp.eq.s32.totalorder %s9, 0
    %p50 = por %p48, %p49
    %p51 = scmp.ne.s32.totalorder %s43, %s45
    %p52 = scmp.eq.s32.totalorder %s14, 1
    %p53 = por %p51, %p52
    %p54 = scmp.ne.s32.totalorder %s45, %s46
    %p55 = scmp.eq.s32.totalorder %s14, 0
    %p56 = por %p54, %p55
    %p57 = scmp.ne.s32.totalorder %s45, %s46
    %p58 = scmp.eq.s32.totalorder %s15, 1
    %p59 = por %p57, %p58
    %p61 = scmp.ne.s32.totalorder %s46, %s60
    %p62 = scmp.eq.s32.totalorder %s15, 0
    %p63 = por %p61, %p62
    %s65 = sadd.s32 %s64, 1
    %p68 = scmp.eq.s32.totalorder %s9, 1
    %p69 = scmp.ne.s32.totalorder %s64, %s66
    %p70 = scmp.eq.s32.totalorder %s9, 0
    %p71 = por %p69, %p70
    %p72 = scmp.ne.s32.totalorder %s64, %s66
    %p73 = scmp.eq.s32.totalorder %s14, 1
    %p74 = por %p72, %p73
    %p75 = scmp.ne.s32.totalorder %s66, %s67
    %p76 = scmp.eq.s32.totalorder %s14, 0
    %p77 = por %p75, %p76
    %p78 = scmp.ne.s32.totalorder %s66, %s67
    %p79 = scmp.eq.s32.totalorder %s15, 1
    %p80 = por %p78, %p79
    %p82 = scmp.ne.s32.totalorder %s67, %s81
    %p83 = scmp.eq.s32.totalorder %s15, 0
    %p84 = por %p82, %p83
    %s85 = ssub.s32 %s9, %s16
    %p86 = scmp.eq.s32.totalorder %s85, 0
    %s88 = sadd.s32 %s87, 1
    %s89 = scalar_select %p86, %s87, %s88
    %p92 = pneg %p86
    %p93 = scmp.eq.s32.totalorder %s9, 1
    %p94 = por %p92, %p93
    %p95 = scmp.ne.s32.totalorder %s87, %s90
    %p96 = scmp.eq.s32.totalorder %s9, 0
    %p97 = por %p95, %p96
    %p98 = scmp.ne.s32.totalorder %s87, %s90
    %p99 = scmp.eq.s32.totalorder %s14, 1
    %p100 = por %p98, %p99
    %p101 = scmp.ne.s32.totalorder %s90, %s91
    %p102 = scmp.eq.s32.totalorder %s14, 0
    %p103 = por %p101, %p102
    %p104 = scmp.ne.s32.totalorder %s90, %s91
    %p105 = scmp.eq.s32.totalorder %s15, 1
    %p106 = por %p104, %p105
    %p108 = scmp.ne.s32.totalorder %s91, %s107
    %p109 = scmp.eq.s32.totalorder %s15, 0
    %p110 = por %p108, %p109
    %p111 = scmp.le.s32.totalorder 1, %s9
    %p112 = scmp.lt.s32.totalorder %s9, 3
    %p113 = pnand %p111, %p112
    %p114 = pneg %p113
    // Predicated region
    $region9: #{conv_bn_act.1} parent=5 // pred_check
      _
    $region10: #{conv_bn_act.1} parent=5 // pred_check_branch
      %116 = sbr.rel (%p113) target = $region12
    $region11: #{conv_bn_act.1} parent=5 // pred_region
      %s117 = ssub.s32 %s9, 1
      // Predicated region
      $region13: #{conv_bn_act.1} parent=11 // pred_check
        %p118 = pneg %p56
      $region14: #{conv_bn_act.1} parent=11 // pred_check_branch
        %120 = sbr.rel (%p118) target = $region16
      $region15: #{conv_bn_act.1} parent=11 // pred_region
        _
      $region16: #{conv_bn_act.1} parent=11 // pred_fallthru
        _
      // Predicated region
      $region17: #{conv_bn_act.1} parent=11 // pred_check
        %p121 = pneg %p77
      $region18: #{conv_bn_act.1} parent=11 // pred_check_branch
        %123 = sbr.rel (%p121) target = $region20
      $region19: #{conv_bn_act.1} parent=11 // pred_region
        _
      $region20: #{conv_bn_act.1} parent=11 // pred_fallthru
        _
    $region12: #{conv_bn_act.1} parent=5 // pred_fallthru
      _
    %p124 = scmp.lt.s32.totalorder %s9, 2
    // Predicated region
    $region21: #{conv_bn_act.1} parent=5 // pred_check
      %p125 = pneg %p124
    $region22: #{conv_bn_act.1} parent=5 // pred_check_branch
      %127 = sbr.rel (%p125) target = $region24
    $region23: #{conv_bn_act.1} parent=5 // pred_region
      // Predicated region
      $region25: #{conv_bn_act.1} parent=23 // pred_check
        %p128 = pneg %p29
      $region26: #{conv_bn_act.1} parent=23 // pred_check_branch
        %130 = sbr.rel (%p128) target = $region28
      $region27: #{conv_bn_act.1} parent=23 // pred_region
        %p131 = scmp.lt.s32.totalorder %s9, 1
        %s132 = scalar_select %p131, %s9, 1
        %s133 = smul.addr %s132, 43
        %s134 = smul.addr %s133, 4
        %s135 = scalar_lea.vmem %s0, %s134
      $region28: #{conv_bn_act.1} parent=23 // pred_fallthru
        _
    $region24: #{conv_bn_act.1} parent=5 // pred_fallthru
      _
    %p136 = scmp.le.s32.totalorder 1, %s9
    %p137 = scmp.lt.s32.totalorder %s9, 3
    %p138 = pnand %p136, %p137
    %p139 = pneg %p138
    // Predicated region
    $region29: #{conv_bn_act.1} parent=5 // pred_check
      _
    $region30: #{conv_bn_act.1} parent=5 // pred_check_branch
      %141 = sbr.rel (%p138) target = $region32
    $region31: #{conv_bn_act.1} parent=5 // pred_region
      %s142 = ssub.s32 %s9, 1
      %p143 = scmp.lt.s32.totalorder %s14, 1
      %s144 = scalar_select %p143, %s14, 1
      %s145 = smul.addr %s144, 43
      %s146 = smul.addr %s145, 4
      %s147 = scalar_lea.vmem %s0, %s146
      %p148 = pneg %p35
      %p149 = pneg %p32
      %p150 = pneg %p56
      %p151 = pneg %p53
      %p152 = pneg %p77
      %p153 = pneg %p74
      %p154 = pneg %p103
      %p155 = pneg %p100
      %p156 = scmp.lt.s32.totalorder %s14, 1
      %s157 = scalar_select %p156, %s14, 1
      %s158 = smul.addr %s157, 36
      %s159 = smul.addr %s158, 8
      %s160 = scalar_lea.vmem %s3, %s159
      %p161 = scmp.lt.s32.totalorder %s14, 1
      %s162 = scalar_select %p161, %s14, 1
      %s163 = smul.addr %s162, 43
      %s164 = smul.addr %s163, 4
      %s165 = scalar_lea.vmem %s0, %s164
      %p166 = scmp.lt.s32.totalorder %s14, 1
      %s167 = scalar_select %p166, %s14, 1
      %s168 = smul.addr %s167, 36
      %s169 = smul.addr %s168, 8
      %s170 = scalar_lea.vmem %s3, %s169
      %v172 = vld [vmem:[%s165] sm:$0xf]
      %v173 = vld [vmem:[%s165 + $0x4] sm:$0xf]
      %v174 = vld [vmem:[%s165 + $0x8] sm:$0xf]
      %v175 = vld [vmem:[%s165 + $0xc] sm:$0xf]
      %v176 = vld [vmem:[%s165 + $0x10] sm:$0xf]
      %v177 = vld [vmem:[%s165 + $0x14] sm:$0xf]
      %v178 = vld [vmem:[%s165 + $0x18] sm:$0xf]
      %v179 = vld [vmem:[%s165 + $0x1c] sm:$0xf]
      %v180 = vld [vmem:[%s165 + $0x20] sm:$0xf]
      %v181 = vld [vmem:[%s165 + $0x24] sm:$0xf]
      %v182 = vld [vmem:[%s165 + $0x28] sm:$0xf]
      %v183 = vld [vmem:[%s165 + $0x2c] sm:$0xf]
      %v184 = vld [vmem:[%s165 + $0x30] sm:$0xf]
      %v185 = vld [vmem:[%s165 + $0x34] sm:$0xf]
      %v186 = vld [vmem:[%s165 + $0x38] sm:$0xf]
      %v187 = vld [vmem:[%s165 + $0x3c] sm:$0xf]
      %v188 = vld [vmem:[%s165 + $0x40] sm:$0xf]
      %v189 = vld [vmem:[%s165 + $0x44] sm:$0xf]
      %v190 = vld [vmem:[%s165 + $0x48] sm:$0xf]
      %v191 = vld [vmem:[%s165 + $0x4c] sm:$0xf]
      %v192 = vld [vmem:[%s165 + $0x50] sm:$0xf]
      %v193 = vld [vmem:[%s165 + $0x54] sm:$0xf]
      %v194 = vld [vmem:[%s165 + $0x58] sm:$0xf]
      %v195 = vld [vmem:[%s165 + $0x5c] sm:$0xf]
      %v196 = vld [vmem:[%s165 + $0x60] sm:$0xf]
      %v197 = vld [vmem:[%s165 + $0x64] sm:$0xf]
      %v198 = vld [vmem:[%s165 + $0x68] sm:$0xf]
      %v199 = vld [vmem:[%s165 + $0x6c] sm:$0xf]
      %v200 = vld [vmem:[%s165 + $0x70] sm:$0xf]
      %v201 = vld [vmem:[%s165 + $0x74] sm:$0xf]
      %v202 = vld [vmem:[%s165 + $0x78] sm:$0xf]
      %v203 = vld [vmem:[%s165 + $0x7c] sm:$0xf]
      %v204 = vld [vmem:[%s165 + $0x80] sm:$0xf]
      %v205 = vld [vmem:[%s165 + $0x84] sm:$0xf]
      %v206 = vld [vmem:[%s165 + $0x88] sm:$0xf]
      %v207 = vld [vmem:[%s165 + $0x8c] sm:$0xf]
      %v208 = vld [vmem:[%s1] sm:$0x3]
      %v245 = vunpack.c.l.b16 %v172
      %v246 = vunpack.c.l.b16 %v173
      %v247 = vunpack.c.l.b16 %v174
      %v248 = vunpack.c.l.b16 %v175
      %v249 = vunpack.c.l.b16 %v176
      %v250 = vunpack.c.l.b16 %v177
      %v251 = vunpack.c.l.b16 %v178
      %v252 = vunpack.c.l.b16 %v179
      %v253 = vunpack.c.l.b16 %v180
      %v254 = vunpack.c.l.b16 %v181
      %v255 = vunpack.c.l.b16 %v182
      %v256 = vunpack.c.l.b16 %v183
      %v257 = vunpack.c.l.b16 %v184
      %v258 = vunpack.c.l.b16 %v185
      %v259 = vunpack.c.l.b16 %v186
      %v260 = vunpack.c.l.b16 %v187
      %v261 = vunpack.c.l.b16 %v188
      %v262 = vunpack.c.l.b16 %v189
      %v263 = vunpack.c.l.b16 %v190
      %v264 = vunpack.c.l.b16 %v191
      %v265 = vunpack.c.l.b16 %v192
      %v266 = vunpack.c.l.b16 %v193
      %v267 = vunpack.c.l.b16 %v194
      %v268 = vunpack.c.l.b16 %v195
      %v269 = vunpack.c.l.b16 %v196
      %v270 = vunpack.c.l.b16 %v197
      %v271 = vunpack.c.l.b16 %v198
      %v272 = vunpack.c.l.b16 %v199
      %v273 = vunpack.c.l.b16 %v200
      %v274 = vunpack.c.l.b16 %v201
      %v275 = vunpack.c.l.b16 %v202
      %v276 = vunpack.c.l.b16 %v203
      %v277 = vunpack.c.l.b16 %v204
      %v278 = vunpack.c.l.b16 %v205
      %v279 = vunpack.c.l.b16 %v206
      %v280 = vunpack.c.l.b16 %v207
      %v281 = vpack.c.b16 %v246, %v245
      %v282 = vpack.c.b16 %v248, %v247
      %v283 = vpack.c.b16 %v250, %v249
      %v284 = vpack.c.b16 %v252, %v251
      %v285 = vpack.c.b16 %v254, %v253
      %v286 = vpack.c.b16 %v256, %v255
      %v287 = vpack.c.b16 %v258, %v257
      %v288 = vpack.c.b16 %v260, %v259
      %v289 = vpack.c.b16 %v262, %v261
      %v290 = vpack.c.b16 %v264, %v263
      %v291 = vpack.c.b16 %v266, %v265
      %v292 = vpack.c.b16 %v268, %v267
      %v293 = vpack.c.b16 %v270, %v269
      %v294 = vpack.c.b16 %v272, %v271
      %v295 = vpack.c.b16 %v274, %v273
      %v296 = vpack.c.b16 %v276, %v275
      %v297 = vpack.c.b16 %v278, %v277
      %v298 = vpack.c.b16 %v280, %v279
      %vm299 = vcmask 31744
      %v301 = vsel %vm299, %v281, 0
      %v304 = vsel %vm299, %v282, 0
      %v307 = vsel %vm299, %v283, 0
      %v310 = vsel %vm299, %v284, 0
      %v313 = vsel %vm299, %v285, 0
      %v316 = vsel %vm299, %v286, 0
      %v319 = vsel %vm299, %v287, 0
      %v322 = vsel %vm299, %v288, 0
      %v325 = vsel %vm299, %v289, 0
      %v328 = vsel %vm299, %v290, 0
      %v331 = vsel %vm299, %v291, 0
      %v334 = vsel %vm299, %v292, 0
      %v337 = vsel %vm299, %v293, 0
      %v340 = vsel %vm299, %v294, 0
      %v343 = vsel %vm299, %v295, 0
      %v346 = vsel %vm299, %v296, 0
      %v349 = vsel %vm299, %v297, 0
      %v352 = vsel %vm299, %v298, 0
      %vm354 = vcmask 1041408
      %v356 = vsel %vm354, %v208, 0
      %358 = vmatpush.bf16.msra.mxu0 0
      %359 = vmatpush.bf16.msra.mxu0 0
      %360 = vmatpush.bf16.msra.mxu0 0
      %361 = vmatpush.bf16.msra.mxu0 0
      %362 = vmatpush.bf16.msra.mxu0 0
      %363 = vmatpush.bf16.msra.mxu0 0
      %364 = vmatpush.bf16.msra.mxu0 0
      %365 = vmatpush.bf16.msra.mxu0 %v356
      %366 = vmatmul.bf16.gmra.mxu0 %v301
      %v367 = vpop.f32.mrf.mxu0
      %v368 = vadd.f32 0.0, %v367
      %v369 = vpop.f32.mrf.mxu0
      %v370 = vadd.f32 0.0, %v369
      %371 = vmatmul.bf16.gmra.mxu0 %v304
      %v372 = vpop.f32.mrf.mxu0
      %v373 = vadd.f32 0.0, %v372
      %v374 = vpop.f32.mrf.mxu0
      %v375 = vadd.f32 0.0, %v374
      %376 = vmatmul.bf16.gmra.mxu0 %v307
      %v377 = vpop.f32.mrf.mxu0
      %v378 = vadd.f32 0.0, %v377
      %v379 = vpop.f32.mrf.mxu0
      %v380 = vadd.f32 0.0, %v379
      %381 = vmatmul.bf16.gmra.mxu0 %v310
      %v382 = vpop.f32.mrf.mxu0
      %v383 = vadd.f32 0.0, %v382
      %v384 = vpop.f32.mrf.mxu0
      %v385 = vadd.f32 0.0, %v384
      %386 = vmatmul.bf16.gmra.mxu0 %v313
      %v387 = vpop.f32.mrf.mxu0
      %v388 = vadd.f32 0.0, %v387
      %v389 = vpop.f32.mrf.mxu0
      %v390 = vadd.f32 0.0, %v389
      %391 = vmatmul.bf16.gmra.mxu0 %v316
      %v392 = vpop.f32.mrf.mxu0
      %v393 = vadd.f32 0.0, %v392
      %v394 = vpop.f32.mrf.mxu0
      %v395 = vadd.f32 0.0, %v394
      %396 = vmatmul.bf16.gmra.mxu0 %v319
      %v397 = vpop.f32.mrf.mxu0
      %v398 = vadd.f32 0.0, %v397
      %v399 = vpop.f32.mrf.mxu0
      %v400 = vadd.f32 0.0, %v399
      %401 = vmatmul.bf16.gmra.mxu0 %v322
      %v402 = vpop.f32.mrf.mxu0
      %v403 = vadd.f32 0.0, %v402
      %v404 = vpop.f32.mrf.mxu0
      %v405 = vadd.f32 0.0, %v404
      %406 = vmatmul.bf16.gmra.mxu0 %v325
      %v407 = vpop.f32.mrf.mxu0
      %v408 = vadd.f32 0.0, %v407
      %v409 = vpop.f32.mrf.mxu0
      %v410 = vadd.f32 0.0, %v409
      %411 = vmatmul.bf16.gmra.mxu0 %v328
      %v412 = vpop.f32.mrf.mxu0
      %v413 = vadd.f32 0.0, %v412
      %v414 = vpop.f32.mrf.mxu0
      %v415 = vadd.f32 0.0, %v414
      %416 = vmatmul.bf16.gmra.mxu0 %v331
      %v417 = vpop.f32.mrf.mxu0
      %v418 = vadd.f32 0.0, %v417
      %v419 = vpop.f32.mrf.mxu0
      %v420 = vadd.f32 0.0, %v419
      %421 = vmatmul.bf16.gmra.mxu0 %v334
      %v422 = vpop.f32.mrf.mxu0
      %v423 = vadd.f32 0.0, %v422
      %v424 = vpop.f32.mrf.mxu0
      %v425 = vadd.f32 0.0, %v424
      %426 = vmatmul.bf16.gmra.mxu0 %v337
      %v427 = vpop.f32.mrf.mxu0
      %v428 = vadd.f32 0.0, %v427
      %v429 = vpop.f32.mrf.mxu0
      %v430 = vadd.f32 0.0, %v429
      %431 = vmatmul.bf16.gmra.mxu0 %v340
      %v432 = vpop.f32.mrf.mxu0
      %v433 = vadd.f32 0.0, %v432
      %v434 = vpop.f32.mrf.mxu0
      %v435 = vadd.f32 0.0, %v434
      %436 = vmatmul.bf16.gmra.mxu0 %v343
      %v437 = vpop.f32.mrf.mxu0
      %v438 = vadd.f32 0.0, %v437
      %v439 = vpop.f32.mrf.mxu0
      %v440 = vadd.f32 0.0, %v439
      %441 = vmatmul.bf16.gmra.mxu0 %v346
      %v442 = vpop.f32.mrf.mxu0
      %v443 = vadd.f32 0.0, %v442
      %v444 = vpop.f32.mrf.mxu0
      %v445 = vadd.f32 0.0, %v444
      %446 = vmatmul.bf16.gmra.mxu0 %v349
      %v447 = vpop.f32.mrf.mxu0
      %v448 = vadd.f32 0.0, %v447
      %v449 = vpop.f32.mrf.mxu0
      %v450 = vadd.f32 0.0, %v449
      %451 = vmatmul.bf16.gmra.mxu0 %v352
      %v452 = vpop.f32.mrf.mxu0
      %v453 = vadd.f32 0.0, %v452
      %v454 = vpop.f32.mrf.mxu0
      %v455 = vadd.f32 0.0, %v454
      %456 = vdwg.mxu0
      %457 = vst [vmem:[#allocation2] sm:$0xff] %v368
      %458 = vst [vmem:[#allocation2 + $0x8] sm:$0xff] %v370
      %459 = vst [vmem:[#allocation2 + $0x10] sm:$0xff] %v373
      %460 = vst [vmem:[#allocation2 + $0x18] sm:$0xff] %v375
      %461 = vst [vmem:[#allocation2 + $0x20] sm:$0xff] %v378
      %462 = vst [vmem:[#allocation2 + $0x28] sm:$0xff] %v380
      %463 = vst [vmem:[#allocation2 + $0x30] sm:$0xff] %v383
      %464 = vst [vmem:[#allocation2 + $0x38] sm:$0xff] %v385
      %465 = vst [vmem:[#allocation2 + $0x40] sm:$0xff] %v388
      %466 = vst [vmem:[#allocation2 + $0x48] sm:$0xff] %v390
      %467 = vst [vmem:[#allocation2 + $0x50] sm:$0xff] %v393
      %468 = vst [vmem:[#allocation2 + $0x58] sm:$0xff] %v395
      %469 = vst [vmem:[#allocation2 + $0x60] sm:$0xff] %v398
      %470 = vst [vmem:[#allocation2 + $0x68] sm:$0xff] %v400
      %471 = vst [vmem:[#allocation2 + $0x70] sm:$0xff] %v403
      %472 = vst [vmem:[#allocation2 + $0x78] sm:$0xff] %v405
      %473 = vst [vmem:[#allocation2 + $0x80] sm:$0xff] %v408
      %474 = vst [vmem:[#allocation2 + $0x88] sm:$0xff] %v410
      %475 = vst [vmem:[#allocation2 + $0x90] sm:$0xff] %v413
      %476 = vst [vmem:[#allocation2 + $0x98] sm:$0xff] %v415
      %477 = vst [vmem:[#allocation2 + $0xa0] sm:$0xff] %v418
      %478 = vst [vmem:[#allocation2 + $0xa8] sm:$0xff] %v420
      %479 = vst [vmem:[#allocation2 + $0xb0] sm:$0xff] %v423
      %480 = vst [vmem:[#allocation2 + $0xb8] sm:$0xff] %v425
      %481 = vst [vmem:[#allocation2 + $0xc0] sm:$0xff] %v428
      %482 = vst [vmem:[#allocation2 + $0xc8] sm:$0xff] %v430
      %483 = vst [vmem:[#allocation2 + $0xd0] sm:$0xff] %v433
      %484 = vst [vmem:[#allocation2 + $0xd8] sm:$0xff] %v435
      %485 = vst [vmem:[#allocation2 + $0xe0] sm:$0xff] %v438
      %486 = vst [vmem:[#allocation2 + $0xe8] sm:$0xff] %v440
      %487 = vst [vmem:[#allocation2 + $0xf0] sm:$0xff] %v443
      %488 = vst [vmem:[#allocation2 + $0xf8] sm:$0xff] %v445
      %489 = vst [vmem:[#allocation2 + $0x100] sm:$0xff] %v448
      %490 = vst [vmem:[#allocation2 + $0x108] sm:$0xff] %v450
      %491 = vst [vmem:[#allocation2 + $0x110] sm:$0xff] %v453
      %492 = vst [vmem:[#allocation2 + $0x118] sm:$0xff] %v455
      %v493 = vld [vmem:[%s165] sm:$0xf]
      %v494 = vld [vmem:[%s165 + $0x4] sm:$0xf]
      %v495 = vld [vmem:[%s165 + $0x8] sm:$0xf]
      %v496 = vld [vmem:[%s165 + $0xc] sm:$0xf]
      %v497 = vld [vmem:[%s165 + $0x10] sm:$0xf]
      %v498 = vld [vmem:[%s165 + $0x14] sm:$0xf]
      %v499 = vld [vmem:[%s165 + $0x18] sm:$0xf]
      %v500 = vld [vmem:[%s165 + $0x1c] sm:$0xf]
      %v501 = vld [vmem:[%s165 + $0x20] sm:$0xf]
      %v502 = vld [vmem:[%s165 + $0x24] sm:$0xf]
      %v503 = vld [vmem:[%s165 + $0x28] sm:$0xf]
      %v504 = vld [vmem:[%s165 + $0x2c] sm:$0xf]
      %v505 = vld [vmem:[%s165 + $0x30] sm:$0xf]
      %v506 = vld [vmem:[%s165 + $0x34] sm:$0xf]
      %v507 = vld [vmem:[%s165 + $0x38] sm:$0xf]
      %v508 = vld [vmem:[%s165 + $0x3c] sm:$0xf]
      %v509 = vld [vmem:[%s165 + $0x40] sm:$0xf]
      %v510 = vld [vmem:[%s165 + $0x44] sm:$0xf]
      %v511 = vld [vmem:[%s165 + $0x48] sm:$0xf]
      %v512 = vld [vmem:[%s165 + $0x4c] sm:$0xf]
      %v513 = vld [vmem:[%s165 + $0x50] sm:$0xf]
      %v514 = vld [vmem:[%s165 + $0x54] sm:$0xf]
      %v515 = vld [vmem:[%s165 + $0x58] sm:$0xf]
      %v516 = vld [vmem:[%s165 + $0x5c] sm:$0xf]
      %v517 = vld [vmem:[%s165 + $0x60] sm:$0xf]
      %v518 = vld [vmem:[%s165 + $0x64] sm:$0xf]
      %v519 = vld [vmem:[%s165 + $0x68] sm:$0xf]
      %v520 = vld [vmem:[%s165 + $0x6c] sm:$0xf]
      %v521 = vld [vmem:[%s165 + $0x70] sm:$0xf]
      %v522 = vld [vmem:[%s165 + $0x74] sm:$0xf]
      %v523 = vld [vmem:[%s165 + $0x78] sm:$0xf]
      %v524 = vld [vmem:[%s165 + $0x7c] sm:$0xf]
      %v525 = vld [vmem:[%s165 + $0x80] sm:$0xf]
      %v526 = vld [vmem:[%s165 + $0x84] sm:$0xf]
      %v527 = vld [vmem:[%s165 + $0x88] sm:$0xf]
      %v528 = vld [vmem:[%s165 + $0x8c] sm:$0xf]
      %v529 = vld [vmem:[%s165 + $0x90] sm:$0x1]
      %s530 = scalar_lea.vmem %s1, 2
      %v531 = vld [vmem:[%s530] sm:$0x3]
      %v569 = vunpack.c.l.b16 %v493
      %v570 = vunpack.c.l.b16 %v494
      %v571 = vunpack.c.l.b16 %v495
      %v572 = vunpack.c.l.b16 %v496
      %v573 = vunpack.c.l.b16 %v497
      %v574 = vunpack.c.l.b16 %v498
      %v575 = vunpack.c.l.b16 %v499
      %v576 = vunpack.c.l.b16 %v500
      %v577 = vunpack.c.l.b16 %v501
      %v578 = vunpack.c.l.b16 %v502
      %v579 = vunpack.c.l.b16 %v503
      %v580 = vunpack.c.l.b16 %v504
      %v581 = vunpack.c.l.b16 %v505
      %v582 = vunpack.c.l.b16 %v506
      %v583 = vunpack.c.l.b16 %v507
      %v584 = vunpack.c.l.b16 %v508
      %v585 = vunpack.c.l.b16 %v509
      %v586 = vunpack.c.l.b16 %v510
      %v587 = vunpack.c.l.b16 %v511
      %v588 = vunpack.c.l.b16 %v512
      %v589 = vunpack.c.l.b16 %v513
      %v590 = vunpack.c.l.b16 %v514
      %v591 = vunpack.c.l.b16 %v515
      %v592 = vunpack.c.l.b16 %v516
      %v593 = vunpack.c.l.b16 %v517
      %v594 = vunpack.c.l.b16 %v518
      %v595 = vunpack.c.l.b16 %v519
      %v596 = vunpack.c.l.b16 %v520
      %v597 = vunpack.c.l.b16 %v521
      %v598 = vunpack.c.l.b16 %v522
      %v599 = vunpack.c.l.b16 %v523
      %v600 = vunpack.c.l.b16 %v524
      %v601 = vunpack.c.l.b16 %v525
      %v602 = vunpack.c.l.b16 %v526
      %v603 = vunpack.c.l.b16 %v527
      %v604 = vunpack.c.l.b16 %v528
      %v605 = vunpack.c.l.b16 %v529
      %v606 = vpack.c.b16 %v570, %v569
      %v607 = vpack.c.b16 %v572, %v571
      %v608 = vpack.c.b16 %v574, %v573
      %v609 = vpack.c.b16 %v576, %v575
      %v610 = vpack.c.b16 %v578, %v577
      %v611 = vpack.c.b16 %v580, %v579
      %v612 = vpack.c.b16 %v582, %v581
      %v613 = vpack.c.b16 %v584, %v583
      %v614 = vpack.c.b16 %v586, %v585
      %v615 = vpack.c.b16 %v588, %v587
      %v616 = vpack.c.b16 %v590, %v589
      %v617 = vpack.c.b16 %v592, %v591
      %v618 = vpack.c.b16 %v594, %v593
      %v619 = vpack.c.b16 %v596, %v595
      %v620 = vpack.c.b16 %v598, %v597
      %v621 = vpack.c.b16 %v600, %v599
      %v622 = vpack.c.b16 %v602, %v601
      %v623 = vpack.c.b16 %v604, %v603
      %v624 = vpack.c.b16 %v605, %v605
      %vm625 = vsmask.f32 7424
      %v627 = vshrl.u32 %v606, 16
      %v629 = vshll.u32 %v606, 16
      %v631 = vrot.slane %v629, 1
      %v632 = vor.u32 %v627, %v631
      %v634 = vshll.u32 %v607, 16
      %v636 = vrot.slane %v634, 1
      %v637 = vsel %vm625, %v632, %v636
      %v638 = vshrl.u32 %v607, 16
      %v640 = vor.u32 %v638, %v636
      %v642 = vshll.u32 %v608, 16
      %v644 = vrot.slane %v642, 1
      %v645 = vsel %vm625, %v640, %v644
      %v646 = vshrl.u32 %v608, 16
      %v648 = vor.u32 %v646, %v644
      %v650 = vshll.u32 %v609, 16
      %v652 = vrot.slane %v650, 1
      %v653 = vsel %vm625, %v648, %v652
      %v654 = vshrl.u32 %v609, 16
      %v656 = vor.u32 %v654, %v652
      %v658 = vshll.u32 %v610, 16
      %v660 = vrot.slane %v658, 1
      %v661 = vsel %vm625, %v656, %v660
      %v662 = vshrl.u32 %v610, 16
      %v664 = vor.u32 %v662, %v660
      %v666 = vshll.u32 %v611, 16
      %v668 = vrot.slane %v666, 1
      %v669 = vsel %vm625, %v664, %v668
      %v670 = vshrl.u32 %v611, 16
      %v672 = vor.u32 %v670, %v668
      %v674 = vshll.u32 %v612, 16
      %v676 = vrot.slane %v674, 1
      %v677 = vsel %vm625, %v672, %v676
      %v678 = vshrl.u32 %v612, 16
      %v680 = vor.u32 %v678, %v676
      %v682 = vshll.u32 %v613, 16
      %v684 = vrot.slane %v682, 1
      %v685 = vsel %vm625, %v680, %v684
      %v686 = vshrl.u32 %v613, 16
      %v688 = vor.u32 %v686, %v684
      %v690 = vshll.u32 %v614, 16
      %v692 = vrot.slane %v690, 1
      %v693 = vsel %vm625, %v688, %v692
      %v694 = vshrl.u32 %v614, 16
      %v696 = vor.u32 %v694, %v692
      %v698 = vshll.u32 %v615, 16
      %v700 = vrot.slane %v698, 1
      %v701 = vsel %vm625, %v696, %v700
      %v702 = vshrl.u32 %v615, 16
      %v704 = vor.u32 %v702, %v700
      %v706 = vshll.u32 %v616, 16
      %v708 = vrot.slane %v706, 1
      %v709 = vsel %vm625, %v704, %v708
      %v710 = vshrl.u32 %v616, 16
      %v712 = vor.u32 %v710, %v708
      %v714 = vshll.u32 %v617, 16
      %v716 = vrot.slane %v714, 1
      %v717 = vsel %vm625, %v712, %v716
      %v718 = vshrl.u32 %v617, 16
      %v720 = vor.u32 %v718, %v716
      %v722 = vshll.u32 %v618, 16
      %v724 = vrot.slane %v722, 1
      %v725 = vsel %vm625, %v720, %v724
      %v726 = vshrl.u32 %v618, 16
      %v728 = vor.u32 %v726, %v724
      %v730 = vshll.u32 %v619, 16
      %v732 = vrot.slane %v730, 1
      %v733 = vsel %vm625, %v728, %v732
      %v734 = vshrl.u32 %v619, 16
      %v736 = vor.u32 %v734, %v732
      %v738 = vshll.u32 %v620, 16
      %v740 = vrot.slane %v738, 1
      %v741 = vsel %vm625, %v736, %v740
      %v742 = vshrl.u32 %v620, 16
      %v744 = vor.u32 %v742, %v740
      %v746 = vshll.u32 %v621, 16
      %v748 = vrot.slane %v746, 1
      %v749 = vsel %vm625, %v744, %v748
      %v750 = vshrl.u32 %v621, 16
      %v752 = vor.u32 %v750, %v748
      %v754 = vshll.u32 %v622, 16
      %v756 = vrot.slane %v754, 1
      %v757 = vsel %vm625, %v752, %v756
      %v758 = vshrl.u32 %v622, 16
      %v760 = vor.u32 %v758, %v756
      %v762 = vshll.u32 %v623, 16
      %v764 = vrot.slane %v762, 1
      %v765 = vsel %vm625, %v760, %v764
      %v766 = vshrl.u32 %v623, 16
      %v768 = vor.u32 %v766, %v764
      %v770 = vshll.u32 %v624, 16
      %v772 = vrot.slane %v770, 1
      %v773 = vsel %vm625, %v768, %v772
      %v775 = vsel %vm299, %v637, 0
      %v778 = vsel %vm299, %v645, 0
      %v781 = vsel %vm299, %v653, 0
      %v784 = vsel %vm299, %v661, 0
      %v787 = vsel %vm299, %v669, 0
      %v790 = vsel %vm299, %v677, 0
      %v793 = vsel %vm299, %v685, 0
      %v796 = vsel %vm299, %v693, 0
      %v799 = vsel %vm299, %v701, 0
      %v802 = vsel %vm299, %v709, 0
      %v805 = vsel %vm299, %v717, 0
      %v808 = vsel %vm299, %v725, 0
      %v811 = vsel %vm299, %v733, 0
      %v814 = vsel %vm299, %v741, 0
      %v817 = vsel %vm299, %v749, 0
      %v820 = vsel %vm299, %v757, 0
      %v823 = vsel %vm299, %v765, 0
      %v826 = vsel %vm299, %v773, 0
      %v829 = vsel %vm354, %v531, 0
      %831 = vmatpush.bf16.msra.mxu0 0
      %832 = vmatpush.bf16.msra.mxu0 0
      %833 = vmatpush.bf16.msra.mxu0 0
      %834 = vmatpush.bf16.msra.mxu0 0
      %835 = vmatpush.bf16.msra.mxu0 0
      %836 = vmatpush.bf16.msra.mxu0 0
      %837 = vmatpush.bf16.msra.mxu0 0
      %838 = vmatpush.bf16.msra.mxu0 %v829
      %839 = vmatmul.bf16.gmra.mxu0 %v775
      %v840 = vpop.f32.mrf.mxu0
      %v841 = vadd.f32 0.0, %v840
      %v842 = vpop.f32.mrf.mxu0
      %v843 = vadd.f32 0.0, %v842
      %844 = vmatmul.bf16.gmra.mxu0 %v778
      %v845 = vpop.f32.mrf.mxu0
      %v846 = vadd.f32 0.0, %v845
      %v847 = vpop.f32.mrf.mxu0
      %v848 = vadd.f32 0.0, %v847
      %849 = vmatmul.bf16.gmra.mxu0 %v781
      %v850 = vpop.f32.mrf.mxu0
      %v851 = vadd.f32 0.0, %v850
      %v852 = vpop.f32.mrf.mxu0
      %v853 = vadd.f32 0.0, %v852
      %854 = vmatmul.bf16.gmra.mxu0 %v784
      %v855 = vpop.f32.mrf.mxu0
      %v856 = vadd.f32 0.0, %v855
      %v857 = vpop.f32.mrf.mxu0
      %v858 = vadd.f32 0.0, %v857
      %859 = vmatmul.bf16.gmra.mxu0 %v787
      %v860 = vpop.f32.mrf.mxu0
      %v861 = vadd.f32 0.0, %v860
      %v862 = vpop.f32.mrf.mxu0
      %v863 = vadd.f32 0.0, %v862
      %864 = vmatmul.bf16.gmra.mxu0 %v790
      %v865 = vpop.f32.mrf.mxu0
      %v866 = vadd.f32 0.0, %v865
      %v867 = vpop.f32.mrf.mxu0
      %v868 = vadd.f32 0.0, %v867
      %869 = vmatmul.bf16.gmra.mxu0 %v793
      %v870 = vpop.f32.mrf.mxu0
      %v871 = vadd.f32 0.0, %v870
      %v872 = vpop.f32.mrf.mxu0
      %v873 = vadd.f32 0.0, %v872
      %874 = vmatmul.bf16.gmra.mxu0 %v796
      %v875 = vpop.f32.mrf.mxu0
      %v876 = vadd.f32 0.0, %v875
      %v877 = vpop.f32.mrf.mxu0
      %v878 = vadd.f32 0.0, %v877
      %879 = vmatmul.bf16.gmra.mxu0 %v799
      %v880 = vpop.f32.mrf.mxu0
      %v881 = vadd.f32 0.0, %v880
      %v882 = vpop.f32.mrf.mxu0
      %v883 = vadd.f32 0.0, %v882
      %884 = vmatmul.bf16.gmra.mxu0 %v802
      %v885 = vpop.f32.mrf.mxu0
      %v886 = vadd.f32 0.0, %v885
      %v887 = vpop.f32.mrf.mxu0
      %v888 = vadd.f32 0.0, %v887
      %889 = vmatmul.bf16.gmra.mxu0 %v805
      %v890 = vpop.f32.mrf.mxu0
      %v891 = vadd.f32 0.0, %v890
      %v892 = vpop.f32.mrf.mxu0
      %v893 = vadd.f32 0.0, %v892
      %894 = vmatmul.bf16.gmra.mxu0 %v808
      %v895 = vpop.f32.mrf.mxu0
      %v896 = vadd.f32 0.0, %v895
      %v897 = vpop.f32.mrf.mxu0
      %v898 = vadd.f32 0.0, %v897
      %899 = vmatmul.bf16.gmra.mxu0 %v811
      %v900 = vpop.f32.mrf.mxu0
      %v901 = vadd.f32 0.0, %v900
      %v902 = vpop.f32.mrf.mxu0
      %v903 = vadd.f32 0.0, %v902
      %904 = vmatmul.bf16.gmra.mxu0 %v814
      %v905 = vpop.f32.mrf.mxu0
      %v906 = vadd.f32 0.0, %v905
      %v907 = vpop.f32.mrf.mxu0
      %v908 = vadd.f32 0.0, %v907
      %909 = vmatmul.bf16.gmra.mxu0 %v817
      %v910 = vpop.f32.mrf.mxu0
      %v911 = vadd.f32 0.0, %v910
      %v912 = vpop.f32.mrf.mxu0
      %v913 = vadd.f32 0.0, %v912
      %914 = vmatmul.bf16.gmra.mxu0 %v820
      %v915 = vpop.f32.mrf.mxu0
      %v916 = vadd.f32 0.0, %v915
      %v917 = vpop.f32.mrf.mxu0
      %v918 = vadd.f32 0.0, %v917
      %919 = vmatmul.bf16.gmra.mxu0 %v823
      %v920 = vpop.f32.mrf.mxu0
      %v921 = vadd.f32 0.0, %v920
      %v922 = vpop.f32.mrf.mxu0
      %v923 = vadd.f32 0.0, %v922
      %924 = vmatmul.bf16.gmra.mxu0 %v826
      %v925 = vpop.f32.mrf.mxu0
      %v926 = vadd.f32 0.0, %v925
      %v927 = vpop.f32.mrf.mxu0
      %v928 = vadd.f32 0.0, %v927
      %929 = vdwg.mxu0
      %v930 = vld [vmem:[#allocation2] sm:$0xff]
      %v931 = vld [vmem:[#allocation2 + $0x8] sm:$0xff]
      %v932 = vld [vmem:[#allocation2 + $0x10] sm:$0xff]
      %v933 = vld [vmem:[#allocation2 + $0x18] sm:$0xff]
      %v934 = vld [vmem:[#allocation2 + $0x20] sm:$0xff]
      %v935 = vld [vmem:[#allocation2 + $0x28] sm:$0xff]
      %v936 = vld [vmem:[#allocation2 + $0x30] sm:$0xff]
      %v937 = vld [vmem:[#allocation2 + $0x38] sm:$0xff]
      %v938 = vld [vmem:[#allocation2 + $0x40] sm:$0xff]
      %v939 = vld [vmem:[#allocation2 + $0x48] sm:$0xff]
      %v940 = vld [vmem:[#allocation2 + $0x50] sm:$0xff]
      %v941 = vld [vmem:[#allocation2 + $0x58] sm:$0xff]
      %v942 = vld [vmem:[#allocation2 + $0x60] sm:$0xff]
      %v943 = vld [vmem:[#allocation2 + $0x68] sm:$0xff]
      %v944 = vld [vmem:[#allocation2 + $0x70] sm:$0xff]
      %v945 = vld [vmem:[#allocation2 + $0x78] sm:$0xff]
      %v946 = vld [vmem:[#allocation2 + $0x80] sm:$0xff]
      %v947 = vld [vmem:[#allocation2 + $0x88] sm:$0xff]
      %v948 = vld [vmem:[#allocation2 + $0x90] sm:$0xff]
      %v949 = vld [vmem:[#allocation2 + $0x98] sm:$0xff]
      %v950 = vld [vmem:[#allocation2 + $0xa0] sm:$0xff]
      %v951 = vld [vmem:[#allocation2 + $0xa8] sm:$0xff]
      %v952 = vld [vmem:[#allocation2 + $0xb0] sm:$0xff]
      %v953 = vld [vmem:[#allocation2 + $0xb8] sm:$0xff]
      %v954 = vld [vmem:[#allocation2 + $0xc0] sm:$0xff]
      %v955 = vld [vmem:[#allocation2 + $0xc8] sm:$0xff]
      %v956 = vld [vmem:[#allocation2 + $0xd0] sm:$0xff]
      %v957 = vld [vmem:[#allocation2 + $0xd8] sm:$0xff]
      %v958 = vld [vmem:[#allocation2 + $0xe0] sm:$0xff]
      %v959 = vld [vmem:[#allocation2 + $0xe8] sm:$0xff]
      %v960 = vld [vmem:[#allocation2 + $0xf0] sm:$0xff]
      %v961 = vld [vmem:[#allocation2 + $0xf8] sm:$0xff]
      %v962 = vld [vmem:[#allocation2 + $0x100] sm:$0xff]
      %v963 = vld [vmem:[#allocation2 + $0x108] sm:$0xff]
      %v964 = vld [vmem:[#allocation2 + $0x110] sm:$0xff]
      %v965 = vld [vmem:[#allocation2 + $0x118] sm:$0xff]
      %v966 = vadd.f32 %v930, %v841
      %v967 = vadd.f32 %v931, %v843
      %v968 = vadd.f32 %v932, %v846
      %v969 = vadd.f32 %v933, %v848
      %v970 = vadd.f32 %v934, %v851
      %v971 = vadd.f32 %v935, %v853
      %v972 = vadd.f32 %v936, %v856
      %v973 = vadd.f32 %v937, %v858
      %v974 = vadd.f32 %v938, %v861
      %v975 = vadd.f32 %v939, %v863
      %v976 = vadd.f32 %v940, %v866
      %v977 = vadd.f32 %v941, %v868
      %v978 = vadd.f32 %v942, %v871
      %v979 = vadd.f32 %v943, %v873
      %v980 = vadd.f32 %v944, %v876
      %v981 = vadd.f32 %v945, %v878
      %v982 = vadd.f32 %v946, %v881
      %v983 = vadd.f32 %v947, %v883
      %v984 = vadd.f32 %v948, %v886
      %v985 = vadd.f32 %v949, %v888
      %v986 = vadd.f32 %v950, %v891
      %v987 = vadd.f32 %v951, %v893
      %v988 = vadd.f32 %v952, %v896
      %v989 = vadd.f32 %v953, %v898
      %v990 = vadd.f32 %v954, %v901
      %v991 = vadd.f32 %v955, %v903
      %v992 = vadd.f32 %v956, %v906
      %v993 = vadd.f32 %v957, %v908
      %v994 = vadd.f32 %v958, %v911
      %v995 = vadd.f32 %v959, %v913
      %v996 = vadd.f32 %v960, %v916
      %v997 = vadd.f32 %v961, %v918
      %v998 = vadd.f32 %v962, %v921
      %v999 = vadd.f32 %v963, %v923
      %v1000 = vadd.f32 %v964, %v926
      %v1001 = vadd.f32 %v965, %v928
      %1002 = vst [vmem:[#allocation2] sm:$0xff] %v966
      %1003 = vst [vmem:[#allocation2 + $0x8] sm:$0xff] %v967
      %1004 = vst [vmem:[#allocation2 + $0x10] sm:$0xff] %v968
      %1005 = vst [vmem:[#allocation2 + $0x18] sm:$0xff] %v969
      %1006 = vst [vmem:[#allocation2 + $0x20] sm:$0xff] %v970
      %1007 = vst [vmem:[#allocation2 + $0x28] sm:$0xff] %v971
      %1008 = vst [vmem:[#allocation2 + $0x30] sm:$0xff] %v972
      %1009 = vst [vmem:[#allocation2 + $0x38] sm:$0xff] %v973
      %1010 = vst [vmem:[#allocation2 + $0x40] sm:$0xff] %v974
      %1011 = vst [vmem:[#allocation2 + $0x48] sm:$0xff] %v975
      %1012 = vst [vmem:[#allocation2 + $0x50] sm:$0xff] %v976
      %1013 = vst [vmem:[#allocation2 + $0x58] sm:$0xff] %v977
      %1014 = vst [vmem:[#allocation2 + $0x60] sm:$0xff] %v978
      %1015 = vst [vmem:[#allocation2 + $0x68] sm:$0xff] %v979
      %1016 = vst [vmem:[#allocation2 + $0x70] sm:$0xff] %v980
      %1017 = vst [vmem:[#allocation2 + $0x78] sm:$0xff] %v981
      %1018 = vst [vmem:[#allocation2 + $0x80] sm:$0xff] %v982
      %1019 = vst [vmem:[#allocation2 + $0x88] sm:$0xff] %v983
      %1020 = vst [vmem:[#allocation2 + $0x90] sm:$0xff] %v984
      %1021 = vst [vmem:[#allocation2 + $0x98] sm:$0xff] %v985
      %1022 = vst [vmem:[#allocation2 + $0xa0] sm:$0xff] %v986
      %1023 = vst [vmem:[#allocation2 + $0xa8] sm:$0xff] %v987
      %1024 = vst [vmem:[#allocation2 + $0xb0] sm:$0xff] %v988
      %1025 = vst [vmem:[#allocation2 + $0xb8] sm:$0xff] %v989
      %1026 = vst [vmem:[#allocation2 + $0xc0] sm:$0xff] %v990
      %1027 = vst [vmem:[#allocation2 + $0xc8] sm:$0xff] %v991
      %1028 = vst [vmem:[#allocation2 + $0xd0] sm:$0xff] %v992
      %1029 = vst [vmem:[#allocation2 + $0xd8] sm:$0xff] %v993
      %1030 = vst [vmem:[#allocation2 + $0xe0] sm:$0xff] %v994
      %1031 = vst [vmem:[#allocation2 + $0xe8] sm:$0xff] %v995
      %1032 = vst [vmem:[#allocation2 + $0xf0] sm:$0xff] %v996
      %1033 = vst [vmem:[#allocation2 + $0xf8] sm:$0xff] %v997
      %1034 = vst [vmem:[#allocation2 + $0x100] sm:$0xff] %v998
      %1035 = vst [vmem:[#allocation2 + $0x108] sm:$0xff] %v999
      %1036 = vst [vmem:[#allocation2 + $0x110] sm:$0xff] %v1000
      %1037 = vst [vmem:[#allocation2 + $0x118] sm:$0xff] %v1001
      %v1038 = vld [vmem:[%s165] sm:$0xe]
      %v1039 = vld [vmem:[%s165 + $0x4] sm:$0xf]
      %v1040 = vld [vmem:[%s165 + $0x8] sm:$0xf]
      %v1041 = vld [vmem:[%s165 + $0xc] sm:$0xf]
      %v1042 = vld [vmem:[%s165 + $0x10] sm:$0xf]
      %v1043 = vld [vmem:[%s165 + $0x14] sm:$0xf]
      %v1044 = vld [vmem:[%s165 + $0x18] sm:$0xf]
      %v1045 = vld [vmem:[%s165 + $0x1c] sm:$0xf]
      %v1046 = vld [vmem:[%s165 + $0x20] sm:$0xf]
      %v1047 = vld [vmem:[%s165 + $0x24] sm:$0xf]
      %v1048 = vld [vmem:[%s165 + $0x28] sm:$0xf]
      %v1049 = vld [vmem:[%s165 + $0x2c] sm:$0xf]
      %v1050 = vld [vmem:[%s165 + $0x30] sm:$0xf]
      %v1051 = vld [vmem:[%s165 + $0x34] sm:$0xf]
      %v1052 = vld [vmem:[%s165 + $0x38] sm:$0xf]
      %v1053 = vld [vmem:[%s165 + $0x3c] sm:$0xf]
      %v1054 = vld [vmem:[%s165 + $0x40] sm:$0xf]
      %v1055 = vld [vmem:[%s165 + $0x44] sm:$0xf]
      %v1056 = vld [vmem:[%s165 + $0x48] sm:$0xf]
      %v1057 = vld [vmem:[%s165 + $0x4c] sm:$0xf]
      %v1058 = vld [vmem:[%s165 + $0x50] sm:$0xf]
      %v1059 = vld [vmem:[%s165 + $0x54] sm:$0xf]
      %v1060 = vld [vmem:[%s165 + $0x58] sm:$0xf]
      %v1061 = vld [vmem:[%s165 + $0x5c] sm:$0xf]
      %v1062 = vld [vmem:[%s165 + $0x60] sm:$0xf]
      %v1063 = vld [vmem:[%s165 + $0x64] sm:$0xf]
      %v1064 = vld [vmem:[%s165 + $0x68] sm:$0xf]
      %v1065 = vld [vmem:[%s165 + $0x6c] sm:$0xf]
      %v1066 = vld [vmem:[%s165 + $0x70] sm:$0xf]
      %v1067 = vld [vmem:[%s165 + $0x74] sm:$0xf]
      %v1068 = vld [vmem:[%s165 + $0x78] sm:$0xf]
      %v1069 = vld [vmem:[%s165 + $0x7c] sm:$0xf]
      %v1070 = vld [vmem:[%s165 + $0x80] sm:$0xf]
      %v1071 = vld [vmem:[%s165 + $0x84] sm:$0xf]
      %v1072 = vld [vmem:[%s165 + $0x88] sm:$0xf]
      %v1073 = vld [vmem:[%s165 + $0x8c] sm:$0xf]
      %v1074 = vld [vmem:[%s165 + $0x90] sm:$0x1]
      %s1075 = scalar_lea.vmem %s1, 4
      %v1076 = vld [vmem:[%s1075] sm:$0x3]
      %v1114 = vunpack.c.l.b16 %v1038
      %v1115 = vunpack.c.l.b16 %v1039
      %v1116 = vunpack.c.l.b16 %v1040
      %v1117 = vunpack.c.l.b16 %v1041
      %v1118 = vunpack.c.l.b16 %v1042
      %v1119 = vunpack.c.l.b16 %v1043
      %v1120 = vunpack.c.l.b16 %v1044
      %v1121 = vunpack.c.l.b16 %v1045
      %v1122 = vunpack.c.l.b16 %v1046
      %v1123 = vunpack.c.l.b16 %v1047
      %v1124 = vunpack.c.l.b16 %v1048
      %v1125 = vunpack.c.l.b16 %v1049
      %v1126 = vunpack.c.l.b16 %v1050
      %v1127 = vunpack.c.l.b16 %v1051
      %v1128 = vunpack.c.l.b16 %v1052
      %v1129 = vunpack.c.l.b16 %v1053
      %v1130 = vunpack.c.l.b16 %v1054
      %v1131 = vunpack.c.l.b16 %v1055
      %v1132 = vunpack.c.l.b16 %v1056
      %v1133 = vunpack.c.l.b16 %v1057
      %v1134 = vunpack.c.l.b16 %v1058
      %v1135 = vunpack.c.l.b16 %v1059
      %v1136 = vunpack.c.l.b16 %v1060
      %v1137 = vunpack.c.l.b16 %v1061
      %v1138 = vunpack.c.l.b16 %v1062
      %v1139 = vunpack.c.l.b16 %v1063
      %v1140 = vunpack.c.l.b16 %v1064
      %v1141 = vunpack.c.l.b16 %v1065
      %v1142 = vunpack.c.l.b16 %v1066
      %v1143 = vunpack.c.l.b16 %v1067
      %v1144 = vunpack.c.l.b16 %v1068
      %v1145 = vunpack.c.l.b16 %v1069
      %v1146 = vunpack.c.l.b16 %v1070
      %v1147 = vunpack.c.l.b16 %v1071
      %v1148 = vunpack.c.l.b16 %v1072
      %v1149 = vunpack.c.l.b16 %v1073
      %v1150 = vunpack.c.l.b16 %v1074
      %v1151 = vpack.c.b16 %v1115, %v1114
      %v1152 = vpack.c.b16 %v1117, %v1116
      %v1153 = vpack.c.b16 %v1119, %v1118
      %v1154 = vpack.c.b16 %v1121, %v1120
      %v1155 = vpack.c.b16 %v1123, %v1122
      %v1156 = vpack.c.b16 %v1125, %v1124
      %v1157 = vpack.c.b16 %v1127, %v1126
      %v1158 = vpack.c.b16 %v1129, %v1128
      %v1159 = vpack.c.b16 %v1131, %v1130
      %v1160 = vpack.c.b16 %v1133, %v1132
      %v1161 = vpack.c.b16 %v1135, %v1134
      %v1162 = vpack.c.b16 %v1137, %v1136
      %v1163 = vpack.c.b16 %v1139, %v1138
      %v1164 = vpack.c.b16 %v1141, %v1140
      %v1165 = vpack.c.b16 %v1143, %v1142
      %v1166 = vpack.c.b16 %v1145, %v1144
      %v1167 = vpack.c.b16 %v1147, %v1146
      %v1168 = vpack.c.b16 %v1149, %v1148
      %v1169 = vpack.c.b16 %v1150, %v1150
      %vm1170 = vcmask 1046528
      %v1171 = vrot.slane %v1151, 1
      %v1172 = vrot.slane %v1152, 1
      %v1173 = vsel %vm1170, %v1171, %v1172
      %v1174 = vrot.slane %v1153, 1
      %v1175 = vsel %vm1170, %v1172, %v1174
      %v1176 = vrot.slane %v1154, 1
      %v1177 = vsel %vm1170, %v1174, %v1176
      %v1178 = vrot.slane %v1155, 1
      %v1179 = vsel %vm1170, %v1176, %v1178
      %v1180 = vrot.slane %v1156, 1
      %v1181 = vsel %vm1170, %v1178, %v1180
      %v1182 = vrot.slane %v1157, 1
      %v1183 = vsel %vm1170, %v1180, %v1182
      %v1184 = vrot.slane %v1158, 1
      %v1185 = vsel %vm1170, %v1182, %v1184
      %v1186 = vrot.slane %v1159, 1
      %v1187 = vsel %vm1170, %v1184, %v1186
      %v1188 = vrot.slane %v1160, 1
      %v1189 = vsel %vm1170, %v1186, %v1188
      %v1190 = vrot.slane %v1161, 1
      %v1191 = vsel %vm1170, %v1188, %v1190
      %v1192 = vrot.slane %v1162, 1
      %v1193 = vsel %vm1170, %v1190, %v1192
      %v1194 = vrot.slane %v1163, 1
      %v1195 = vsel %vm1170, %v1192, %v1194
      %v1196 = vrot.slane %v1164, 1
      %v1197 = vsel %vm1170, %v1194, %v1196
      %v1198 = vrot.slane %v1165, 1
      %v1199 = vsel %vm1170, %v1196, %v1198
      %v1200 = vrot.slane %v1166, 1
      %v1201 = vsel %vm1170, %v1198, %v1200
      %v1202 = vrot.slane %v1167, 1
      %v1203 = vsel %vm1170, %v1200, %v1202
      %v1204 = vrot.slane %v1168, 1
      %v1205 = vsel %vm1170, %v1202, %v1204
      %v1206 = vrot.slane %v1169, 1
      %v1207 = vsel %vm1170, %v1204, %v1206
      %v1209 = vsel %vm299, %v1173, 0
      %v1212 = vsel %vm299, %v1175, 0
      %v1215 = vsel %vm299, %v1177, 0
      %v1218 = vsel %vm299, %v1179, 0
      %v1221 = vsel %vm299, %v1181, 0
      %v1224 = vsel %vm299, %v1183, 0
      %v1227 = vsel %vm299, %v1185, 0
      %v1230 = vsel %vm299, %v1187, 0
      %v1233 = vsel %vm299, %v1189, 0
      %v1236 = vsel %vm299, %v1191, 0
      %v1239 = vsel %vm299, %v1193, 0
      %v1242 = vsel %vm299, %v1195, 0
      %v1245 = vsel %vm299, %v1197, 0
      %v1248 = vsel %vm299, %v1199, 0
      %v1251 = vsel %vm299, %v1201, 0
      %v1254 = vsel %vm299, %v1203, 0
      %v1257 = vsel %vm299, %v1205, 0
      %v1260 = vsel %vm299, %v1207, 0
      %v1263 = vsel %vm354, %v1076, 0
      %1265 = vmatpush.bf16.msra.mxu0 0
      %1266 = vmatpush.bf16.msra.mxu0 0
      %1267 = vmatpush.bf16.msra.mxu0 0
      %1268 = vmatpush.bf16.msra.mxu0 0
      %1269 = vmatpush.bf16.msra.mxu0 0
      %1270 = vmatpush.bf16.msra.mxu0 0
      %1271 = vmatpush.bf16.msra.mxu0 0
      %1272 = vmatpush.bf16.msra.mxu0 %v1263
      %1273 = vmatmul.bf16.gmra.mxu0 %v1209
      %v1274 = vpop.f32.mrf.mxu0
      %v1275 = vadd.f32 0.0, %v1274
      %v1276 = vpop.f32.mrf.mxu0
      %v1277 = vadd.f32 0.0, %v1276
      %1278 = vmatmul.bf16.gmra.mxu0 %v1212
      %v1279 = vpop.f32.mrf.mxu0
      %v1280 = vadd.f32 0.0, %v1279
      %v1281 = vpop.f32.mrf.mxu0
      %v1282 = vadd.f32 0.0, %v1281
      %1283 = vmatmul.bf16.gmra.mxu0 %v1215
      %v1284 = vpop.f32.mrf.mxu0
      %v1285 = vadd.f32 0.0, %v1284
      %v1286 = vpop.f32.mrf.mxu0
      %v1287 = vadd.f32 0.0, %v1286
      %1288 = vmatmul.bf16.gmra.mxu0 %v1218
      %v1289 = vpop.f32.mrf.mxu0
      %v1290 = vadd.f32 0.0, %v1289
      %v1291 = vpop.f32.mrf.mxu0
      %v1292 = vadd.f32 0.0, %v1291
      %1293 = vmatmul.bf16.gmra.mxu0 %v1221
      %v1294 = vpop.f32.mrf.mxu0
      %v1295 = vadd.f32 0.0, %v1294
      %v1296 = vpop.f32.mrf.mxu0
      %v1297 = vadd.f32 0.0, %v1296
      %1298 = vmatmul.bf16.gmra.mxu0 %v1224
      %v1299 = vpop.f32.mrf.mxu0
      %v1300 = vadd.f32 0.0, %v1299
      %v1301 = vpop.f32.mrf.mxu0
      %v1302 = vadd.f32 0.0, %v1301
      %1303 = vmatmul.bf16.gmra.mxu0 %v1227
      %v1304 = vpop.f32.mrf.mxu0
      %v1305 = vadd.f32 0.0, %v1304
      %v1306 = vpop.f32.mrf.mxu0
      %v1307 = vadd.f32 0.0, %v1306
      %1308 = vmatmul.bf16.gmra.mxu0 %v1230
      %v1309 = vpop.f32.mrf.mxu0
      %v1310 = vadd.f32 0.0, %v1309
      %v1311 = vpop.f32.mrf.mxu0
      %v1312 = vadd.f32 0.0, %v1311
      %1313 = vmatmul.bf16.gmra.mxu0 %v1233
      %v1314 = vpop.f32.mrf.mxu0
      %v1315 = vadd.f32 0.0, %v1314
      %v1316 = vpop.f32.mrf.mxu0
      %v1317 = vadd.f32 0.0, %v1316
      %1318 = vmatmul.bf16.gmra.mxu0 %v1236
      %v1319 = vpop.f32.mrf.mxu0
      %v1320 = vadd.f32 0.0, %v1319
      %v1321 = vpop.f32.mrf.mxu0
      %v1322 = vadd.f32 0.0, %v1321
      %1323 = vmatmul.bf16.gmra.mxu0 %v1239
      %v1324 = vpop.f32.mrf.mxu0
      %v1325 = vadd.f32 0.0, %v1324
      %v1326 = vpop.f32.mrf.mxu0
      %v1327 = vadd.f32 0.0, %v1326
      %1328 = vmatmul.bf16.gmra.mxu0 %v1242
      %v1329 = vpop.f32.mrf.mxu0
      %v1330 = vadd.f32 0.0, %v1329
      %v1331 = vpop.f32.mrf.mxu0
      %v1332 = vadd.f32 0.0, %v1331
      %1333 = vmatmul.bf16.gmra.mxu0 %v1245
      %v1334 = vpop.f32.mrf.mxu0
      %v1335 = vadd.f32 0.0, %v1334
      %v1336 = vpop.f32.mrf.mxu0
      %v1337 = vadd.f32 0.0, %v1336
      %1338 = vmatmul.bf16.gmra.mxu0 %v1248
      %v1339 = vpop.f32.mrf.mxu0
      %v1340 = vadd.f32 0.0, %v1339
      %v1341 = vpop.f32.mrf.mxu0
      %v1342 = vadd.f32 0.0, %v1341
      %1343 = vmatmul.bf16.gmra.mxu0 %v1251
      %v1344 = vpop.f32.mrf.mxu0
      %v1345 = vadd.f32 0.0, %v1344
      %v1346 = vpop.f32.mrf.mxu0
      %v1347 = vadd.f32 0.0, %v1346
      %1348 = vmatmul.bf16.gmra.mxu0 %v1254
      %v1349 = vpop.f32.mrf.mxu0
      %v1350 = vadd.f32 0.0, %v1349
      %v1351 = vpop.f32.mrf.mxu0
      %v1352 = vadd.f32 0.0, %v1351
      %1353 = vmatmul.bf16.gmra.mxu0 %v1257
      %v1354 = vpop.f32.mrf.mxu0
      %v1355 = vadd.f32 0.0, %v1354
      %v1356 = vpop.f32.mrf.mxu0
      %v1357 = vadd.f32 0.0, %v1356
      %1358 = vmatmul.bf16.gmra.mxu0 %v1260
      %v1359 = vpop.f32.mrf.mxu0
      %v1360 = vadd.f32 0.0, %v1359
      %v1361 = vpop.f32.mrf.mxu0
      %v1362 = vadd.f32 0.0, %v1361
      %1363 = vdwg.mxu0
      %v1364 = vld [vmem:[#allocation2] sm:$0xff]
      %v1365 = vld [vmem:[#allocation2 + $0x8] sm:$0xff]
      %v1366 = vld [vmem:[#allocation2 + $0x10] sm:$0xff]
      %v1367 = vld [vmem:[#allocation2 + $0x18] sm:$0xff]
      %v1368 = vld [vmem:[#allocation2 + $0x20] sm:$0xff]
      %v1369 = vld [vmem:[#allocation2 + $0x28] sm:$0xff]
      %v1370 = vld [vmem:[#allocation2 + $0x30] sm:$0xff]
      %v1371 = vld [vmem:[#allocation2 + $0x38] sm:$0xff]
      %v1372 = vld [vmem:[#allocation2 + $0x40] sm:$0xff]
      %v1373 = vld [vmem:[#allocation2 + $0x48] sm:$0xff]
      %v1374 = vld [vmem:[#allocation2 + $0x50] sm:$0xff]
      %v1375 = vld [vmem:[#allocation2 + $0x58] sm:$0xff]
      %v1376 = vld [vmem:[#allocation2 + $0x60] sm:$0xff]
      %v1377 = vld [vmem:[#allocation2 + $0x68] sm:$0xff]
      %v1378 = vld [vmem:[#allocation2 + $0x70] sm:$0xff]
      %v1379 = vld [vmem:[#allocation2 + $0x78] sm:$0xff]
      %v1380 = vld [vmem:[#allocation2 + $0x80] sm:$0xff]
      %v1381 = vld [vmem:[#allocation2 + $0x88] sm:$0xff]
      %v1382 = vld [vmem:[#allocation2 + $0x90] sm:$0xff]
      %v1383 = vld [vmem:[#allocation2 + $0x98] sm:$0xff]
      %v1384 = vld [vmem:[#allocation2 + $0xa0] sm:$0xff]
      %v1385 = vld [vmem:[#allocation2 + $0xa8] sm:$0xff]
      %v1386 = vld [vmem:[#allocation2 + $0xb0] sm:$0xff]
      %v1387 = vld [vmem:[#allocation2 + $0xb8] sm:$0xff]
      %v1388 = vld [vmem:[#allocation2 + $0xc0] sm:$0xff]
      %v1389 = vld [vmem:[#allocation2 + $0xc8] sm:$0xff]
      %v1390 = vld [vmem:[#allocation2 + $0xd0] sm:$0xff]
      %v1391 = vld [vmem:[#allocation2 + $0xd8] sm:$0xff]
      %v1392 = vld [vmem:[#allocation2 + $0xe0] sm:$0xff]
      %v1393 = vld [vmem:[#allocation2 + $0xe8] sm:$0xff]
      %v1394 = vld [vmem:[#allocation2 + $0xf0] sm:$0xff]
      %v1395 = vld [vmem:[#allocation2 + $0xf8] sm:$0xff]
      %v1396 = vld [vmem:[#allocation2 + $0x100] sm:$0xff]
      %v1397 = vld [vmem:[#allocation2 + $0x108] sm:$0xff]
      %v1398 = vld [vmem:[#allocation2 + $0x110] sm:$0xff]
      %v1399 = vld [vmem:[#allocation2 + $0x118] sm:$0xff]
      %v1400 = vadd.f32 %v1364, %v1275
      %v1401 = vadd.f32 %v1365, %v1277
      %v1402 = vadd.f32 %v1366, %v1280
      %v1403 = vadd.f32 %v1367, %v1282
      %v1404 = vadd.f32 %v1368, %v1285
      %v1405 = vadd.f32 %v1369, %v1287
      %v1406 = vadd.f32 %v1370, %v1290
      %v1407 = vadd.f32 %v1371, %v1292
      %v1408 = vadd.f32 %v1372, %v1295
      %v1409 = vadd.f32 %v1373, %v1297
      %v1410 = vadd.f32 %v1374, %v1300
      %v1411 = vadd.f32 %v1375, %v1302
      %v1412 = vadd.f32 %v1376, %v1305
      %v1413 = vadd.f32 %v1377, %v1307
      %v1414 = vadd.f32 %v1378, %v1310
      %v1415 = vadd.f32 %v1379, %v1312
      %v1416 = vadd.f32 %v1380, %v1315
      %v1417 = vadd.f32 %v1381, %v1317
      %v1418 = vadd.f32 %v1382, %v1320
      %v1419 = vadd.f32 %v1383, %v1322
      %v1420 = vadd.f32 %v1384, %v1325
      %v1421 = vadd.f32 %v1385, %v1327
      %v1422 = vadd.f32 %v1386, %v1330
      %v1423 = vadd.f32 %v1387, %v1332
      %v1424 = vadd.f32 %v1388, %v1335
      %v1425 = vadd.f32 %v1389, %v1337
      %v1426 = vadd.f32 %v1390, %v1340
      %v1427 = vadd.f32 %v1391, %v1342
      %v1428 = vadd.f32 %v1392, %v1345
      %v1429 = vadd.f32 %v1393, %v1347
      %v1430 = vadd.f32 %v1394, %v1350
      %v1431 = vadd.f32 %v1395, %v1352
      %v1432 = vadd.f32 %v1396, %v1355
      %v1433 = vadd.f32 %v1397, %v1357
      %v1434 = vadd.f32 %v1398, %v1360
      %v1435 = vadd.f32 %v1399, %v1362
      %1436 = vst [vmem:[#allocation2] sm:$0xff] %v1400
      %1437 = vst [vmem:[#allocation2 + $0x8] sm:$0xff] %v1401
      %1438 = vst [vmem:[#allocation2 + $0x10] sm:$0xff] %v1402
      %1439 = vst [vmem:[#allocation2 + $0x18] sm:$0xff] %v1403
      %1440 = vst [vmem:[#allocation2 + $0x20] sm:$0xff] %v1404
      %1441 = vst [vmem:[#allocation2 + $0x28] sm:$0xff] %v1405
      %1442 = vst [vmem:[#allocation2 + $0x30] sm:$0xff] %v1406
      %1443 = vst [vmem:[#allocation2 + $0x38] sm:$0xff] %v1407
      %1444 = vst [vmem:[#allocation2 + $0x40] sm:$0xff] %v1408
      %1445 = vst [vmem:[#allocation2 + $0x48] sm:$0xff] %v1409
      %1446 = vst [vmem:[#allocation2 + $0x50] sm:$0xff] %v1410
      %1447 = vst [vmem:[#allocation2 + $0x58] sm:$0xff] %v1411
      %1448 = vst [vmem:[#allocation2 + $0x60] sm:$0xff] %v1412
      %1449 = vst [vmem:[#allocation2 + $0x68] sm:$0xff] %v1413
      %1450 = vst [vmem:[#allocation2 + $0x70] sm:$0xff] %v1414
      %1451 = vst [vmem:[#allocation2 + $0x78] sm:$0xff] %v1415
      %1452 = vst [vmem:[#allocation2 + $0x80] sm:$0xff] %v1416
      %1453 = vst [vmem:[#allocation2 + $0x88] sm:$0xff] %v1417
      %1454 = vst [vmem:[#allocation2 + $0x90] sm:$0xff] %v1418
      %1455 = vst [vmem:[#allocation2 + $0x98] sm:$0xff] %v1419
      %1456 = vst [vmem:[#allocation2 + $0xa0] sm:$0xff] %v1420
      %1457 = vst [vmem:[#allocation2 + $0xa8] sm:$0xff] %v1421
      %1458 = vst [vmem:[#allocation2 + $0xb0] sm:$0xff] %v1422
      %1459 = vst [vmem:[#allocation2 + $0xb8] sm:$0xff] %v1423
      %1460 = vst [vmem:[#allocation2 + $0xc0] sm:$0xff] %v1424
      %1461 = vst [vmem:[#allocation2 + $0xc8] sm:$0xff] %v1425
      %1462 = vst [vmem:[#allocation2 + $0xd0] sm:$0xff] %v1426
      %1463 = vst [vmem:[#allocation2 + $0xd8] sm:$0xff] %v1427
      %1464 = vst [vmem:[#allocation2 + $0xe0] sm:$0xff] %v1428
      %1465 = vst [vmem:[#allocation2 + $0xe8] sm:$0xff] %v1429
      %1466 = vst [vmem:[#allocation2 + $0xf0] sm:$0xff] %v1430
      %1467 = vst [vmem:[#allocation2 + $0xf8] sm:$0xff] %v1431
      %1468 = vst [vmem:[#allocation2 + $0x100] sm:$0xff] %v1432
      %1469 = vst [vmem:[#allocation2 + $0x108] sm:$0xff] %v1433
      %1470 = vst [vmem:[#allocation2 + $0x110] sm:$0xff] %v1434
      %1471 = vst [vmem:[#allocation2 + $0x118] sm:$0xff] %v1435
      %v1472 = vld [vmem:[%s165 + $0x8] sm:$0xe]
      %v1473 = vld [vmem:[%s165 + $0xc] sm:$0xf]
      %v1474 = vld [vmem:[%s165 + $0x10] sm:$0xf]
      %v1475 = vld [vmem:[%s165 + $0x14] sm:$0xf]
      %v1476 = vld [vmem:[%s165 + $0x18] sm:$0xf]
      %v1477 = vld [vmem:[%s165 + $0x1c] sm:$0xf]
      %v1478 = vld [vmem:[%s165 + $0x20] sm:$0xf]
      %v1479 = vld [vmem:[%s165 + $0x24] sm:$0xf]
      %v1480 = vld [vmem:[%s165 + $0x28] sm:$0xf]
      %v1481 = vld [vmem:[%s165 + $0x2c] sm:$0xf]
      %v1482 = vld [vmem:[%s165 + $0x30] sm:$0xf]
      %v1483 = vld [vmem:[%s165 + $0x34] sm:$0xf]
      %v1484 = vld [vmem:[%s165 + $0x38] sm:$0xf]
      %v1485 = vld [vmem:[%s165 + $0x3c] sm:$0xf]
      %v1486 = vld [vmem:[%s165 + $0x40] sm:$0xf]
      %v1487 = vld [vmem:[%s165 + $0x44] sm:$0xf]
      %v1488 = vld [vmem:[%s165 + $0x48] sm:$0xf]
      %v1489 = vld [vmem:[%s165 + $0x4c] sm:$0xf]
      %v1490 = vld [vmem:[%s165 + $0x50] sm:$0xf]
      %v1491 = vld [vmem:[%s165 + $0x54] sm:$0xf]
      %v1492 = vld [vmem:[%s165 + $0x58] sm:$0xf]
      %v1493 = vld [vmem:[%s165 + $0x5c] sm:$0xf]
      %v1494 = vld [vmem:[%s165 + $0x60] sm:$0xf]
      %v1495 = vld [vmem:[%s165 + $0x64] sm:$0xf]
      %v1496 = vld [vmem:[%s165 + $0x68] sm:$0xf]
      %v1497 = vld [vmem:[%s165 + $0x6c] sm:$0xf]
      %v1498 = vld [vmem:[%s165 + $0x70] sm:$0xf]
      %v1499 = vld [vmem:[%s165 + $0x74] sm:$0xf]
      %v1500 = vld [vmem:[%s165 + $0x78] sm:$0xf]
      %v1501 = vld [vmem:[%s165 + $0x7c] sm:$0xf]
      %v1502 = vld [vmem:[%s165 + $0x80] sm:$0xf]
      %v1503 = vld [vmem:[%s165 + $0x84] sm:$0xf]
      %v1504 = vld [vmem:[%s165 + $0x88] sm:$0xf]
      %v1505 = vld [vmem:[%s165 + $0x8c] sm:$0xf]
      %v1506 = vld [vmem:[%s165 + $0x90] sm:$0xf]
      %v1507 = vld [vmem:[%s165 + $0x94] sm:$0xf]
      %v1508 = vld [vmem:[%s165 + $0x98] sm:$0x1]
      %s1509 = scalar_lea.vmem %s1, 6
      %v1510 = vld [vmem:[%s1509] sm:$0x3]
      %v1548 = vunpack.c.l.b16 %v1472
      %v1549 = vunpack.c.l.b16 %v1473
      %v1550 = vunpack.c.l.b16 %v1474
      %v1551 = vunpack.c.l.b16 %v1475
      %v1552 = vunpack.c.l.b16 %v1476
      %v1553 = vunpack.c.l.b16 %v1477
      %v1554 = vunpack.c.l.b16 %v1478
      %v1555 = vunpack.c.l.b16 %v1479
      %v1556 = vunpack.c.l.b16 %v1480
      %v1557 = vunpack.c.l.b16 %v1481
      %v1558 = vunpack.c.l.b16 %v1482
      %v1559 = vunpack.c.l.b16 %v1483
      %v1560 = vunpack.c.l.b16 %v1484
      %v1561 = vunpack.c.l.b16 %v1485
      %v1562 = vunpack.c.l.b16 %v1486
      %v1563 = vunpack.c.l.b16 %v1487
      %v1564 = vunpack.c.l.b16 %v1488
      %v1565 = vunpack.c.l.b16 %v1489
      %v1566 = vunpack.c.l.b16 %v1490
      %v1567 = vunpack.c.l.b16 %v1491
      %v1568 = vunpack.c.l.b16 %v1492
      %v1569 = vunpack.c.l.b16 %v1493
      %v1570 = vunpack.c.l.b16 %v1494
      %v1571 = vunpack.c.l.b16 %v1495
      %v1572 = vunpack.c.l.b16 %v1496
      %v1573 = vunpack.c.l.b16 %v1497
      %v1574 = vunpack.c.l.b16 %v1498
      %v1575 = vunpack.c.l.b16 %v1499
      %v1576 = vunpack.c.l.b16 %v1500
      %v1577 = vunpack.c.l.b16 %v1501
      %v1578 = vunpack.c.l.b16 %v1502
      %v1579 = vunpack.c.l.b16 %v1503
      %v1580 = vunpack.c.l.b16 %v1504
      %v1581 = vunpack.c.l.b16 %v1505
      %v1582 = vunpack.c.l.b16 %v1506
      %v1583 = vunpack.c.l.b16 %v1507
      %v1584 = vunpack.c.l.b16 %v1508
      %v1585 = vpack.c.b16 %v1549, %v1548
      %v1586 = vpack.c.b16 %v1551, %v1550
      %v1587 = vpack.c.b16 %v1553, %v1552
      %v1588 = vpack.c.b16 %v1555, %v1554
      %v1589 = vpack.c.b16 %v1557, %v1556
      %v1590 = vpack.c.b16 %v1559, %v1558
      %v1591 = vpack.c.b16 %v1561, %v1560
      %v1592 = vpack.c.b16 %v1563, %v1562
      %v1593 = vpack.c.b16 %v1565, %v1564
      %v1594 = vpack.c.b16 %v1567, %v1566
      %v1595 = vpack.c.b16 %v1569, %v1568
      %v1596 = vpack.c.b16 %v1571, %v1570
      %v1597 = vpack.c.b16 %v1573, %v1572
      %v1598 = vpack.c.b16 %v1575, %v1574
      %v1599 = vpack.c.b16 %v1577, %v1576
      %v1600 = vpack.c.b16 %v1579, %v1578
      %v1601 = vpack.c.b16 %v1581, %v1580
      %v1602 = vpack.c.b16 %v1583, %v1582
      %v1603 = vpack.c.b16 %v1584, %v1584
      %v1604 = vrot.slane %v1585, 1
      %v1605 = vrot.slane %v1586, 1
      %v1606 = vsel %vm1170, %v1604, %v1605
      %v1607 = vrot.slane %v1587, 1
      %v1608 = vsel %vm1170, %v1605, %v1607
      %v1609 = vrot.slane %v1588, 1
      %v1610 = vsel %vm1170, %v1607, %v1609
      %v1611 = vrot.slane %v1589, 1
      %v1612 = vsel %vm1170, %v1609, %v1611
      %v1613 = vrot.slane %v1590, 1
      %v1614 = vsel %vm1170, %v1611, %v1613
      %v1615 = vrot.slane %v1591, 1
      %v1616 = vsel %vm1170, %v1613, %v1615
      %v1617 = vrot.slane %v1592, 1
      %v1618 = vsel %vm1170, %v1615, %v1617
      %v1619 = vrot.slane %v1593, 1
      %v1620 = vsel %vm1170, %v1617, %v1619
      %v1621 = vrot.slane %v1594, 1
      %v1622 = vsel %vm1170, %v1619, %v1621
      %v1623 = vrot.slane %v1595, 1
      %v1624 = vsel %vm1170, %v1621, %v1623
      %v1625 = vrot.slane %v1596, 1
      %v1626 = vsel %vm1170, %v1623, %v1625
      %v1627 = vrot.slane %v1597, 1
      %v1628 = vsel %vm1170, %v1625, %v1627
      %v1629 = vrot.slane %v1598, 1
      %v1630 = vsel %vm1170, %v1627, %v1629
      %v1631 = vrot.slane %v1599, 1
      %v1632 = vsel %vm1170, %v1629, %v1631
      %v1633 = vrot.slane %v1600, 1
      %v1634 = vsel %vm1170, %v1631, %v1633
      %v1635 = vrot.slane %v1601, 1
      %v1636 = vsel %vm1170, %v1633, %v1635
      %v1637 = vrot.slane %v1602, 1
      %v1638 = vsel %vm1170, %v1635, %v1637
      %v1639 = vrot.slane %v1603, 1
      %v1640 = vsel %vm1170, %v1637, %v1639
      %v1642 = vsel %vm299, %v1606, 0
      %v1645 = vsel %vm299, %v1608, 0
      %v1648 = vsel %vm299, %v1610, 0
      %v1651 = vsel %vm299, %v1612, 0
      %v1654 = vsel %vm299, %v1614, 0
      %v1657 = vsel %vm299, %v1616, 0
      %v1660 = vsel %vm299, %v1618, 0
      %v1663 = vsel %vm299, %v1620, 0
      %v1666 = vsel %vm299, %v1622, 0
      %v1669 = vsel %vm299, %v1624, 0
      %v1672 = vsel %vm299, %v1626, 0
      %v1675 = vsel %vm299, %v1628, 0
      %v1678 = vsel %vm299, %v1630, 0
      %v1681 = vsel %vm299, %v1632, 0
      %v1684 = vsel %vm299, %v1634, 0
      %v1687 = vsel %vm299, %v1636, 0
      %v1690 = vsel %vm299, %v1638, 0
      %v1693 = vsel %vm299, %v1640, 0
      %v1696 = vsel %vm354, %v1510, 0
      %1698 = vmatpush.bf16.msra.mxu0 0
      %1699 = vmatpush.bf16.msra.mxu0 0
      %1700 = vmatpush.bf16.msra.mxu0 0
      %1701 = vmatpush.bf16.msra.mxu0 0
      %1702 = vmatpush.bf16.msra.mxu0 0
      %1703 = vmatpush.bf16.msra.mxu0 0
      %1704 = vmatpush.bf16.msra.mxu0 0
      %1705 = vmatpush.bf16.msra.mxu0 %v1696
      %1706 = vmatmul.bf16.gmra.mxu0 %v1642
      %v1707 = vpop.f32.mrf.mxu0
      %v1708 = vadd.f32 0.0, %v1707
      %v1709 = vpop.f32.mrf.mxu0
      %v1710 = vadd.f32 0.0, %v1709
      %1711 = vmatmul.bf16.gmra.mxu0 %v1645
      %v1712 = vpop.f32.mrf.mxu0
      %v1713 = vadd.f32 0.0, %v1712
      %v1714 = vpop.f32.mrf.mxu0
      %v1715 = vadd.f32 0.0, %v1714
      %1716 = vmatmul.bf16.gmra.mxu0 %v1648
      %v1717 = vpop.f32.mrf.mxu0
      %v1718 = vadd.f32 0.0, %v1717
      %v1719 = vpop.f32.mrf.mxu0
      %v1720 = vadd.f32 0.0, %v1719
      %1721 = vmatmul.bf16.gmra.mxu0 %v1651
      %v1722 = vpop.f32.mrf.mxu0
      %v1723 = vadd.f32 0.0, %v1722
      %v1724 = vpop.f32.mrf.mxu0
      %v1725 = vadd.f32 0.0, %v1724
      %1726 = vmatmul.bf16.gmra.mxu0 %v1654
      %v1727 = vpop.f32.mrf.mxu0
      %v1728 = vadd.f32 0.0, %v1727
      %v1729 = vpop.f32.mrf.mxu0
      %v1730 = vadd.f32 0.0, %v1729
      %1731 = vmatmul.bf16.gmra.mxu0 %v1657
      %v1732 = vpop.f32.mrf.mxu0
      %v1733 = vadd.f32 0.0, %v1732
      %v1734 = vpop.f32.mrf.mxu0
      %v1735 = vadd.f32 0.0, %v1734
      %1736 = vmatmul.bf16.gmra.mxu0 %v1660
      %v1737 = vpop.f32.mrf.mxu0
      %v1738 = vadd.f32 0.0, %v1737
      %v1739 = vpop.f32.mrf.mxu0
      %v1740 = vadd.f32 0.0, %v1739
      %1741 = vmatmul.bf16.gmra.mxu0 %v1663
      %v1742 = vpop.f32.mrf.mxu0
      %v1743 = vadd.f32 0.0, %v1742
      %v1744 = vpop.f32.mrf.mxu0
      %v1745 = vadd.f32 0.0, %v1744
      %1746 = vmatmul.bf16.gmra.mxu0 %v1666
      %v1747 = vpop.f32.mrf.mxu0
      %v1748 = vadd.f32 0.0, %v1747
      %v1749 = vpop.f32.mrf.mxu0
      %v1750 = vadd.f32 0.0, %v1749
      %1751 = vmatmul.bf16.gmra.mxu0 %v1669
      %v1752 = vpop.f32.mrf.mxu0
      %v1753 = vadd.f32 0.0, %v1752
      %v1754 = vpop.f32.mrf.mxu0
      %v1755 = vadd.f32 0.0, %v1754
      %1756 = vmatmul.bf16.gmra.mxu0 %v1672
      %v1757 = vpop.f32.mrf.mxu0
      %v1758 = vadd.f32 0.0, %v1757
      %v1759 = vpop.f32.mrf.mxu0
      %v1760 = vadd.f32 0.0, %v1759
      %1761 = vmatmul.bf16.gmra.mxu0 %v1675
      %v1762 = vpop.f32.mrf.mxu0
      %v1763 = vadd.f32 0.0, %v1762
      %v1764 = vpop.f32.mrf.mxu0
      %v1765 = vadd.f32 0.0, %v1764
      %1766 = vmatmul.bf16.gmra.mxu0 %v1678
      %v1767 = vpop.f32.mrf.mxu0
      %v1768 = vadd.f32 0.0, %v1767
      %v1769 = vpop.f32.mrf.mxu0
      %v1770 = vadd.f32 0.0, %v1769
      %1771 = vmatmul.bf16.gmra.mxu0 %v1681
      %v1772 = vpop.f32.mrf.mxu0
      %v1773 = vadd.f32 0.0, %v1772
      %v1774 = vpop.f32.mrf.mxu0
      %v1775 = vadd.f32 0.0, %v1774
      %1776 = vmatmul.bf16.gmra.mxu0 %v1684
      %v1777 = vpop.f32.mrf.mxu0
      %v1778 = vadd.f32 0.0, %v1777
      %v1779 = vpop.f32.mrf.mxu0
      %v1780 = vadd.f32 0.0, %v1779
      %1781 = vmatmul.bf16.gmra.mxu0 %v1687
      %v1782 = vpop.f32.mrf.mxu0
      %v1783 = vadd.f32 0.0, %v1782
      %v1784 = vpop.f32.mrf.mxu0
      %v1785 = vadd.f32 0.0, %v1784
      %1786 = vmatmul.bf16.gmra.mxu0 %v1690
      %v1787 = vpop.f32.mrf.mxu0
      %v1788 = vadd.f32 0.0, %v1787
      %v1789 = vpop.f32.mrf.mxu0
      %v1790 = vadd.f32 0.0, %v1789
      %1791 = vmatmul.bf16.gmra.mxu0 %v1693
      %v1792 = vpop.f32.mrf.mxu0
      %v1793 = vadd.f32 0.0, %v1792
      %v1794 = vpop.f32.mrf.mxu0
      %v1795 = vadd.f32 0.0, %v1794
      %1796 = vdwg.mxu0
      %v1797 = vld [vmem:[#allocation2] sm:$0xff]
      %v1798 = vld [vmem:[#allocation2 + $0x8] sm:$0xff]
      %v1799 = vld [vmem:[#allocation2 + $0x10] sm:$0xff]
      %v1800 = vld [vmem:[#allocation2 + $0x18] sm:$0xff]
      %v1801 = vld [vmem:[#allocation2 + $0x20] sm:$0xff]
      %v1802 = vld [vmem:[#allocation2 + $0x28] sm:$0xff]
      %v1803 = vld [vmem:[#allocation2 + $0x30] sm:$0xff]
      %v1804 = vld [vmem:[#allocation2 + $0x38] sm:$0xff]
      %v1805 = vld [vmem:[#allocation2 + $0x40] sm:$0xff]
      %v1806 = vld [vmem:[#allocation2 + $0x48] sm:$0xff]
      %v1807 = vld [vmem:[#allocation2 + $0x50] sm:$0xff]
      %v1808 = vld [vmem:[#allocation2 + $0x58] sm:$0xff]
      %v1809 = vld [vmem:[#allocation2 + $0x60] sm:$0xff]
      %v1810 = vld [vmem:[#allocation2 + $0x68] sm:$0xff]
      %v1811 = vld [vmem:[#allocation2 + $0x70] sm:$0xff]
      %v1812 = vld [vmem:[#allocation2 + $0x78] sm:$0xff]
      %v1813 = vld [vmem:[#allocation2 + $0x80] sm:$0xff]
      %v1814 = vld [vmem:[#allocation2 + $0x88] sm:$0xff]
      %v1815 = vld [vmem:[#allocation2 + $0x90] sm:$0xff]
      %v1816 = vld [vmem:[#allocation2 + $0x98] sm:$0xff]
      %v1817 = vld [vmem:[#allocation2 + $0xa0] sm:$0xff]
      %v1818 = vld [vmem:[#allocation2 + $0xa8] sm:$0xff]
      %v1819 = vld [vmem:[#allocation2 + $0xb0] sm:$0xff]
      %v1820 = vld [vmem:[#allocation2 + $0xb8] sm:$0xff]
      %v1821 = vld [vmem:[#allocation2 + $0xc0] sm:$0xff]
      %v1822 = vld [vmem:[#allocation2 + $0xc8] sm:$0xff]
      %v1823 = vld [vmem:[#allocation2 + $0xd0] sm:$0xff]
      %v1824 = vld [vmem:[#allocation2 + $0xd8] sm:$0xff]
      %v1825 = vld [vmem:[#allocation2 + $0xe0] sm:$0xff]
      %v1826 = vld [vmem:[#allocation2 + $0xe8] sm:$0xff]
      %v1827 = vld [vmem:[#allocation2 + $0xf0] sm:$0xff]
      %v1828 = vld [vmem:[#allocation2 + $0xf8] sm:$0xff]
      %v1829 = vld [vmem:[#allocation2 + $0x100] sm:$0xff]
      %v1830 = vld [vmem:[#allocation2 + $0x108] sm:$0xff]
      %v1831 = vld [vmem:[#allocation2 + $0x110] sm:$0xff]
      %v1832 = vld [vmem:[#allocation2 + $0x118] sm:$0xff]
      %v1833 = vadd.f32 %v1797, %v1708
      %v1834 = vadd.f32 %v1798, %v1710
      %v1835 = vadd.f32 %v1799, %v1713
      %v1836 = vadd.f32 %v1800, %v1715
      %v1837 = vadd.f32 %v1801, %v1718
      %v1838 = vadd.f32 %v1802, %v1720
      %v1839 = vadd.f32 %v1803, %v1723
      %v1840 = vadd.f32 %v1804, %v1725
      %v1841 = vadd.f32 %v1805, %v1728
      %v1842 = vadd.f32 %v1806, %v1730
      %v1843 = vadd.f32 %v1807, %v1733
      %v1844 = vadd.f32 %v1808, %v1735
      %v1845 = vadd.f32 %v1809, %v1738
      %v1846 = vadd.f32 %v1810, %v1740
      %v1847 = vadd.f32 %v1811, %v1743
      %v1848 = vadd.f32 %v1812, %v1745
      %v1849 = vadd.f32 %v1813, %v1748
      %v1850 = vadd.f32 %v1814, %v1750
      %v1851 = vadd.f32 %v1815, %v1753
      %v1852 = vadd.f32 %v1816, %v1755
      %v1853 = vadd.f32 %v1817, %v1758
      %v1854 = vadd.f32 %v1818, %v1760
      %v1855 = vadd.f32 %v1819, %v1763
      %v1856 = vadd.f32 %v1820, %v1765
      %v1857 = vadd.f32 %v1821, %v1768
      %v1858 = vadd.f32 %v1822, %v1770
      %v1859 = vadd.f32 %v1823, %v1773
      %v1860 = vadd.f32 %v1824, %v1775
      %v1861 = vadd.f32 %v1825, %v1778
      %v1862 = vadd.f32 %v1826, %v1780
      %v1863 = vadd.f32 %v1827, %v1783
      %v1864 = vadd.f32 %v1828, %v1785
      %v1865 = vadd.f32 %v1829, %v1788
      %v1866 = vadd.f32 %v1830, %v1790
      %v1867 = vadd.f32 %v1831, %v1793
      %v1868 = vadd.f32 %v1832, %v1795
      %1869 = vst [vmem:[#allocation2] sm:$0xff] %v1833
      %1870 = vst [vmem:[#allocation2 + $0x8] sm:$0xff] %v1834
      %1871 = vst [vmem:[#allocation2 + $0x10] sm:$0xff] %v1835
      %1872 = vst [vmem:[#allocation2 + $0x18] sm:$0xff] %v1836
      %1873 = vst [vmem:[#allocation2 + $0x20] sm:$0xff] %v1837
      %1874 = vst [vmem:[#allocation2 + $0x28] sm:$0xff] %v1838
      %1875 = vst [vmem:[#allocation2 + $0x30] sm:$0xff] %v1839
      %1876 = vst [vmem:[#allocation2 + $0x38] sm:$0xff] %v1840
      %1877 = vst [vmem:[#allocation2 + $0x40] sm:$0xff] %v1841
      %1878 = vst [vmem:[#allocation2 + $0x48] sm:$0xff] %v1842
      %1879 = vst [vmem:[#allocation2 + $0x50] sm:$0xff] %v1843
      %1880 = vst [vmem:[#allocation2 + $0x58] sm:$0xff] %v1844
      %1881 = vst [vmem:[#allocation2 + $0x60] sm:$0xff] %v1845
      %1882 = vst [vmem:[#allocation2 + $0x68] sm:$0xff] %v1846
      %1883 = vst [vmem:[#allocation2 + $0x70] sm:$0xff] %v1847
      %1884 = vst [vmem:[#allocation2 + $0x78] sm:$0xff] %v1848
      %1885 = vst [vmem:[#allocation2 + $0x80] sm:$0xff] %v1849
      %1886 = vst [vmem:[#allocation2 + $0x88] sm:$0xff] %v1850
      %1887 = vst [vmem:[#allocation2 + $0x90] sm:$0xff] %v1851
      %1888 = vst [vmem:[#allocation2 + $0x98] sm:$0xff] %v1852
      %1889 = vst [vmem:[#allocation2 + $0xa0] sm:$0xff] %v1853
      %1890 = vst [vmem:[#allocation2 + $0xa8] sm:$0xff] %v1854
      %1891 = vst [vmem:[#allocation2 + $0xb0] sm:$0xff] %v1855
      %1892 = vst [vmem:[#allocation2 + $0xb8] sm:$0xff] %v1856
      %1893 = vst [vmem:[#allocation2 + $0xc0] sm:$0xff] %v1857
      %1894 = vst [vmem:[#allocation2 + $0xc8] sm:$0xff] %v1858
      %1895 = vst [vmem:[#allocation2 + $0xd0] sm:$0xff] %v1859
      %1896 = vst [vmem:[#allocation2 + $0xd8] sm:$0xff] %v1860
      %1897 = vst [vmem:[#allocation2 + $0xe0] sm:$0xff] %v1861
      %1898 = vst [vmem:[#allocation2 + $0xe8] sm:$0xff] %v1862
      %1899 = vst [vmem:[#allocation2 + $0xf0] sm:$0xff] %v1863
      %1900 = vst [vmem:[#allocation2 + $0xf8] sm:$0xff] %v1864
      %1901 = vst [vmem:[#allocation2 + $0x100] sm:$0xff] %v1865
      %1902 = vst [vmem:[#allocation2 + $0x108] sm:$0xff] %v1866
      %1903 = vst [vmem:[#allocation2 + $0x110] sm:$0xff] %v1867
      %1904 = vst [vmem:[#allocation2 + $0x118] sm:$0xff] %v1868
      %v1905 = vld [vmem:[%s165 + $0x8] sm:$0xe]
      %v1906 = vld [vmem:[%s165 + $0xc] sm:$0xf]
      %v1907 = vld [vmem:[%s165 + $0x10] sm:$0xf]
      %v1908 = vld [vmem:[%s165 + $0x14] sm:$0xf]
      %v1909 = vld [vmem:[%s165 + $0x18] sm:$0xf]
      %v1910 = vld [vmem:[%s165 + $0x1c] sm:$0xf]
      %v1911 = vld [vmem:[%s165 + $0x20] sm:$0xf]
      %v1912 = vld [vmem:[%s165 + $0x24] sm:$0xf]
      %v1913 = vld [vmem:[%s165 + $0x28] sm:$0xf]
      %v1914 = vld [vmem:[%s165 + $0x2c] sm:$0xf]
      %v1915 = vld [vmem:[%s165 + $0x30] sm:$0xf]
      %v1916 = vld [vmem:[%s165 + $0x34] sm:$0xf]
      %v1917 = vld [vmem:[%s165 + $0x38] sm:$0xf]
      %v1918 = vld [vmem:[%s165 + $0x3c] sm:$0xf]
      %v1919 = vld [vmem:[%s165 + $0x40] sm:$0xf]
      %v1920 = vld [vmem:[%s165 + $0x44] sm:$0xf]
      %v1921 = vld [vmem:[%s165 + $0x48] sm:$0xf]
      %v1922 = vld [vmem:[%s165 + $0x4c] sm:$0xf]
      %v1923 = vld [vmem:[%s165 + $0x50] sm:$0xf]
      %v1924 = vld [vmem:[%s165 + $0x54] sm:$0xf]
      %v1925 = vld [vmem:[%s165 + $0x58] sm:$0xf]
      %v1926 = vld [vmem:[%s165 + $0x5c] sm:$0xf]
      %v1927 = vld [vmem:[%s165 + $0x60] sm:$0xf]
      %v1928 = vld [vmem:[%s165 + $0x64] sm:$0xf]
      %v1929 = vld [vmem:[%s165 + $0x68] sm:$0xf]
      %v1930 = vld [vmem:[%s165 + $0x6c] sm:$0xf]
      %v1931 = vld [vmem:[%s165 + $0x70] sm:$0xf]
      %v1932 = vld [vmem:[%s165 + $0x74] sm:$0xf]
      %v1933 = vld [vmem:[%s165 + $0x78] sm:$0xf]
      %v1934 = vld [vmem:[%s165 + $0x7c] sm:$0xf]
      %v1935 = vld [vmem:[%s165 + $0x80] sm:$0xf]
      %v1936 = vld [vmem:[%s165 + $0x84] sm:$0xf]
      %v1937 = vld [vmem:[%s165 + $0x88] sm:$0xf]
      %v1938 = vld [vmem:[%s165 + $0x8c] sm:$0xf]
      %v1939 = vld [vmem:[%s165 + $0x90] sm:$0xf]
      %v1940 = vld [vmem:[%s165 + $0x94] sm:$0xf]
      %v1941 = vld [vmem:[%s165 + $0x98] sm:$0x3]
      %s1942 = scalar_lea.vmem %s1, 8
      %v1943 = vld [vmem:[%s1942] sm:$0x3]
      %v1981 = vunpack.c.l.b16 %v1905
      %v1982 = vunpack.c.l.b16 %v1906
      %v1983 = vunpack.c.l.b16 %v1907
      %v1984 = vunpack.c.l.b16 %v1908
      %v1985 = vunpack.c.l.b16 %v1909
      %v1986 = vunpack.c.l.b16 %v1910
      %v1987 = vunpack.c.l.b16 %v1911
      %v1988 = vunpack.c.l.b16 %v1912
      %v1989 = vunpack.c.l.b16 %v1913
      %v1990 = vunpack.c.l.b16 %v1914
      %v1991 = vunpack.c.l.b16 %v1915
      %v1992 = vunpack.c.l.b16 %v1916
      %v1993 = vunpack.c.l.b16 %v1917
      %v1994 = vunpack.c.l.b16 %v1918
      %v1995 = vunpack.c.l.b16 %v1919
      %v1996 = vunpack.c.l.b16 %v1920
      %v1997 = vunpack.c.l.b16 %v1921
      %v1998 = vunpack.c.l.b16 %v1922
      %v1999 = vunpack.c.l.b16 %v1923
      %v2000 = vunpack.c.l.b16 %v1924
      %v2001 = vunpack.c.l.b16 %v1925
      %v2002 = vunpack.c.l.b16 %v1926
      %v2003 = vunpack.c.l.b16 %v1927
      %v2004 = vunpack.c.l.b16 %v1928
      %v2005 = vunpack.c.l.b16 %v1929
      %v2006 = vunpack.c.l.b16 %v1930
      %v2007 = vunpack.c.l.b16 %v1931
      %v2008 = vunpack.c.l.b16 %v1932
      %v2009 = vunpack.c.l.b16 %v1933
      %v2010 = vunpack.c.l.b16 %v1934
      %v2011 = vunpack.c.l.b16 %v1935
      %v2012 = vunpack.c.l.b16 %v1936
      %v2013 = vunpack.c.l.b16 %v1937
      %v2014 = vunpack.c.l.b16 %v1938
      %v2015 = vunpack.c.l.b16 %v1939
      %v2016 = vunpack.c.l.b16 %v1940
      %v2017 = vunpack.c.l.b16 %v1941
      %v2018 = vpack.c.b16 %v1982, %v1981
      %v2019 = vpack.c.b16 %v1984, %v1983
      %v2020 = vpack.c.b16 %v1986, %v1985
      %v2021 = vpack.c.b16 %v1988, %v1987
      %v2022 = vpack.c.b16 %v1990, %v1989
      %v2023 = vpack.c.b16 %v1992, %v1991
      %v2024 = vpack.c.b16 %v1994, %v1993
      %v2025 = vpack.c.b16 %v1996, %v1995
      %v2026 = vpack.c.b16 %v1998, %v1997
      %v2027 = vpack.c.b16 %v2000, %v1999
      %v2028 = vpack.c.b16 %v2002, %v2001
      %v2029 = vpack.c.b16 %v2004, %v2003
      %v2030 = vpack.c.b16 %v2006, %v2005
      %v2031 = vpack.c.b16 %v2008, %v2007
      %v2032 = vpack.c.b16 %v2010, %v2009
      %v2033 = vpack.c.b16 %v2012, %v2011
      %v2034 = vpack.c.b16 %v2014, %v2013
      %v2035 = vpack.c.b16 %v2016, %v2015
      %v2036 = vpack.c.b16 %v2017, %v2017
      %vm2037 = vsmask.f32 6400
      %v2039 = vshrl.u32 %v2018, 16
      %v2041 = vrot.slane %v2039, 1
      %v2042 = vshll.u32 %v2018, 16
      %v2044 = vrot.slane %v2042, 2
      %v2045 = vor.u32 %v2041, %v2044
      %v2047 = vshrl.u32 %v2019, 16
      %v2049 = vrot.slane %v2047, 1
      %v2050 = vshll.u32 %v2019, 16
      %v2052 = vrot.slane %v2050, 2
      %v2053 = vor.u32 %v2049, %v2052
      %v2054 = vsel %vm2037, %v2045, %v2053
      %v2056 = vshrl.u32 %v2020, 16
      %v2058 = vrot.slane %v2056, 1
      %v2059 = vshll.u32 %v2020, 16
      %v2061 = vrot.slane %v2059, 2
      %v2062 = vor.u32 %v2058, %v2061
      %v2063 = vsel %vm2037, %v2053, %v2062
      %v2065 = vshrl.u32 %v2021, 16
      %v2067 = vrot.slane %v2065, 1
      %v2068 = vshll.u32 %v2021, 16
      %v2070 = vrot.slane %v2068, 2
      %v2071 = vor.u32 %v2067, %v2070
      %v2072 = vsel %vm2037, %v2062, %v2071
      %v2074 = vshrl.u32 %v2022, 16
      %v2076 = vrot.slane %v2074, 1
      %v2077 = vshll.u32 %v2022, 16
      %v2079 = vrot.slane %v2077, 2
      %v2080 = vor.u32 %v2076, %v2079
      %v2081 = vsel %vm2037, %v2071, %v2080
      %v2083 = vshrl.u32 %v2023, 16
      %v2085 = vrot.slane %v2083, 1
      %v2086 = vshll.u32 %v2023, 16
      %v2088 = vrot.slane %v2086, 2
      %v2089 = vor.u32 %v2085, %v2088
      %v2090 = vsel %vm2037, %v2080, %v2089
      %v2092 = vshrl.u32 %v2024, 16
      %v2094 = vrot.slane %v2092, 1
      %v2095 = vshll.u32 %v2024, 16
      %v2097 = vrot.slane %v2095, 2
      %v2098 = vor.u32 %v2094, %v2097
      %v2099 = vsel %vm2037, %v2089, %v2098
      %v2101 = vshrl.u32 %v2025, 16
      %v2103 = vrot.slane %v2101, 1
      %v2104 = vshll.u32 %v2025, 16
      %v2106 = vrot.slane %v2104, 2
      %v2107 = vor.u32 %v2103, %v2106
      %v2108 = vsel %vm2037, %v2098, %v2107
      %v2110 = vshrl.u32 %v2026, 16
      %v2112 = vrot.slane %v2110, 1
      %v2113 = vshll.u32 %v2026, 16
      %v2115 = vrot.slane %v2113, 2
      %v2116 = vor.u32 %v2112, %v2115
      %v2117 = vsel %vm2037, %v2107, %v2116
      %v2119 = vshrl.u32 %v2027, 16
      %v2121 = vrot.slane %v2119, 1
      %v2122 = vshll.u32 %v2027, 16
      %v2124 = vrot.slane %v2122, 2
      %v2125 = vor.u32 %v2121, %v2124
      %v2126 = vsel %vm2037, %v2116, %v2125
      %v2128 = vshrl.u32 %v2028, 16
      %v2130 = vrot.slane %v2128, 1
      %v2131 = vshll.u32 %v2028, 16
      %v2133 = vrot.slane %v2131, 2
      %v2134 = vor.u32 %v2130, %v2133
      %v2135 = vsel %vm2037, %v2125, %v2134
      %v2137 = vshrl.u32 %v2029, 16
      %v2139 = vrot.slane %v2137, 1
      %v2140 = vshll.u32 %v2029, 16
      %v2142 = vrot.slane %v2140, 2
      %v2143 = vor.u32 %v2139, %v2142
      %v2144 = vsel %vm2037, %v2134, %v2143
      %v2146 = vshrl.u32 %v2030, 16
      %v2148 = vrot.slane %v2146, 1
      %v2149 = vshll.u32 %v2030, 16
      %v2151 = vrot.slane %v2149, 2
      %v2152 = vor.u32 %v2148, %v2151
      %v2153 = vsel %vm2037, %v2143, %v2152
      %v2155 = vshrl.u32 %v2031, 16
      %v2157 = vrot.slane %v2155, 1
      %v2158 = vshll.u32 %v2031, 16
      %v2160 = vrot.slane %v2158, 2
      %v2161 = vor.u32 %v2157, %v2160
      %v2162 = vsel %vm2037, %v2152, %v2161
      %v2164 = vshrl.u32 %v2032, 16
      %v2166 = vrot.slane %v2164, 1
      %v2167 = vshll.u32 %v2032, 16
      %v2169 = vrot.slane %v2167, 2
      %v2170 = vor.u32 %v2166, %v2169
      %v2171 = vsel %vm2037, %v2161, %v2170
      %v2173 = vshrl.u32 %v2033, 16
      %v2175 = vrot.slane %v2173, 1
      %v2176 = vshll.u32 %v2033, 16
      %v2178 = vrot.slane %v2176, 2
      %v2179 = vor.u32 %v2175, %v2178
      %v2180 = vsel %vm2037, %v2170, %v2179
      %v2182 = vshrl.u32 %v2034, 16
      %v2184 = vrot.slane %v2182, 1
      %v2185 = vshll.u32 %v2034, 16
      %v2187 = vrot.slane %v2185, 2
      %v2188 = vor.u32 %v2184, %v2187
      %v2189 = vsel %vm2037, %v2179, %v2188
      %v2191 = vshrl.u32 %v2035, 16
      %v2193 = vrot.slane %v2191, 1
      %v2194 = vshll.u32 %v2035, 16
      %v2196 = vrot.slane %v2194, 2
      %v2197 = vor.u32 %v2193, %v2196
      %v2198 = vsel %vm2037, %v2188, %v2197
      %v2200 = vshrl.u32 %v2036, 16
      %v2202 = vrot.slane %v2200, 1
      %v2203 = vshll.u32 %v2036, 16
      %v2205 = vrot.slane %v2203, 2
      %v2206 = vor.u32 %v2202, %v2205
      %v2207 = vsel %vm2037, %v2197, %v2206
      %v2209 = vsel %vm299, %v2054, 0
      %v2212 = vsel %vm299, %v2063, 0
      %v2215 = vsel %vm299, %v2072, 0
      %v2218 = vsel %vm299, %v2081, 0
      %v2221 = vsel %vm299, %v2090, 0
      %v2224 = vsel %vm299, %v2099, 0
      %v2227 = vsel %vm299, %v2108, 0
      %v2230 = vsel %vm299, %v2117, 0
      %v2233 = vsel %vm299, %v2126, 0
      %v2236 = vsel %vm299, %v2135, 0
      %v2239 = vsel %vm299, %v2144, 0
      %v2242 = vsel %vm299, %v2153, 0
      %v2245 = vsel %vm299, %v2162, 0
      %v2248 = vsel %vm299, %v2171, 0
      %v2251 = vsel %vm299, %v2180, 0
      %v2254 = vsel %vm299, %v2189, 0
      %v2257 = vsel %vm299, %v2198, 0
      %v2260 = vsel %vm299, %v2207, 0
      %v2263 = vsel %vm354, %v1943, 0
      %2265 = vmatpush.bf16.msra.mxu0 0
      %2266 = vmatpush.bf16.msra.mxu0 0
      %2267 = vmatpush.bf16.msra.mxu0 0
      %2268 = vmatpush.bf16.msra.mxu0 0
      %2269 = vmatpush.bf16.msra.mxu0 0
      %2270 = vmatpush.bf16.msra.mxu0 0
      %2271 = vmatpush.bf16.msra.mxu0 0
      %2272 = vmatpush.bf16.msra.mxu0 %v2263
      %2273 = vmatmul.bf16.gmra.mxu0 %v2209
      %v2274 = vpop.f32.mrf.mxu0
      %v2275 = vadd.f32 0.0, %v2274
      %v2276 = vpop.f32.mrf.mxu0
      %v2277 = vadd.f32 0.0, %v2276
      %2278 = vmatmul.bf16.gmra.mxu0 %v2212
      %v2279 = vpop.f32.mrf.mxu0
      %v2280 = vadd.f32 0.0, %v2279
      %v2281 = vpop.f32.mrf.mxu0
      %v2282 = vadd.f32 0.0, %v2281
      %2283 = vmatmul.bf16.gmra.mxu0 %v2215
      %v2284 = vpop.f32.mrf.mxu0
      %v2285 = vadd.f32 0.0, %v2284
      %v2286 = vpop.f32.mrf.mxu0
      %v2287 = vadd.f32 0.0, %v2286
      %2288 = vmatmul.bf16.gmra.mxu0 %v2218
      %v2289 = vpop.f32.mrf.mxu0
      %v2290 = vadd.f32 0.0, %v2289
      %v2291 = vpop.f32.mrf.mxu0
      %v2292 = vadd.f32 0.0, %v2291
      %2293 = vmatmul.bf16.gmra.mxu0 %v2221
      %v2294 = vpop.f32.mrf.mxu0
      %v2295 = vadd.f32 0.0, %v2294
      %v2296 = vpop.f32.mrf.mxu0
      %v2297 = vadd.f32 0.0, %v2296
      %2298 = vmatmul.bf16.gmra.mxu0 %v2224
      %v2299 = vpop.f32.mrf.mxu0
      %v2300 = vadd.f32 0.0, %v2299
      %v2301 = vpop.f32.mrf.mxu0
      %v2302 = vadd.f32 0.0, %v2301
      %2303 = vmatmul.bf16.gmra.mxu0 %v2227
      %v2304 = vpop.f32.mrf.mxu0
      %v2305 = vadd.f32 0.0, %v2304
      %v2306 = vpop.f32.mrf.mxu0
      %v2307 = vadd.f32 0.0, %v2306
      %2308 = vmatmul.bf16.gmra.mxu0 %v2230
      %v2309 = vpop.f32.mrf.mxu0
      %v2310 = vadd.f32 0.0, %v2309
      %v2311 = vpop.f32.mrf.mxu0
      %v2312 = vadd.f32 0.0, %v2311
      %2313 = vmatmul.bf16.gmra.mxu0 %v2233
      %v2314 = vpop.f32.mrf.mxu0
      %v2315 = vadd.f32 0.0, %v2314
      %v2316 = vpop.f32.mrf.mxu0
      %v2317 = vadd.f32 0.0, %v2316
      %2318 = vmatmul.bf16.gmra.mxu0 %v2236
      %v2319 = vpop.f32.mrf.mxu0
      %v2320 = vadd.f32 0.0, %v2319
      %v2321 = vpop.f32.mrf.mxu0
      %v2322 = vadd.f32 0.0, %v2321
      %2323 = vmatmul.bf16.gmra.mxu0 %v2239
      %v2324 = vpop.f32.mrf.mxu0
      %v2325 = vadd.f32 0.0, %v2324
      %v2326 = vpop.f32.mrf.mxu0
      %v2327 = vadd.f32 0.0, %v2326
      %2328 = vmatmul.bf16.gmra.mxu0 %v2242
      %v2329 = vpop.f32.mrf.mxu0
      %v2330 = vadd.f32 0.0, %v2329
      %v2331 = vpop.f32.mrf.mxu0
      %v2332 = vadd.f32 0.0, %v2331
      %2333 = vmatmul.bf16.gmra.mxu0 %v2245
      %v2334 = vpop.f32.mrf.mxu0
      %v2335 = vadd.f32 0.0, %v2334
      %v2336 = vpop.f32.mrf.mxu0
      %v2337 = vadd.f32 0.0, %v2336
      %2338 = vmatmul.bf16.gmra.mxu0 %v2248
      %v2339 = vpop.f32.mrf.mxu0
      %v2340 = vadd.f32 0.0, %v2339
      %v2341 = vpop.f32.mrf.mxu0
      %v2342 = vadd.f32 0.0, %v2341
      %2343 = vmatmul.bf16.gmra.mxu0 %v2251
      %v2344 = vpop.f32.mrf.mxu0
      %v2345 = vadd.f32 0.0, %v2344
      %v2346 = vpop.f32.mrf.mxu0
      %v2347 = vadd.f32 0.0, %v2346
      %2348 = vmatmul.bf16.gmra.mxu0 %v2254
      %v2349 = vpop.f32.mrf.mxu0
      %v2350 = vadd.f32 0.0, %v2349
      %v2351 = vpop.f32.mrf.mxu0
      %v2352 = vadd.f32 0.0, %v2351
      %2353 = vmatmul.bf16.gmra.mxu0 %v2257
      %v2354 = vpop.f32.mrf.mxu0
      %v2355 = vadd.f32 0.0, %v2354
      %v2356 = vpop.f32.mrf.mxu0
      %v2357 = vadd.f32 0.0, %v2356
      %2358 = vmatmul.bf16.gmra.mxu0 %v2260
      %v2359 = vpop.f32.mrf.mxu0
      %v2360 = vadd.f32 0.0, %v2359
      %v2361 = vpop.f32.mrf.mxu0
      %v2362 = vadd.f32 0.0, %v2361
      %2363 = vdwg.mxu0
      %v2364 = vld [vmem:[#allocation2] sm:$0xff]
      %v2365 = vld [vmem:[#allocation2 + $0x8] sm:$0xff]
      %v2366 = vld [vmem:[#allocation2 + $0x10] sm:$0xff]
      %v2367 = vld [vmem:[#allocation2 + $0x18] sm:$0xff]
      %v2368 = vld [vmem:[#allocation2 + $0x20] sm:$0xff]
      %v2369 = vld [vmem:[#allocation2 + $0x28] sm:$0xff]
      %v2370 = vld [vmem:[#allocation2 + $0x30] sm:$0xff]
      %v2371 = vld [vmem:[#allocation2 + $0x38] sm:$0xff]
      %v2372 = vld [vmem:[#allocation2 + $0x40] sm:$0xff]
      %v2373 = vld [vmem:[#allocation2 + $0x48] sm:$0xff]
      %v2374 = vld [vmem:[#allocation2 + $0x50] sm:$0xff]
      %v2375 = vld [vmem:[#allocation2 + $0x58] sm:$0xff]
      %v2376 = vld [vmem:[#allocation2 + $0x60] sm:$0xff]
      %v2377 = vld [vmem:[#allocation2 + $0x68] sm:$0xff]
      %v2378 = vld [vmem:[#allocation2 + $0x70] sm:$0xff]
      %v2379 = vld [vmem:[#allocation2 + $0x78] sm:$0xff]
      %v2380 = vld [vmem:[#allocation2 + $0x80] sm:$0xff]
      %v2381 = vld [vmem:[#allocation2 + $0x88] sm:$0xff]
      %v2382 = vld [vmem:[#allocation2 + $0x90] sm:$0xff]
      %v2383 = vld [vmem:[#allocation2 + $0x98] sm:$0xff]
      %v2384 = vld [vmem:[#allocation2 + $0xa0] sm:$0xff]
      %v2385 = vld [vmem:[#allocation2 + $0xa8] sm:$0xff]
      %v2386 = vld [vmem:[#allocation2 + $0xb0] sm:$0xff]
      %v2387 = vld [vmem:[#allocation2 + $0xb8] sm:$0xff]
      %v2388 = vld [vmem:[#allocation2 + $0xc0] sm:$0xff]
      %v2389 = vld [vmem:[#allocation2 + $0xc8] sm:$0xff]
      %v2390 = vld [vmem:[#allocation2 + $0xd0] sm:$0xff]
      %v2391 = vld [vmem:[#allocation2 + $0xd8] sm:$0xff]
      %v2392 = vld [vmem:[#allocation2 + $0xe0] sm:$0xff]
      %v2393 = vld [vmem:[#allocation2 + $0xe8] sm:$0xff]
      %v2394 = vld [vmem:[#allocation2 + $0xf0] sm:$0xff]
      %v2395 = vld [vmem:[#allocation2 + $0xf8] sm:$0xff]
      %v2396 = vld [vmem:[#allocation2 + $0x100] sm:$0xff]
      %v2397 = vld [vmem:[#allocation2 + $0x108] sm:$0xff]
      %v2398 = vld [vmem:[#allocation2 + $0x110] sm:$0xff]
      %v2399 = vld [vmem:[#allocation2 + $0x118] sm:$0xff]
      %v2400 = vadd.f32 %v2364, %v2275
      %v2401 = vadd.f32 %v2365, %v2277
      %v2402 = vadd.f32 %v2366, %v2280
      %v2403 = vadd.f32 %v2367, %v2282
      %v2404 = vadd.f32 %v2368, %v2285
      %v2405 = vadd.f32 %v2369, %v2287
      %v2406 = vadd.f32 %v2370, %v2290
      %v2407 = vadd.f32 %v2371, %v2292
      %v2408 = vadd.f32 %v2372, %v2295
      %v2409 = vadd.f32 %v2373, %v2297
      %v2410 = vadd.f32 %v2374, %v2300
      %v2411 = vadd.f32 %v2375, %v2302
      %v2412 = vadd.f32 %v2376, %v2305
      %v2413 = vadd.f32 %v2377, %v2307
      %v2414 = vadd.f32 %v2378, %v2310
      %v2415 = vadd.f32 %v2379, %v2312
      %v2416 = vadd.f32 %v2380, %v2315
      %v2417 = vadd.f32 %v2381, %v2317
      %v2418 = vadd.f32 %v2382, %v2320
      %v2419 = vadd.f32 %v2383, %v2322
      %v2420 = vadd.f32 %v2384, %v2325
      %v2421 = vadd.f32 %v2385, %v2327
      %v2422 = vadd.f32 %v2386, %v2330
      %v2423 = vadd.f32 %v2387, %v2332
      %v2424 = vadd.f32 %v2388, %v2335
      %v2425 = vadd.f32 %v2389, %v2337
      %v2426 = vadd.f32 %v2390, %v2340
      %v2427 = vadd.f32 %v2391, %v2342
      %v2428 = vadd.f32 %v2392, %v2345
      %v2429 = vadd.f32 %v2393, %v2347
      %v2430 = vadd.f32 %v2394, %v2350
      %v2431 = vadd.f32 %v2395, %v2352
      %v2432 = vadd.f32 %v2396, %v2355
      %v2433 = vadd.f32 %v2397, %v2357
      %v2434 = vadd.f32 %v2398, %v2360
      %v2435 = vadd.f32 %v2399, %v2362
      %2436 = vst [vmem:[#allocation2] sm:$0xff] %v2400
      %2437 = vst [vmem:[#allocation2 + $0x8] sm:$0xff] %v2401
      %2438 = vst [vmem:[#allocation2 + $0x10] sm:$0xff] %v2402
      %2439 = vst [vmem:[#allocation2 + $0x18] sm:$0xff] %v2403
      %2440 = vst [vmem:[#allocation2 + $0x20] sm:$0xff] %v2404
      %2441 = vst [vmem:[#allocation2 + $0x28] sm:$0xff] %v2405
      %2442 = vst [vmem:[#allocation2 + $0x30] sm:$0xff] %v2406
      %2443 = vst [vmem:[#allocation2 + $0x38] sm:$0xff] %v2407
      %2444 = vst [vmem:[#allocation2 + $0x40] sm:$0xff] %v2408
      %2445 = vst [vmem:[#allocation2 + $0x48] sm:$0xff] %v2409
      %2446 = vst [vmem:[#allocation2 + $0x50] sm:$0xff] %v2410
      %2447 = vst [vmem:[#allocation2 + $0x58] sm:$0xff] %v2411
      %2448 = vst [vmem:[#allocation2 + $0x60] sm:$0xff] %v2412
      %2449 = vst [vmem:[#allocation2 + $0x68] sm:$0xff] %v2413
      %2450 = vst [vmem:[#allocation2 + $0x70] sm:$0xff] %v2414
      %2451 = vst [vmem:[#allocation2 + $0x78] sm:$0xff] %v2415
      %2452 = vst [vmem:[#allocation2 + $0x80] sm:$0xff] %v2416
      %2453 = vst [vmem:[#allocation2 + $0x88] sm:$0xff] %v2417
      %2454 = vst [vmem:[#allocation2 + $0x90] sm:$0xff] %v2418
      %2455 = vst [vmem:[#allocation2 + $0x98] sm:$0xff] %v2419
      %2456 = vst [vmem:[#allocation2 + $0xa0] sm:$0xff] %v2420
      %2457 = vst [vmem:[#allocation2 + $0xa8] sm:$0xff] %v2421
      %2458 = vst [vmem:[#allocation2 + $0xb0] sm:$0xff] %v2422
      %2459 = vst [vmem:[#allocation2 + $0xb8] sm:$0xff] %v2423
      %2460 = vst [vmem:[#allocation2 + $0xc0] sm:$0xff] %v2424
      %2461 = vst [vmem:[#allocation2 + $0xc8] sm:$0xff] %v2425
      %2462 = vst [vmem:[#allocation2 + $0xd0] sm:$0xff] %v2426
      %2463 = vst [vmem:[#allocation2 + $0xd8] sm:$0xff] %v2427
      %2464 = vst [vmem:[#allocation2 + $0xe0] sm:$0xff] %v2428
      %2465 = vst [vmem:[#allocation2 + $0xe8] sm:$0xff] %v2429
      %2466 = vst [vmem:[#allocation2 + $0xf0] sm:$0xff] %v2430
      %2467 = vst [vmem:[#allocation2 + $0xf8] sm:$0xff] %v2431
      %2468 = vst [vmem:[#allocation2 + $0x100] sm:$0xff] %v2432
      %2469 = vst [vmem:[#allocation2 + $0x108] sm:$0xff] %v2433
      %2470 = vst [vmem:[#allocation2 + $0x110] sm:$0xff] %v2434
      %2471 = vst [vmem:[#allocation2 + $0x118] sm:$0xff] %v2435
      %v2472 = vld [vmem:[%s165 + $0x8] sm:$0xc]
      %v2473 = vld [vmem:[%s165 + $0xc] sm:$0xf]
      %v2474 = vld [vmem:[%s165 + $0x10] sm:$0xf]
      %v2475 = vld [vmem:[%s165 + $0x14] sm:$0xf]
      %v2476 = vld [vmem:[%s165 + $0x18] sm:$0xf]
      %v2477 = vld [vmem:[%s165 + $0x1c] sm:$0xf]
      %v2478 = vld [vmem:[%s165 + $0x20] sm:$0xf]
      %v2479 = vld [vmem:[%s165 + $0x24] sm:$0xf]
      %v2480 = vld [vmem:[%s165 + $0x28] sm:$0xf]
      %v2481 = vld [vmem:[%s165 + $0x2c] sm:$0xf]
      %v2482 = vld [vmem:[%s165 + $0x30] sm:$0xf]
      %v2483 = vld [vmem:[%s165 + $0x34] sm:$0xf]
      %v2484 = vld [vmem:[%s165 + $0x38] sm:$0xf]
      %v2485 = vld [vmem:[%s165 + $0x3c] sm:$0xf]
      %v2486 = vld [vmem:[%s165 + $0x40] sm:$0xf]
      %v2487 = vld [vmem:[%s165 + $0x44] sm:$0xf]
      %v2488 = vld [vmem:[%s165 + $0x48] sm:$0xf]
      %v2489 = vld [vmem:[%s165 + $0x4c] sm:$0xf]
      %v2490 = vld [vmem:[%s165 + $0x50] sm:$0xf]
      %v2491 = vld [vmem:[%s165 + $0x54] sm:$0xf]
      %v2492 = vld [vmem:[%s165 + $0x58] sm:$0xf]
      %v2493 = vld [vmem:[%s165 + $0x5c] sm:$0xf]
      %v2494 = vld [vmem:[%s165 + $0x60] sm:$0xf]
      %v2495 = vld [vmem:[%s165 + $0x64] sm:$0xf]
      %v2496 = vld [vmem:[%s165 + $0x68] sm:$0xf]
      %v2497 = vld [vmem:[%s165 + $0x6c] sm:$0xf]
      %v2498 = vld [vmem:[%s165 + $0x70] sm:$0xf]
      %v2499 = vld [vmem:[%s165 + $0x74] sm:$0xf]
      %v2500 = vld [vmem:[%s165 + $0x78] sm:$0xf]
      %v2501 = vld [vmem:[%s165 + $0x7c] sm:$0xf]
      %v2502 = vld [vmem:[%s165 + $0x80] sm:$0xf]
      %v2503 = vld [vmem:[%s165 + $0x84] sm:$0xf]
      %v2504 = vld [vmem:[%s165 + $0x88] sm:$0xf]
      %v2505 = vld [vmem:[%s165 + $0x8c] sm:$0xf]
      %v2506 = vld [vmem:[%s165 + $0x90] sm:$0xf]
      %v2507 = vld [vmem:[%s165 + $0x94] sm:$0xf]
      %v2508 = vld [vmem:[%s165 + $0x98] sm:$0x3]
      %s2509 = scalar_lea.vmem %s1, 10
      %v2510 = vld [vmem:[%s2509] sm:$0x3]
      %v2548 = vunpack.c.l.b16 %v2472
      %v2549 = vunpack.c.l.b16 %v2473
      %v2550 = vunpack.c.l.b16 %v2474
      %v2551 = vunpack.c.l.b16 %v2475
      %v2552 = vunpack.c.l.b16 %v2476
      %v2553 = vunpack.c.l.b16 %v2477
      %v2554 = vunpack.c.l.b16 %v2478
      %v2555 = vunpack.c.l.b16 %v2479
      %v2556 = vunpack.c.l.b16 %v2480
      %v2557 = vunpack.c.l.b16 %v2481
      %v2558 = vunpack.c.l.b16 %v2482
      %v2559 = vunpack.c.l.b16 %v2483
      %v2560 = vunpack.c.l.b16 %v2484
      %v2561 = vunpack.c.l.b16 %v2485
      %v2562 = vunpack.c.l.b16 %v2486
      %v2563 = vunpack.c.l.b16 %v2487
      %v2564 = vunpack.c.l.b16 %v2488
      %v2565 = vunpack.c.l.b16 %v2489
      %v2566 = vunpack.c.l.b16 %v2490
      %v2567 = vunpack.c.l.b16 %v2491
      %v2568 = vunpack.c.l.b16 %v2492
      %v2569 = vunpack.c.l.b16 %v2493
      %v2570 = vunpack.c.l.b16 %v2494
      %v2571 = vunpack.c.l.b16 %v2495
      %v2572 = vunpack.c.l.b16 %v2496
      %v2573 = vunpack.c.l.b16 %v2497
      %v2574 = vunpack.c.l.b16 %v2498
      %v2575 = vunpack.c.l.b16 %v2499
      %v2576 = vunpack.c.l.b16 %v2500
      %v2577 = vunpack.c.l.b16 %v2501
      %v2578 = vunpack.c.l.b16 %v2502
      %v2579 = vunpack.c.l.b16 %v2503
      %v2580 = vunpack.c.l.b16 %v2504
      %v2581 = vunpack.c.l.b16 %v2505
      %v2582 = vunpack.c.l.b16 %v2506
      %v2583 = vunpack.c.l.b16 %v2507
      %v2584 = vunpack.c.l.b16 %v2508
      %v2585 = vpack.c.b16 %v2549, %v2548
      %v2586 = vpack.c.b16 %v2551, %v2550
      %v2587 = vpack.c.b16 %v2553, %v2552
      %v2588 = vpack.c.b16 %v2555, %v2554
      %v2589 = vpack.c.b16 %v2557, %v2556
      %v2590 = vpack.c.b16 %v2559, %v2558
      %v2591 = vpack.c.b16 %v2561, %v2560
      %v2592 = vpack.c.b16 %v2563, %v2562
      %v2593 = vpack.c.b16 %v2565, %v2564
      %v2594 = vpack.c.b16 %v2567, %v2566
      %v2595 = vpack.c.b16 %v2569, %v2568
      %v2596 = vpack.c.b16 %v2571, %v2570
      %v2597 = vpack.c.b16 %v2573, %v2572
      %v2598 = vpack.c.b16 %v2575, %v2574
      %v2599 = vpack.c.b16 %v2577, %v2576
      %v2600 = vpack.c.b16 %v2579, %v2578
      %v2601 = vpack.c.b16 %v2581, %v2580
      %v2602 = vpack.c.b16 %v2583, %v2582
      %v2603 = vpack.c.b16 %v2584, %v2584
      %vm2604 = vcmask 1045504
      %v2605 = vrot.slane %v2585, 2
      %v2606 = vrot.slane %v2586, 2
      %v2607 = vsel %vm2604, %v2605, %v2606
      %v2608 = vrot.slane %v2587, 2
      %v2609 = vsel %vm2604, %v2606, %v2608
      %v2610 = vrot.slane %v2588, 2
      %v2611 = vsel %vm2604, %v2608, %v2610
      %v2612 = vrot.slane %v2589, 2
      %v2613 = vsel %vm2604, %v2610, %v2612
      %v2614 = vrot.slane %v2590, 2
      %v2615 = vsel %vm2604, %v2612, %v2614
      %v2616 = vrot.slane %v2591, 2
      %v2617 = vsel %vm2604, %v2614, %v2616
      %v2618 = vrot.slane %v2592, 2
      %v2619 = vsel %vm2604, %v2616, %v2618
      %v2620 = vrot.slane %v2593, 2
      %v2621 = vsel %vm2604, %v2618, %v2620
      %v2622 = vrot.slane %v2594, 2
      %v2623 = vsel %vm2604, %v2620, %v2622
      %v2624 = vrot.slane %v2595, 2
      %v2625 = vsel %vm2604, %v2622, %v2624
      %v2626 = vrot.slane %v2596, 2
      %v2627 = vsel %vm2604, %v2624, %v2626
      %v2628 = vrot.slane %v2597, 2
      %v2629 = vsel %vm2604, %v2626, %v2628
      %v2630 = vrot.slane %v2598, 2
      %v2631 = vsel %vm2604, %v2628, %v2630
      %v2632 = vrot.slane %v2599, 2
      %v2633 = vsel %vm2604, %v2630, %v2632
      %v2634 = vrot.slane %v2600, 2
      %v2635 = vsel %vm2604, %v2632, %v2634
      %v2636 = vrot.slane %v2601, 2
      %v2637 = vsel %vm2604, %v2634, %v2636
      %v2638 = vrot.slane %v2602, 2
      %v2639 = vsel %vm2604, %v2636, %v2638
      %v2640 = vrot.slane %v2603, 2
      %v2641 = vsel %vm2604, %v2638, %v2640
      %v2643 = vsel %vm299, %v2607, 0
      %v2646 = vsel %vm299, %v2609, 0
      %v2649 = vsel %vm299, %v2611, 0
      %v2652 = vsel %vm299, %v2613, 0
      %v2655 = vsel %vm299, %v2615, 0
      %v2658 = vsel %vm299, %v2617, 0
      %v2661 = vsel %vm299, %v2619, 0
      %v2664 = vsel %vm299, %v2621, 0
      %v2667 = vsel %vm299, %v2623, 0
      %v2670 = vsel %vm299, %v2625, 0
      %v2673 = vsel %vm299, %v2627, 0
      %v2676 = vsel %vm299, %v2629, 0
      %v2679 = vsel %vm299, %v2631, 0
      %v2682 = vsel %vm299, %v2633, 0
      %v2685 = vsel %vm299, %v2635, 0
      %v2688 = vsel %vm299, %v2637, 0
      %v2691 = vsel %vm299, %v2639, 0
      %v2694 = vsel %vm299, %v2641, 0
      %v2697 = vsel %vm354, %v2510, 0
      %2699 = vmatpush.bf16.msra.mxu0 0
      %2700 = vmatpush.bf16.msra.mxu0 0
      %2701 = vmatpush.bf16.msra.mxu0 0
      %2702 = vmatpush.bf16.msra.mxu0 0
      %2703 = vmatpush.bf16.msra.mxu0 0
      %2704 = vmatpush.bf16.msra.mxu0 0
      %2705 = vmatpush.bf16.msra.mxu0 0
      %2706 = vmatpush.bf16.msra.mxu0 %v2697
      %2707 = vmatmul.bf16.gmra.mxu0 %v2643
      %v2708 = vpop.f32.mrf.mxu0
      %v2709 = vadd.f32 0.0, %v2708
      %v2710 = vpop.f32.mrf.mxu0
      %v2711 = vadd.f32 0.0, %v2710
      %2712 = vmatmul.bf16.gmra.mxu0 %v2646
      %v2713 = vpop.f32.mrf.mxu0
      %v2714 = vadd.f32 0.0, %v2713
      %v2715 = vpop.f32.mrf.mxu0
      %v2716 = vadd.f32 0.0, %v2715
      %2717 = vmatmul.bf16.gmra.mxu0 %v2649
      %v2718 = vpop.f32.mrf.mxu0
      %v2719 = vadd.f32 0.0, %v2718
      %v2720 = vpop.f32.mrf.mxu0
      %v2721 = vadd.f32 0.0, %v2720
      %2722 = vmatmul.bf16.gmra.mxu0 %v2652
      %v2723 = vpop.f32.mrf.mxu0
      %v2724 = vadd.f32 0.0, %v2723
      %v2725 = vpop.f32.mrf.mxu0
      %v2726 = vadd.f32 0.0, %v2725
      %2727 = vmatmul.bf16.gmra.mxu0 %v2655
      %v2728 = vpop.f32.mrf.mxu0
      %v2729 = vadd.f32 0.0, %v2728
      %v2730 = vpop.f32.mrf.mxu0
      %v2731 = vadd.f32 0.0, %v2730
      %2732 = vmatmul.bf16.gmra.mxu0 %v2658
      %v2733 = vpop.f32.mrf.mxu0
      %v2734 = vadd.f32 0.0, %v2733
      %v2735 = vpop.f32.mrf.mxu0
      %v2736 = vadd.f32 0.0, %v2735
      %2737 = vmatmul.bf16.gmra.mxu0 %v2661
      %v2738 = vpop.f32.mrf.mxu0
      %v2739 = vadd.f32 0.0, %v2738
      %v2740 = vpop.f32.mrf.mxu0
      %v2741 = vadd.f32 0.0, %v2740
      %2742 = vmatmul.bf16.gmra.mxu0 %v2664
      %v2743 = vpop.f32.mrf.mxu0
      %v2744 = vadd.f32 0.0, %v2743
      %v2745 = vpop.f32.mrf.mxu0
      %v2746 = vadd.f32 0.0, %v2745
      %2747 = vmatmul.bf16.gmra.mxu0 %v2667
      %v2748 = vpop.f32.mrf.mxu0
      %v2749 = vadd.f32 0.0, %v2748
      %v2750 = vpop.f32.mrf.mxu0
      %v2751 = vadd.f32 0.0, %v2750
      %2752 = vmatmul.bf16.gmra.mxu0 %v2670
      %v2753 = vpop.f32.mrf.mxu0
      %v2754 = vadd.f32 0.0, %v2753
      %v2755 = vpop.f32.mrf.mxu0
      %v2756 = vadd.f32 0.0, %v2755
      %2757 = vmatmul.bf16.gmra.mxu0 %v2673
      %v2758 = vpop.f32.mrf.mxu0
      %v2759 = vadd.f32 0.0, %v2758
      %v2760 = vpop.f32.mrf.mxu0
      %v2761 = vadd.f32 0.0, %v2760
      %2762 = vmatmul.bf16.gmra.mxu0 %v2676
      %v2763 = vpop.f32.mrf.mxu0
      %v2764 = vadd.f32 0.0, %v2763
      %v2765 = vpop.f32.mrf.mxu0
      %v2766 = vadd.f32 0.0, %v2765
      %2767 = vmatmul.bf16.gmra.mxu0 %v2679
      %v2768 = vpop.f32.mrf.mxu0
      %v2769 = vadd.f32 0.0, %v2768
      %v2770 = vpop.f32.mrf.mxu0
      %v2771 = vadd.f32 0.0, %v2770
      %2772 = vmatmul.bf16.gmra.mxu0 %v2682
      %v2773 = vpop.f32.mrf.mxu0
      %v2774 = vadd.f32 0.0, %v2773
      %v2775 = vpop.f32.mrf.mxu0
      %v2776 = vadd.f32 0.0, %v2775
      %2777 = vmatmul.bf16.gmra.mxu0 %v2685
      %v2778 = vpop.f32.mrf.mxu0
      %v2779 = vadd.f32 0.0, %v2778
      %v2780 = vpop.f32.mrf.mxu0
      %v2781 = vadd.f32 0.0, %v2780
      %2782 = vmatmul.bf16.gmra.mxu0 %v2688
      %v2783 = vpop.f32.mrf.mxu0
      %v2784 = vadd.f32 0.0, %v2783
      %v2785 = vpop.f32.mrf.mxu0
      %v2786 = vadd.f32 0.0, %v2785
      %2787 = vmatmul.bf16.gmra.mxu0 %v2691
      %v2788 = vpop.f32.mrf.mxu0
      %v2789 = vadd.f32 0.0, %v2788
      %v2790 = vpop.f32.mrf.mxu0
      %v2791 = vadd.f32 0.0, %v2790
      %2792 = vmatmul.bf16.gmra.mxu0 %v2694
      %v2793 = vpop.f32.mrf.mxu0
      %v2794 = vadd.f32 0.0, %v2793
      %v2795 = vpop.f32.mrf.mxu0
      %v2796 = vadd.f32 0.0, %v2795
      %2797 = vdwg.mxu0
      %v2798 = vld [vmem:[#allocation2] sm:$0xff]
      %v2799 = vld [vmem:[#allocation2 + $0x8] sm:$0xff]
      %v2800 = vld [vmem:[#allocation2 + $0x10] sm:$0xff]
      %v2801 = vld [vmem:[#allocation2 + $0x18] sm:$0xff]
      %v2802 = vld [vmem:[#allocation2 + $0x20] sm:$0xff]
      %v2803 = vld [vmem:[#allocation2 + $0x28] sm:$0xff]
      %v2804 = vld [vmem:[#allocation2 + $0x30] sm:$0xff]
      %v2805 = vld [vmem:[#allocation2 + $0x38] sm:$0xff]
      %v2806 = vld [vmem:[#allocation2 + $0x40] sm:$0xff]
      %v2807 = vld [vmem:[#allocation2 + $0x48] sm:$0xff]
      %v2808 = vld [vmem:[#allocation2 + $0x50] sm:$0xff]
      %v2809 = vld [vmem:[#allocation2 + $0x58] sm:$0xff]
      %v2810 = vld [vmem:[#allocation2 + $0x60] sm:$0xff]
      %v2811 = vld [vmem:[#allocation2 + $0x68] sm:$0xff]
      %v2812 = vld [vmem:[#allocation2 + $0x70] sm:$0xff]
      %v2813 = vld [vmem:[#allocation2 + $0x78] sm:$0xff]
      %v2814 = vld [vmem:[#allocation2 + $0x80] sm:$0xff]
      %v2815 = vld [vmem:[#allocation2 + $0x88] sm:$0xff]
      %v2816 = vld [vmem:[#allocation2 + $0x90] sm:$0xff]
      %v2817 = vld [vmem:[#allocation2 + $0x98] sm:$0xff]
      %v2818 = vld [vmem:[#allocation2 + $0xa0] sm:$0xff]
      %v2819 = vld [vmem:[#allocation2 + $0xa8] sm:$0xff]
      %v2820 = vld [vmem:[#allocation2 + $0xb0] sm:$0xff]
      %v2821 = vld [vmem:[#allocation2 + $0xb8] sm:$0xff]
      %v2822 = vld [vmem:[#allocation2 + $0xc0] sm:$0xff]
      %v2823 = vld [vmem:[#allocation2 + $0xc8] sm:$0xff]
      %v2824 = vld [vmem:[#allocation2 + $0xd0] sm:$0xff]
      %v2825 = vld [vmem:[#allocation2 + $0xd8] sm:$0xff]
      %v2826 = vld [vmem:[#allocation2 + $0xe0] sm:$0xff]
      %v2827 = vld [vmem:[#allocation2 + $0xe8] sm:$0xff]
      %v2828 = vld [vmem:[#allocation2 + $0xf0] sm:$0xff]
      %v2829 = vld [vmem:[#allocation2 + $0xf8] sm:$0xff]
      %v2830 = vld [vmem:[#allocation2 + $0x100] sm:$0xff]
      %v2831 = vld [vmem:[#allocation2 + $0x108] sm:$0xff]
      %v2832 = vld [vmem:[#allocation2 + $0x110] sm:$0xff]
      %v2833 = vld [vmem:[#allocation2 + $0x118] sm:$0xff]
      %v2834 = vadd.f32 %v2798, %v2709
      %v2835 = vadd.f32 %v2799, %v2711
      %v2836 = vadd.f32 %v2800, %v2714
      %v2837 = vadd.f32 %v2801, %v2716
      %v2838 = vadd.f32 %v2802, %v2719
      %v2839 = vadd.f32 %v2803, %v2721
      %v2840 = vadd.f32 %v2804, %v2724
      %v2841 = vadd.f32 %v2805, %v2726
      %v2842 = vadd.f32 %v2806, %v2729
      %v2843 = vadd.f32 %v2807, %v2731
      %v2844 = vadd.f32 %v2808, %v2734
      %v2845 = vadd.f32 %v2809, %v2736
      %v2846 = vadd.f32 %v2810, %v2739
      %v2847 = vadd.f32 %v2811, %v2741
      %v2848 = vadd.f32 %v2812, %v2744
      %v2849 = vadd.f32 %v2813, %v2746
      %v2850 = vadd.f32 %v2814, %v2749
      %v2851 = vadd.f32 %v2815, %v2751
      %v2852 = vadd.f32 %v2816, %v2754
      %v2853 = vadd.f32 %v2817, %v2756
      %v2854 = vadd.f32 %v2818, %v2759
      %v2855 = vadd.f32 %v2819, %v2761
      %v2856 = vadd.f32 %v2820, %v2764
      %v2857 = vadd.f32 %v2821, %v2766
      %v2858 = vadd.f32 %v2822, %v2769
      %v2859 = vadd.f32 %v2823, %v2771
      %v2860 = vadd.f32 %v2824, %v2774
      %v2861 = vadd.f32 %v2825, %v2776
      %v2862 = vadd.f32 %v2826, %v2779
      %v2863 = vadd.f32 %v2827, %v2781
      %v2864 = vadd.f32 %v2828, %v2784
      %v2865 = vadd.f32 %v2829, %v2786
      %v2866 = vadd.f32 %v2830, %v2789
      %v2867 = vadd.f32 %v2831, %v2791
      %v2868 = vadd.f32 %v2832, %v2794
      %v2869 = vadd.f32 %v2833, %v2796
      %2870 = vst [vmem:[#allocation2] sm:$0xff] %v2834
      %2871 = vst [vmem:[#allocation2 + $0x8] sm:$0xff] %v2835
      %2872 = vst [vmem:[#allocation2 + $0x10] sm:$0xff] %v2836
      %2873 = vst [vmem:[#allocation2 + $0x18] sm:$0xff] %v2837
      %2874 = vst [vmem:[#allocation2 + $0x20] sm:$0xff] %v2838
      %2875 = vst [vmem:[#allocation2 + $0x28] sm:$0xff] %v2839
      %2876 = vst [vmem:[#allocation2 + $0x30] sm:$0xff] %v2840
      %2877 = vst [vmem:[#allocation2 + $0x38] sm:$0xff] %v2841
      %2878 = vst [vmem:[#allocation2 + $0x40] sm:$0xff] %v2842
      %2879 = vst [vmem:[#allocation2 + $0x48] sm:$0xff] %v2843
      %2880 = vst [vmem:[#allocation2 + $0x50] sm:$0xff] %v2844
      %2881 = vst [vmem:[#allocation2 + $0x58] sm:$0xff] %v2845
      %2882 = vst [vmem:[#allocation2 + $0x60] sm:$0xff] %v2846
      %2883 = vst [vmem:[#allocation2 + $0x68] sm:$0xff] %v2847
      %2884 = vst [vmem:[#allocation2 + $0x70] sm:$0xff] %v2848
      %2885 = vst [vmem:[#allocation2 + $0x78] sm:$0xff] %v2849
      %2886 = vst [vmem:[#allocation2 + $0x80] sm:$0xff] %v2850
      %2887 = vst [vmem:[#allocation2 + $0x88] sm:$0xff] %v2851
      %2888 = vst [vmem:[#allocation2 + $0x90] sm:$0xff] %v2852
      %2889 = vst [vmem:[#allocation2 + $0x98] sm:$0xff] %v2853
      %2890 = vst [vmem:[#allocation2 + $0xa0] sm:$0xff] %v2854
      %2891 = vst [vmem:[#allocation2 + $0xa8] sm:$0xff] %v2855
      %2892 = vst [vmem:[#allocation2 + $0xb0] sm:$0xff] %v2856
      %2893 = vst [vmem:[#allocation2 + $0xb8] sm:$0xff] %v2857
      %2894 = vst [vmem:[#allocation2 + $0xc0] sm:$0xff] %v2858
      %2895 = vst [vmem:[#allocation2 + $0xc8] sm:$0xff] %v2859
      %2896 = vst [vmem:[#allocation2 + $0xd0] sm:$0xff] %v2860
      %2897 = vst [vmem:[#allocation2 + $0xd8] sm:$0xff] %v2861
      %2898 = vst [vmem:[#allocation2 + $0xe0] sm:$0xff] %v2862
      %2899 = vst [vmem:[#allocation2 + $0xe8] sm:$0xff] %v2863
      %2900 = vst [vmem:[#allocation2 + $0xf0] sm:$0xff] %v2864
      %2901 = vst [vmem:[#allocation2 + $0xf8] sm:$0xff] %v2865
      %2902 = vst [vmem:[#allocation2 + $0x100] sm:$0xff] %v2866
      %2903 = vst [vmem:[#allocation2 + $0x108] sm:$0xff] %v2867
      %2904 = vst [vmem:[#allocation2 + $0x110] sm:$0xff] %v2868
      %2905 = vst [vmem:[#allocation2 + $0x118] sm:$0xff] %v2869
      %v2906 = vld [vmem:[%s165 + $0x10] sm:$0xc]
      %v2907 = vld [vmem:[%s165 + $0x14] sm:$0xf]
      %v2908 = vld [vmem:[%s165 + $0x18] sm:$0xf]
      %v2909 = vld [vmem:[%s165 + $0x1c] sm:$0xf]
      %v2910 = vld [vmem:[%s165 + $0x20] sm:$0xf]
      %v2911 = vld [vmem:[%s165 + $0x24] sm:$0xf]
      %v2912 = vld [vmem:[%s165 + $0x28] sm:$0xf]
      %v2913 = vld [vmem:[%s165 + $0x2c] sm:$0xf]
      %v2914 = vld [vmem:[%s165 + $0x30] sm:$0xf]
      %v2915 = vld [vmem:[%s165 + $0x34] sm:$0xf]
      %v2916 = vld [vmem:[%s165 + $0x38] sm:$0xf]
      %v2917 = vld [vmem:[%s165 + $0x3c] sm:$0xf]
      %v2918 = vld [vmem:[%s165 + $0x40] sm:$0xf]
      %v2919 = vld [vmem:[%s165 + $0x44] sm:$0xf]
      %v2920 = vld [vmem:[%s165 + $0x48] sm:$0xf]
      %v2921 = vld [vmem:[%s165 + $0x4c] sm:$0xf]
      %v2922 = vld [vmem:[%s165 + $0x50] sm:$0xf]
      %v2923 = vld [vmem:[%s165 + $0x54] sm:$0xf]
      %v2924 = vld [vmem:[%s165 + $0x58] sm:$0xf]
      %v2925 = vld [vmem:[%s165 + $0x5c] sm:$0xf]
      %v2926 = vld [vmem:[%s165 + $0x60] sm:$0xf]
      %v2927 = vld [vmem:[%s165 + $0x64] sm:$0xf]
      %v2928 = vld [vmem:[%s165 + $0x68] sm:$0xf]
      %v2929 = vld [vmem:[%s165 + $0x6c] sm:$0xf]
      %v2930 = vld [vmem:[%s165 + $0x70] sm:$0xf]
      %v2931 = vld [vmem:[%s165 + $0x74] sm:$0xf]
      %v2932 = vld [vmem:[%s165 + $0x78] sm:$0xf]
      %v2933 = vld [vmem:[%s165 + $0x7c] sm:$0xf]
      %v2934 = vld [vmem:[%s165 + $0x80] sm:$0xf]
      %v2935 = vld [vmem:[%s165 + $0x84] sm:$0xf]
      %v2936 = vld [vmem:[%s165 + $0x88] sm:$0xf]
      %v2937 = vld [vmem:[%s165 + $0x8c] sm:$0xf]
      %v2938 = vld [vmem:[%s165 + $0x90] sm:$0xf]
      %v2939 = vld [vmem:[%s165 + $0x94] sm:$0xf]
      %v2940 = vld [vmem:[%s165 + $0x98] sm:$0xf]
      %v2941 = vld [vmem:[%s165 + $0x9c] sm:$0xf]
      %v2942 = vld [vmem:[%s165 + $0xa0] sm:$0x3]
      %s2943 = scalar_lea.vmem %s1, 12
      %v2944 = vld [vmem:[%s2943] sm:$0x3]
      %v2982 = vunpack.c.l.b16 %v2906
      %v2983 = vunpack.c.l.b16 %v2907
      %v2984 = vunpack.c.l.b16 %v2908
      %v2985 = vunpack.c.l.b16 %v2909
      %v2986 = vunpack.c.l.b16 %v2910
      %v2987 = vunpack.c.l.b16 %v2911
      %v2988 = vunpack.c.l.b16 %v2912
      %v2989 = vunpack.c.l.b16 %v2913
      %v2990 = vunpack.c.l.b16 %v2914
      %v2991 = vunpack.c.l.b16 %v2915
      %v2992 = vunpack.c.l.b16 %v2916
      %v2993 = vunpack.c.l.b16 %v2917
      %v2994 = vunpack.c.l.b16 %v2918
      %v2995 = vunpack.c.l.b16 %v2919
      %v2996 = vunpack.c.l.b16 %v2920
      %v2997 = vunpack.c.l.b16 %v2921
      %v2998 = vunpack.c.l.b16 %v2922
      %v2999 = vunpack.c.l.b16 %v2923
      %v3000 = vunpack.c.l.b16 %v2924
      %v3001 = vunpack.c.l.b16 %v2925
      %v3002 = vunpack.c.l.b16 %v2926
      %v3003 = vunpack.c.l.b16 %v2927
      %v3004 = vunpack.c.l.b16 %v2928
      %v3005 = vunpack.c.l.b16 %v2929
      %v3006 = vunpack.c.l.b16 %v2930
      %v3007 = vunpack.c.l.b16 %v2931
      %v3008 = vunpack.c.l.b16 %v2932
      %v3009 = vunpack.c.l.b16 %v2933
      %v3010 = vunpack.c.l.b16 %v2934
      %v3011 = vunpack.c.l.b16 %v2935
      %v3012 = vunpack.c.l.b16 %v2936
      %v3013 = vunpack.c.l.b16 %v2937
      %v3014 = vunpack.c.l.b16 %v2938
      %v3015 = vunpack.c.l.b16 %v2939
      %v3016 = vunpack.c.l.b16 %v2940
      %v3017 = vunpack.c.l.b16 %v2941
      %v3018 = vunpack.c.l.b16 %v2942
      %v3019 = vpack.c.b16 %v2983, %v2982
      %v3020 = vpack.c.b16 %v2985, %v2984
      %v3021 = vpack.c.b16 %v2987, %v2986
      %v3022 = vpack.c.b16 %v2989, %v2988
      %v3023 = vpack.c.b16 %v2991, %v2990
      %v3024 = vpack.c.b16 %v2993, %v2992
      %v3025 = vpack.c.b16 %v2995, %v2994
      %v3026 = vpack.c.b16 %v2997, %v2996
      %v3027 = vpack.c.b16 %v2999, %v2998
      %v3028 = vpack.c.b16 %v3001, %v3000
      %v3029 = vpack.c.b16 %v3003, %v3002
      %v3030 = vpack.c.b16 %v3005, %v3004
      %v3031 = vpack.c.b16 %v3007, %v3006
      %v3032 = vpack.c.b16 %v3009, %v3008
      %v3033 = vpack.c.b16 %v3011, %v3010
      %v3034 = vpack.c.b16 %v3013, %v3012
      %v3035 = vpack.c.b16 %v3015, %v3014
      %v3036 = vpack.c.b16 %v3017, %v3016
      %v3037 = vpack.c.b16 %v3018, %v3018
      %v3038 = vrot.slane %v3019, 2
      %v3039 = vrot.slane %v3020, 2
      %v3040 = vsel %vm2604, %v3038, %v3039
      %v3041 = vrot.slane %v3021, 2
      %v3042 = vsel %vm2604, %v3039, %v3041
      %v3043 = vrot.slane %v3022, 2
      %v3044 = vsel %vm2604, %v3041, %v3043
      %v3045 = vrot.slane %v3023, 2
      %v3046 = vsel %vm2604, %v3043, %v3045
      %v3047 = vrot.slane %v3024, 2
      %v3048 = vsel %vm2604, %v3045, %v3047
      %v3049 = vrot.slane %v3025, 2
      %v3050 = vsel %vm2604, %v3047, %v3049
      %v3051 = vrot.slane %v3026, 2
      %v3052 = vsel %vm2604, %v3049, %v3051
      %v3053 = vrot.slane %v3027, 2
      %v3054 = vsel %vm2604, %v3051, %v3053
      %v3055 = vrot.slane %v3028, 2
      %v3056 = vsel %vm2604, %v3053, %v3055
      %v3057 = vrot.slane %v3029, 2
      %v3058 = vsel %vm2604, %v3055, %v3057
      %v3059 = vrot.slane %v3030, 2
      %v3060 = vsel %vm2604, %v3057, %v3059
      %v3061 = vrot.slane %v3031, 2
      %v3062 = vsel %vm2604, %v3059, %v3061
      %v3063 = vrot.slane %v3032, 2
      %v3064 = vsel %vm2604, %v3061, %v3063
      %v3065 = vrot.slane %v3033, 2
      %v3066 = vsel %vm2604, %v3063, %v3065
      %v3067 = vrot.slane %v3034, 2
      %v3068 = vsel %vm2604, %v3065, %v3067
      %v3069 = vrot.slane %v3035, 2
      %v3070 = vsel %vm2604, %v3067, %v3069
      %v3071 = vrot.slane %v3036, 2
      %v3072 = vsel %vm2604, %v3069, %v3071
      %v3073 = vrot.slane %v3037, 2
      %v3074 = vsel %vm2604, %v3071, %v3073
      %v3076 = vsel %vm299, %v3040, 0
      %v3079 = vsel %vm299, %v3042, 0
      %v3082 = vsel %vm299, %v3044, 0
      %v3085 = vsel %vm299, %v3046, 0
      %v3088 = vsel %vm299, %v3048, 0
      %v3091 = vsel %vm299, %v3050, 0
      %v3094 = vsel %vm299, %v3052, 0
      %v3097 = vsel %vm299, %v3054, 0
      %v3100 = vsel %vm299, %v3056, 0
      %v3103 = vsel %vm299, %v3058, 0
      %v3106 = vsel %vm299, %v3060, 0
      %v3109 = vsel %vm299, %v3062, 0
      %v3112 = vsel %vm299, %v3064, 0
      %v3115 = vsel %vm299, %v3066, 0
      %v3118 = vsel %vm299, %v3068, 0
      %v3121 = vsel %vm299, %v3070, 0
      %v3124 = vsel %vm299, %v3072, 0
      %v3127 = vsel %vm299, %v3074, 0
      %v3130 = vsel %vm354, %v2944, 0
      %3132 = vmatpush.bf16.msra.mxu0 0
      %3133 = vmatpush.bf16.msra.mxu0 0
      %3134 = vmatpush.bf16.msra.mxu0 0
      %3135 = vmatpush.bf16.msra.mxu0 0
      %3136 = vmatpush.bf16.msra.mxu0 0
      %3137 = vmatpush.bf16.msra.mxu0 0
      %3138 = vmatpush.bf16.msra.mxu0 0
      %3139 = vmatpush.bf16.msra.mxu0 %v3130
      %3140 = vmatmul.bf16.gmra.mxu0 %v3076
      %v3141 = vpop.f32.mrf.mxu0
      %v3142 = vadd.f32 0.0, %v3141
      %v3143 = vpop.f32.mrf.mxu0
      %v3144 = vadd.f32 0.0, %v3143
      %3145 = vmatmul.bf16.gmra.mxu0 %v3079
      %v3146 = vpop.f32.mrf.mxu0
      %v3147 = vadd.f32 0.0, %v3146
      %v3148 = vpop.f32.mrf.mxu0
      %v3149 = vadd.f32 0.0, %v3148
      %3150 = vmatmul.bf16.gmra.mxu0 %v3082
      %v3151 = vpop.f32.mrf.mxu0
      %v3152 = vadd.f32 0.0, %v3151
      %v3153 = vpop.f32.mrf.mxu0
      %v3154 = vadd.f32 0.0, %v3153
      %3155 = vmatmul.bf16.gmra.mxu0 %v3085
      %v3156 = vpop.f32.mrf.mxu0
      %v3157 = vadd.f32 0.0, %v3156
      %v3158 = vpop.f32.mrf.mxu0
      %v3159 = vadd.f32 0.0, %v3158
      %3160 = vmatmul.bf16.gmra.mxu0 %v3088
      %v3161 = vpop.f32.mrf.mxu0
      %v3162 = vadd.f32 0.0, %v3161
      %v3163 = vpop.f32.mrf.mxu0
      %v3164 = vadd.f32 0.0, %v3163
      %3165 = vmatmul.bf16.gmra.mxu0 %v3091
      %v3166 = vpop.f32.mrf.mxu0
      %v3167 = vadd.f32 0.0, %v3166
      %v3168 = vpop.f32.mrf.mxu0
      %v3169 = vadd.f32 0.0, %v3168
      %3170 = vmatmul.bf16.gmra.mxu0 %v3094
      %v3171 = vpop.f32.mrf.mxu0
      %v3172 = vadd.f32 0.0, %v3171
      %v3173 = vpop.f32.mrf.mxu0
      %v3174 = vadd.f32 0.0, %v3173
      %3175 = vmatmul.bf16.gmra.mxu0 %v3097
      %v3176 = vpop.f32.mrf.mxu0
      %v3177 = vadd.f32 0.0, %v3176
      %v3178 = vpop.f32.mrf.mxu0
      %v3179 = vadd.f32 0.0, %v3178
      %3180 = vmatmul.bf16.gmra.mxu0 %v3100
      %v3181 = vpop.f32.mrf.mxu0
      %v3182 = vadd.f32 0.0, %v3181
      %v3183 = vpop.f32.mrf.mxu0
      %v3184 = vadd.f32 0.0, %v3183
      %3185 = vmatmul.bf16.gmra.mxu0 %v3103
      %v3186 = vpop.f32.mrf.mxu0
      %v3187 = vadd.f32 0.0, %v3186
      %v3188 = vpop.f32.mrf.mxu0
      %v3189 = vadd.f32 0.0, %v3188
      %3190 = vmatmul.bf16.gmra.mxu0 %v3106
      %v3191 = vpop.f32.mrf.mxu0
      %v3192 = vadd.f32 0.0, %v3191
      %v3193 = vpop.f32.mrf.mxu0
      %v3194 = vadd.f32 0.0, %v3193
      %3195 = vmatmul.bf16.gmra.mxu0 %v3109
      %v3196 = vpop.f32.mrf.mxu0
      %v3197 = vadd.f32 0.0, %v3196
      %v3198 = vpop.f32.mrf.mxu0
      %v3199 = vadd.f32 0.0, %v3198
      %3200 = vmatmul.bf16.gmra.mxu0 %v3112
      %v3201 = vpop.f32.mrf.mxu0
      %v3202 = vadd.f32 0.0, %v3201
      %v3203 = vpop.f32.mrf.mxu0
      %v3204 = vadd.f32 0.0, %v3203
      %3205 = vmatmul.bf16.gmra.mxu0 %v3115
      %v3206 = vpop.f32.mrf.mxu0
      %v3207 = vadd.f32 0.0, %v3206
      %v3208 = vpop.f32.mrf.mxu0
      %v3209 = vadd.f32 0.0, %v3208
      %3210 = vmatmul.bf16.gmra.mxu0 %v3118
      %v3211 = vpop.f32.mrf.mxu0
      %v3212 = vadd.f32 0.0, %v3211
      %v3213 = vpop.f32.mrf.mxu0
      %v3214 = vadd.f32 0.0, %v3213
      %3215 = vmatmul.bf16.gmra.mxu0 %v3121
      %v3216 = vpop.f32.mrf.mxu0
      %v3217 = vadd.f32 0.0, %v3216
      %v3218 = vpop.f32.mrf.mxu0
      %v3219 = vadd.f32 0.0, %v3218
      %3220 = vmatmul.bf16.gmra.mxu0 %v3124
      %v3221 = vpop.f32.mrf.mxu0
      %v3222 = vadd.f32 0.0, %v3221
      %v3223 = vpop.f32.mrf.mxu0
      %v3224 = vadd.f32 0.0, %v3223
      %3225 = vmatmul.bf16.gmra.mxu0 %v3127
      %v3226 = vpop.f32.mrf.mxu0
      %v3227 = vadd.f32 0.0, %v3226
      %v3228 = vpop.f32.mrf.mxu0
      %v3229 = vadd.f32 0.0, %v3228
      %3230 = vdwg.mxu0
      %v3231 = vld [vmem:[#allocation2] sm:$0xff]
      %v3232 = vld [vmem:[#allocation2 + $0x8] sm:$0xff]
      %v3233 = vld [vmem:[#allocation2 + $0x10] sm:$0xff]
      %v3234 = vld [vmem:[#allocation2 + $0x18] sm:$0xff]
      %v3235 = vld [vmem:[#allocation2 + $0x20] sm:$0xff]
      %v3236 = vld [vmem:[#allocation2 + $0x28] sm:$0xff]
      %v3237 = vld [vmem:[#allocation2 + $0x30] sm:$0xff]
      %v3238 = vld [vmem:[#allocation2 + $0x38] sm:$0xff]
      %v3239 = vld [vmem:[#allocation2 + $0x40] sm:$0xff]
      %v3240 = vld [vmem:[#allocation2 + $0x48] sm:$0xff]
      %v3241 = vld [vmem:[#allocation2 + $0x50] sm:$0xff]
      %v3242 = vld [vmem:[#allocation2 + $0x58] sm:$0xff]
      %v3243 = vld [vmem:[#allocation2 + $0x60] sm:$0xff]
      %v3244 = vld [vmem:[#allocation2 + $0x68] sm:$0xff]
      %v3245 = vld [vmem:[#allocation2 + $0x70] sm:$0xff]
      %v3246 = vld [vmem:[#allocation2 + $0x78] sm:$0xff]
      %v3247 = vld [vmem:[#allocation2 + $0x80] sm:$0xff]
      %v3248 = vld [vmem:[#allocation2 + $0x88] sm:$0xff]
      %v3249 = vld [vmem:[#allocation2 + $0x90] sm:$0xff]
      %v3250 = vld [vmem:[#allocation2 + $0x98] sm:$0xff]
      %v3251 = vld [vmem:[#allocation2 + $0xa0] sm:$0xff]
      %v3252 = vld [vmem:[#allocation2 + $0xa8] sm:$0xff]
      %v3253 = vld [vmem:[#allocation2 + $0xb0] sm:$0xff]
      %v3254 = vld [vmem:[#allocation2 + $0xb8] sm:$0xff]
      %v3255 = vld [vmem:[#allocation2 + $0xc0] sm:$0xff]
      %v3256 = vld [vmem:[#allocation2 + $0xc8] sm:$0xff]
      %v3257 = vld [vmem:[#allocation2 + $0xd0] sm:$0xff]
      %v3258 = vld [vmem:[#allocation2 + $0xd8] sm:$0xff]
      %v3259 = vld [vmem:[#allocation2 + $0xe0] sm:$0xff]
      %v3260 = vld [vmem:[#allocation2 + $0xe8] sm:$0xff]
      %v3261 = vld [vmem:[#allocation2 + $0xf0] sm:$0xff]
      %v3262 = vld [vmem:[#allocation2 + $0xf8] sm:$0xff]
      %v3263 = vld [vmem:[#allocation2 + $0x100] sm:$0xff]
      %v3264 = vld [vmem:[#allocation2 + $0x108] sm:$0xff]
      %v3265 = vld [vmem:[#allocation2 + $0x110] sm:$0xff]
      %v3266 = vld [vmem:[#allocation2 + $0x118] sm:$0xff]
      %v3267 = vadd.f32 %v3231, %v3142
      %v3268 = vadd.f32 %v3232, %v3144
      %v3269 = vadd.f32 %v3233, %v3147
      %v3270 = vadd.f32 %v3234, %v3149
      %v3271 = vadd.f32 %v3235, %v3152
      %v3272 = vadd.f32 %v3236, %v3154
      %v3273 = vadd.f32 %v3237, %v3157
      %v3274 = vadd.f32 %v3238, %v3159
      %v3275 = vadd.f32 %v3239, %v3162
      %v3276 = vadd.f32 %v3240, %v3164
      %v3277 = vadd.f32 %v3241, %v3167
      %v3278 = vadd.f32 %v3242, %v3169
      %v3279 = vadd.f32 %v3243, %v3172
      %v3280 = vadd.f32 %v3244, %v3174
      %v3281 = vadd.f32 %v3245, %v3177
      %v3282 = vadd.f32 %v3246, %v3179
      %v3283 = vadd.f32 %v3247, %v3182
      %v3284 = vadd.f32 %v3248, %v3184
      %v3285 = vadd.f32 %v3249, %v3187
      %v3286 = vadd.f32 %v3250, %v3189
      %v3287 = vadd.f32 %v3251, %v3192
      %v3288 = vadd.f32 %v3252, %v3194
      %v3289 = vadd.f32 %v3253, %v3197
      %v3290 = vadd.f32 %v3254, %v3199
      %v3291 = vadd.f32 %v3255, %v3202
      %v3292 = vadd.f32 %v3256, %v3204
      %v3293 = vadd.f32 %v3257, %v3207
      %v3294 = vadd.f32 %v3258, %v3209
      %v3295 = vadd.f32 %v3259, %v3212
      %v3296 = vadd.f32 %v3260, %v3214
      %v3297 = vadd.f32 %v3261, %v3217
      %v3298 = vadd.f32 %v3262, %v3219
      %v3299 = vadd.f32 %v3263, %v3222
      %v3300 = vadd.f32 %v3264, %v3224
      %v3301 = vadd.f32 %v3265, %v3227
      %v3302 = vadd.f32 %v3266, %v3229
      %3303 = vst [vmem:[#allocation2] sm:$0xff] %v3267
      %3304 = vst [vmem:[#allocation2 + $0x8] sm:$0xff] %v3268
      %3305 = vst [vmem:[#allocation2 + $0x10] sm:$0xff] %v3269
      %3306 = vst [vmem:[#allocation2 + $0x18] sm:$0xff] %v3270
      %3307 = vst [vmem:[#allocation2 + $0x20] sm:$0xff] %v3271
      %3308 = vst [vmem:[#allocation2 + $0x28] sm:$0xff] %v3272
      %3309 = vst [vmem:[#allocation2 + $0x30] sm:$0xff] %v3273
      %3310 = vst [vmem:[#allocation2 + $0x38] sm:$0xff] %v3274
      %3311 = vst [vmem:[#allocation2 + $0x40] sm:$0xff] %v3275
      %3312 = vst [vmem:[#allocation2 + $0x48] sm:$0xff] %v3276
      %3313 = vst [vmem:[#allocation2 + $0x50] sm:$0xff] %v3277
      %3314 = vst [vmem:[#allocation2 + $0x58] sm:$0xff] %v3278
      %3315 = vst [vmem:[#allocation2 + $0x60] sm:$0xff] %v3279
      %3316 = vst [vmem:[#allocation2 + $0x68] sm:$0xff] %v3280
      %3317 = vst [vmem:[#allocation2 + $0x70] sm:$0xff] %v3281
      %3318 = vst [vmem:[#allocation2 + $0x78] sm:$0xff] %v3282
      %3319 = vst [vmem:[#allocation2 + $0x80] sm:$0xff] %v3283
      %3320 = vst [vmem:[#allocation2 + $0x88] sm:$0xff] %v3284
      %3321 = vst [vmem:[#allocation2 + $0x90] sm:$0xff] %v3285
      %3322 = vst [vmem:[#allocation2 + $0x98] sm:$0xff] %v3286
      %3323 = vst [vmem:[#allocation2 + $0xa0] sm:$0xff] %v3287
      %3324 = vst [vmem:[#allocation2 + $0xa8] sm:$0xff] %v3288
      %3325 = vst [vmem:[#allocation2 + $0xb0] sm:$0xff] %v3289
      %3326 = vst [vmem:[#allocation2 + $0xb8] sm:$0xff] %v3290
      %3327 = vst [vmem:[#allocation2 + $0xc0] sm:$0xff] %v3291
      %3328 = vst [vmem:[#allocation2 + $0xc8] sm:$0xff] %v3292
      %3329 = vst [vmem:[#allocation2 + $0xd0] sm:$0xff] %v3293
      %3330 = vst [vmem:[#allocation2 + $0xd8] sm:$0xff] %v3294
      %3331 = vst [vmem:[#allocation2 + $0xe0] sm:$0xff] %v3295
      %3332 = vst [vmem:[#allocation2 + $0xe8] sm:$0xff] %v3296
      %3333 = vst [vmem:[#allocation2 + $0xf0] sm:$0xff] %v3297
      %3334 = vst [vmem:[#allocation2 + $0xf8] sm:$0xff] %v3298
      %3335 = vst [vmem:[#allocation2 + $0x100] sm:$0xff] %v3299
      %3336 = vst [vmem:[#allocation2 + $0x108] sm:$0xff] %v3300
      %3337 = vst [vmem:[#allocation2 + $0x110] sm:$0xff] %v3301
      %3338 = vst [vmem:[#allocation2 + $0x118] sm:$0xff] %v3302
      %v3339 = vld [vmem:[%s165 + $0x10] sm:$0xc]
      %v3340 = vld [vmem:[%s165 + $0x14] sm:$0xf]
      %v3341 = vld [vmem:[%s165 + $0x18] sm:$0xf]
      %v3342 = vld [vmem:[%s165 + $0x1c] sm:$0xf]
      %v3343 = vld [vmem:[%s165 + $0x20] sm:$0xf]
      %v3344 = vld [vmem:[%s165 + $0x24] sm:$0xf]
      %v3345 = vld [vmem:[%s165 + $0x28] sm:$0xf]
      %v3346 = vld [vmem:[%s165 + $0x2c] sm:$0xf]
      %v3347 = vld [vmem:[%s165 + $0x30] sm:$0xf]
      %v3348 = vld [vmem:[%s165 + $0x34] sm:$0xf]
      %v3349 = vld [vmem:[%s165 + $0x38] sm:$0xf]
      %v3350 = vld [vmem:[%s165 + $0x3c] sm:$0xf]
      %v3351 = vld [vmem:[%s165 + $0x40] sm:$0xf]
      %v3352 = vld [vmem:[%s165 + $0x44] sm:$0xf]
      %v3353 = vld [vmem:[%s165 + $0x48] sm:$0xf]
      %v3354 = vld [vmem:[%s165 + $0x4c] sm:$0xf]
      %v3355 = vld [vmem:[%s165 + $0x50] sm:$0xf]
      %v3356 = vld [vmem:[%s165 + $0x54] sm:$0xf]
      %v3357 = vld [vmem:[%s165 + $0x58] sm:$0xf]
      %v3358 = vld [vmem:[%s165 + $0x5c] sm:$0xf]
      %v3359 = vld [vmem:[%s165 + $0x60] sm:$0xf]
      %v3360 = vld [vmem:[%s165 + $0x64] sm:$0xf]
      %v3361 = vld [vmem:[%s165 + $0x68] sm:$0xf]
      %v3362 = vld [vmem:[%s165 + $0x6c] sm:$0xf]
      %v3363 = vld [vmem:[%s165 + $0x70] sm:$0xf]
      %v3364 = vld [vmem:[%s165 + $0x74] sm:$0xf]
      %v3365 = vld [vmem:[%s165 + $0x78] sm:$0xf]
      %v3366 = vld [vmem:[%s165 + $0x7c] sm:$0xf]
      %v3367 = vld [vmem:[%s165 + $0x80] sm:$0xf]
      %v3368 = vld [vmem:[%s165 + $0x84] sm:$0xf]
      %v3369 = vld [vmem:[%s165 + $0x88] sm:$0xf]
      %v3370 = vld [vmem:[%s165 + $0x8c] sm:$0xf]
      %v3371 = vld [vmem:[%s165 + $0x90] sm:$0xf]
      %v3372 = vld [vmem:[%s165 + $0x94] sm:$0xf]
      %v3373 = vld [vmem:[%s165 + $0x98] sm:$0xf]
      %v3374 = vld [vmem:[%s165 + $0x9c] sm:$0xf]
      %v3375 = vld [vmem:[%s165 + $0xa0] sm:$0x7]
      %s3376 = scalar_lea.vmem %s1, 14
      %v3377 = vld [vmem:[%s3376] sm:$0x3]
      %v3415 = vunpack.c.l.b16 %v3339
      %v3416 = vunpack.c.l.b16 %v3340
      %v3417 = vunpack.c.l.b16 %v3341
      %v3418 = vunpack.c.l.b16 %v3342
      %v3419 = vunpack.c.l.b16 %v3343
      %v3420 = vunpack.c.l.b16 %v3344
      %v3421 = vunpack.c.l.b16 %v3345
      %v3422 = vunpack.c.l.b16 %v3346
      %v3423 = vunpack.c.l.b16 %v3347
      %v3424 = vunpack.c.l.b16 %v3348
      %v3425 = vunpack.c.l.b16 %v3349
      %v3426 = vunpack.c.l.b16 %v3350
      %v3427 = vunpack.c.l.b16 %v3351
      %v3428 = vunpack.c.l.b16 %v3352
      %v3429 = vunpack.c.l.b16 %v3353
      %v3430 = vunpack.c.l.b16 %v3354
      %v3431 = vunpack.c.l.b16 %v3355
      %v3432 = vunpack.c.l.b16 %v3356
      %v3433 = vunpack.c.l.b16 %v3357
      %v3434 = vunpack.c.l.b16 %v3358
      %v3435 = vunpack.c.l.b16 %v3359
      %v3436 = vunpack.c.l.b16 %v3360
      %v3437 = vunpack.c.l.b16 %v3361
      %v3438 = vunpack.c.l.b16 %v3362
      %v3439 = vunpack.c.l.b16 %v3363
      %v3440 = vunpack.c.l.b16 %v3364
      %v3441 = vunpack.c.l.b16 %v3365
      %v3442 = vunpack.c.l.b16 %v3366
      %v3443 = vunpack.c.l.b16 %v3367
      %v3444 = vunpack.c.l.b16 %v3368
      %v3445 = vunpack.c.l.b16 %v3369
      %v3446 = vunpack.c.l.b16 %v3370
      %v3447 = vunpack.c.l.b16 %v3371
      %v3448 = vunpack.c.l.b16 %v3372
      %v3449 = vunpack.c.l.b16 %v3373
      %v3450 = vunpack.c.l.b16 %v3374
      %v3451 = vunpack.c.l.b16 %v3375
      %v3452 = vpack.c.b16 %v3416, %v3415
      %v3453 = vpack.c.b16 %v3418, %v3417
      %v3454 = vpack.c.b16 %v3420, %v3419
      %v3455 = vpack.c.b16 %v3422, %v3421
      %v3456 = vpack.c.b16 %v3424, %v3423
      %v3457 = vpack.c.b16 %v3426, %v3425
      %v3458 = vpack.c.b16 %v3428, %v3427
      %v3459 = vpack.c.b16 %v3430, %v3429
      %v3460 = vpack.c.b16 %v3432, %v3431
      %v3461 = vpack.c.b16 %v3434, %v3433
      %v3462 = vpack.c.b16 %v3436, %v3435
      %v3463 = vpack.c.b16 %v3438, %v3437
      %v3464 = vpack.c.b16 %v3440, %v3439
      %v3465 = vpack.c.b16 %v3442, %v3441
      %v3466 = vpack.c.b16 %v3444, %v3443
      %v3467 = vpack.c.b16 %v3446, %v3445
      %v3468 = vpack.c.b16 %v3448, %v3447
      %v3469 = vpack.c.b16 %v3450, %v3449
      %v3470 = vpack.c.b16 %v3451, %v3451
      %vm3471 = vsmask.f32 5376
      %v3473 = vshrl.u32 %v3452, 16
      %v3475 = vrot.slane %v3473, 2
      %v3476 = vshll.u32 %v3452, 16
      %v3478 = vrot.slane %v3476, 3
      %v3479 = vor.u32 %v3475, %v3478
      %v3481 = vshrl.u32 %v3453, 16
      %v3483 = vrot.slane %v3481, 2
      %v3484 = vshll.u32 %v3453, 16
      %v3486 = vrot.slane %v3484, 3
      %v3487 = vor.u32 %v3483, %v3486
      %v3488 = vsel %vm3471, %v3479, %v3487
      %v3490 = vshrl.u32 %v3454, 16
      %v3492 = vrot.slane %v3490, 2
      %v3493 = vshll.u32 %v3454, 16
      %v3495 = vrot.slane %v3493, 3
      %v3496 = vor.u32 %v3492, %v3495
      %v3497 = vsel %vm3471, %v3487, %v3496
      %v3499 = vshrl.u32 %v3455, 16
      %v3501 = vrot.slane %v3499, 2
      %v3502 = vshll.u32 %v3455, 16
      %v3504 = vrot.slane %v3502, 3
      %v3505 = vor.u32 %v3501, %v3504
      %v3506 = vsel %vm3471, %v3496, %v3505
      %v3508 = vshrl.u32 %v3456, 16
      %v3510 = vrot.slane %v3508, 2
      %v3511 = vshll.u32 %v3456, 16
      %v3513 = vrot.slane %v3511, 3
      %v3514 = vor.u32 %v3510, %v3513
      %v3515 = vsel %vm3471, %v3505, %v3514
      %v3517 = vshrl.u32 %v3457, 16
      %v3519 = vrot.slane %v3517, 2
      %v3520 = vshll.u32 %v3457, 16
      %v3522 = vrot.slane %v3520, 3
      %v3523 = vor.u32 %v3519, %v3522
      %v3524 = vsel %vm3471, %v3514, %v3523
      %v3526 = vshrl.u32 %v3458, 16
      %v3528 = vrot.slane %v3526, 2
      %v3529 = vshll.u32 %v3458, 16
      %v3531 = vrot.slane %v3529, 3
      %v3532 = vor.u32 %v3528, %v3531
      %v3533 = vsel %vm3471, %v3523, %v3532
      %v3535 = vshrl.u32 %v3459, 16
      %v3537 = vrot.slane %v3535, 2
      %v3538 = vshll.u32 %v3459, 16
      %v3540 = vrot.slane %v3538, 3
      %v3541 = vor.u32 %v3537, %v3540
      %v3542 = vsel %vm3471, %v3532, %v3541
      %v3544 = vshrl.u32 %v3460, 16
      %v3546 = vrot.slane %v3544, 2
      %v3547 = vshll.u32 %v3460, 16
      %v3549 = vrot.slane %v3547, 3
      %v3550 = vor.u32 %v3546, %v3549
      %v3551 = vsel %vm3471, %v3541, %v3550
      %v3553 = vshrl.u32 %v3461, 16
      %v3555 = vrot.slane %v3553, 2
      %v3556 = vshll.u32 %v3461, 16
      %v3558 = vrot.slane %v3556, 3
      %v3559 = vor.u32 %v3555, %v3558
      %v3560 = vsel %vm3471, %v3550, %v3559
      %v3562 = vshrl.u32 %v3462, 16
      %v3564 = vrot.slane %v3562, 2
      %v3565 = vshll.u32 %v3462, 16
      %v3567 = vrot.slane %v3565, 3
      %v3568 = vor.u32 %v3564, %v3567
      %v3569 = vsel %vm3471, %v3559, %v3568
      %v3571 = vshrl.u32 %v3463, 16
      %v3573 = vrot.slane %v3571, 2
      %v3574 = vshll.u32 %v3463, 16
      %v3576 = vrot.slane %v3574, 3
      %v3577 = vor.u32 %v3573, %v3576
      %v3578 = vsel %vm3471, %v3568, %v3577
      %v3580 = vshrl.u32 %v3464, 16
      %v3582 = vrot.slane %v3580, 2
      %v3583 = vshll.u32 %v3464, 16
      %v3585 = vrot.slane %v3583, 3
      %v3586 = vor.u32 %v3582, %v3585
      %v3587 = vsel %vm3471, %v3577, %v3586
      %v3589 = vshrl.u32 %v3465, 16
      %v3591 = vrot.slane %v3589, 2
      %v3592 = vshll.u32 %v3465, 16
      %v3594 = vrot.slane %v3592, 3
      %v3595 = vor.u32 %v3591, %v3594
      %v3596 = vsel %vm3471, %v3586, %v3595
      %v3598 = vshrl.u32 %v3466, 16
      %v3600 = vrot.slane %v3598, 2
      %v3601 = vshll.u32 %v3466, 16
      %v3603 = vrot.slane %v3601, 3
      %v3604 = vor.u32 %v3600, %v3603
      %v3605 = vsel %vm3471, %v3595, %v3604
      %v3607 = vshrl.u32 %v3467, 16
      %v3609 = vrot.slane %v3607, 2
      %v3610 = vshll.u32 %v3467, 16
      %v3612 = vrot.slane %v3610, 3
      %v3613 = vor.u32 %v3609, %v3612
      %v3614 = vsel %vm3471, %v3604, %v3613
      %v3616 = vshrl.u32 %v3468, 16
      %v3618 = vrot.slane %v3616, 2
      %v3619 = vshll.u32 %v3468, 16
      %v3621 = vrot.slane %v3619, 3
      %v3622 = vor.u32 %v3618, %v3621
      %v3623 = vsel %vm3471, %v3613, %v3622
      %v3625 = vshrl.u32 %v3469, 16
      %v3627 = vrot.slane %v3625, 2
      %v3628 = vshll.u32 %v3469, 16
      %v3630 = vrot.slane %v3628, 3
      %v3631 = vor.u32 %v3627, %v3630
      %v3632 = vsel %vm3471, %v3622, %v3631
      %v3634 = vshrl.u32 %v3470, 16
      %v3636 = vrot.slane %v3634, 2
      %v3637 = vshll.u32 %v3470, 16
      %v3639 = vrot.slane %v3637, 3
      %v3640 = vor.u32 %v3636, %v3639
      %v3641 = vsel %vm3471, %v3631, %v3640
      %v3643 = vsel %vm299, %v3488, 0
      %v3646 = vsel %vm299, %v3497, 0
      %v3649 = vsel %vm299, %v3506, 0
      %v3652 = vsel %vm299, %v3515, 0
      %v3655 = vsel %vm299, %v3524, 0
      %v3658 = vsel %vm299, %v3533, 0
      %v3661 = vsel %vm299, %v3542, 0
      %v3664 = vsel %vm299, %v3551, 0
      %v3667 = vsel %vm299, %v3560, 0
      %v3670 = vsel %vm299, %v3569, 0
      %v3673 = vsel %vm299, %v3578, 0
      %v3676 = vsel %vm299, %v3587, 0
      %v3679 = vsel %vm299, %v3596, 0
      %v3682 = vsel %vm299, %v3605, 0
      %v3685 = vsel %vm299, %v3614, 0
      %v3688 = vsel %vm299, %v3623, 0
      %v3691 = vsel %vm299, %v3632, 0
      %v3694 = vsel %vm299, %v3641, 0
      %v3697 = vsel %vm354, %v3377, 0
      %3699 = vmatpush.bf16.msra.mxu0 0
      %3700 = vmatpush.bf16.msra.mxu0 0
      %3701 = vmatpush.bf16.msra.mxu0 0
      %3702 = vmatpush.bf16.msra.mxu0 0
      %3703 = vmatpush.bf16.msra.mxu0 0
      %3704 = vmatpush.bf16.msra.mxu0 0
      %3705 = vmatpush.bf16.msra.mxu0 0
      %3706 = vmatpush.bf16.msra.mxu0 %v3697
      %3707 = vmatmul.bf16.gmra.mxu0 %v3643
      %v3708 = vpop.f32.mrf.mxu0
      %v3709 = vadd.f32 0.0, %v3708
      %v3710 = vpop.f32.mrf.mxu0
      %v3711 = vadd.f32 0.0, %v3710
      %3712 = vmatmul.bf16.gmra.mxu0 %v3646
      %v3713 = vpop.f32.mrf.mxu0
      %v3714 = vadd.f32 0.0, %v3713
      %v3715 = vpop.f32.mrf.mxu0
      %v3716 = vadd.f32 0.0, %v3715
      %3717 = vmatmul.bf16.gmra.mxu0 %v3649
      %v3718 = vpop.f32.mrf.mxu0
      %v3719 = vadd.f32 0.0, %v3718
      %v3720 = vpop.f32.mrf.mxu0
      %v3721 = vadd.f32 0.0, %v3720
      %3722 = vmatmul.bf16.gmra.mxu0 %v3652
      %v3723 = vpop.f32.mrf.mxu0
      %v3724 = vadd.f32 0.0, %v3723
      %v3725 = vpop.f32.mrf.mxu0
      %v3726 = vadd.f32 0.0, %v3725
      %3727 = vmatmul.bf16.gmra.mxu0 %v3655
      %v3728 = vpop.f32.mrf.mxu0
      %v3729 = vadd.f32 0.0, %v3728
      %v3730 = vpop.f32.mrf.mxu0
      %v3731 = vadd.f32 0.0, %v3730
      %3732 = vmatmul.bf16.gmra.mxu0 %v3658
      %v3733 = vpop.f32.mrf.mxu0
      %v3734 = vadd.f32 0.0, %v3733
      %v3735 = vpop.f32.mrf.mxu0
      %v3736 = vadd.f32 0.0, %v3735
      %3737 = vmatmul.bf16.gmra.mxu0 %v3661
      %v3738 = vpop.f32.mrf.mxu0
      %v3739 = vadd.f32 0.0, %v3738
      %v3740 = vpop.f32.mrf.mxu0
      %v3741 = vadd.f32 0.0, %v3740
      %3742 = vmatmul.bf16.gmra.mxu0 %v3664
      %v3743 = vpop.f32.mrf.mxu0
      %v3744 = vadd.f32 0.0, %v3743
      %v3745 = vpop.f32.mrf.mxu0
      %v3746 = vadd.f32 0.0, %v3745
      %3747 = vmatmul.bf16.gmra.mxu0 %v3667
      %v3748 = vpop.f32.mrf.mxu0
      %v3749 = vadd.f32 0.0, %v3748
      %v3750 = vpop.f32.mrf.mxu0
      %v3751 = vadd.f32 0.0, %v3750
      %3752 = vmatmul.bf16.gmra.mxu0 %v3670
      %v3753 = vpop.f32.mrf.mxu0
      %v3754 = vadd.f32 0.0, %v3753
      %v3755 = vpop.f32.mrf.mxu0
      %v3756 = vadd.f32 0.0, %v3755
      %3757 = vmatmul.bf16.gmra.mxu0 %v3673
      %v3758 = vpop.f32.mrf.mxu0
      %v3759 = vadd.f32 0.0, %v3758
      %v3760 = vpop.f32.mrf.mxu0
      %v3761 = vadd.f32 0.0, %v3760
      %3762 = vmatmul.bf16.gmra.mxu0 %v3676
      %v3763 = vpop.f32.mrf.mxu0
      %v3764 = vadd.f32 0.0, %v3763
      %v3765 = vpop.f32.mrf.mxu0
      %v3766 = vadd.f32 0.0, %v3765
      %3767 = vmatmul.bf16.gmra.mxu0 %v3679
      %v3768 = vpop.f32.mrf.mxu0
      %v3769 = vadd.f32 0.0, %v3768
      %v3770 = vpop.f32.mrf.mxu0
      %v3771 = vadd.f32 0.0, %v3770
      %3772 = vmatmul.bf16.gmra.mxu0 %v3682
      %v3773 = vpop.f32.mrf.mxu0
      %v3774 = vadd.f32 0.0, %v3773
      %v3775 = vpop.f32.mrf.mxu0
      %v3776 = vadd.f32 0.0, %v3775
      %3777 = vmatmul.bf16.gmra.mxu0 %v3685
      %v3778 = vpop.f32.mrf.mxu0
      %v3779 = vadd.f32 0.0, %v3778
      %v3780 = vpop.f32.mrf.mxu0
      %v3781 = vadd.f32 0.0, %v3780
      %3782 = vmatmul.bf16.gmra.mxu0 %v3688
      %v3783 = vpop.f32.mrf.mxu0
      %v3784 = vadd.f32 0.0, %v3783
      %v3785 = vpop.f32.mrf.mxu0
      %v3786 = vadd.f32 0.0, %v3785
      %3787 = vmatmul.bf16.gmra.mxu0 %v3691
      %v3788 = vpop.f32.mrf.mxu0
      %v3789 = vadd.f32 0.0, %v3788
      %v3790 = vpop.f32.mrf.mxu0
      %v3791 = vadd.f32 0.0, %v3790
      %3792 = vmatmul.bf16.gmra.mxu0 %v3694
      %v3793 = vpop.f32.mrf.mxu0
      %v3794 = vadd.f32 0.0, %v3793
      %v3795 = vpop.f32.mrf.mxu0
      %v3796 = vadd.f32 0.0, %v3795
      %3797 = vdwg.mxu0
      %v3798 = vld [vmem:[#allocation2] sm:$0xff]
      %v3799 = vld [vmem:[#allocation2 + $0x8] sm:$0xff]
      %v3800 = vld [vmem:[#allocation2 + $0x10] sm:$0xff]
      %v3801 = vld [vmem:[#allocation2 + $0x18] sm:$0xff]
      %v3802 = vld [vmem:[#allocation2 + $0x20] sm:$0xff]
      %v3803 = vld [vmem:[#allocation2 + $0x28] sm:$0xff]
      %v3804 = vld [vmem:[#allocation2 + $0x30] sm:$0xff]
      %v3805 = vld [vmem:[#allocation2 + $0x38] sm:$0xff]
      %v3806 = vld [vmem:[#allocation2 + $0x40] sm:$0xff]
      %v3807 = vld [vmem:[#allocation2 + $0x48] sm:$0xff]
      %v3808 = vld [vmem:[#allocation2 + $0x50] sm:$0xff]
      %v3809 = vld [vmem:[#allocation2 + $0x58] sm:$0xff]
      %v3810 = vld [vmem:[#allocation2 + $0x60] sm:$0xff]
      %v3811 = vld [vmem:[#allocation2 + $0x68] sm:$0xff]
      %v3812 = vld [vmem:[#allocation2 + $0x70] sm:$0xff]
      %v3813 = vld [vmem:[#allocation2 + $0x78] sm:$0xff]
      %v3814 = vld [vmem:[#allocation2 + $0x80] sm:$0xff]
      %v3815 = vld [vmem:[#allocation2 + $0x88] sm:$0xff]
      %v3816 = vld [vmem:[#allocation2 + $0x90] sm:$0xff]
      %v3817 = vld [vmem:[#allocation2 + $0x98] sm:$0xff]
      %v3818 = vld [vmem:[#allocation2 + $0xa0] sm:$0xff]
      %v3819 = vld [vmem:[#allocation2 + $0xa8] sm:$0xff]
      %v3820 = vld [vmem:[#allocation2 + $0xb0] sm:$0xff]
      %v3821 = vld [vmem:[#allocation2 + $0xb8] sm:$0xff]
      %v3822 = vld [vmem:[#allocation2 + $0xc0] sm:$0xff]
      %v3823 = vld [vmem:[#allocation2 + $0xc8] sm:$0xff]
      %v3824 = vld [vmem:[#allocation2 + $0xd0] sm:$0xff]
      %v3825 = vld [vmem:[#allocation2 + $0xd8] sm:$0xff]
      %v3826 = vld [vmem:[#allocation2 + $0xe0] sm:$0xff]
      %v3827 = vld [vmem:[#allocation2 + $0xe8] sm:$0xff]
      %v3828 = vld [vmem:[#allocation2 + $0xf0] sm:$0xff]
      %v3829 = vld [vmem:[#allocation2 + $0xf8] sm:$0xff]
      %v3830 = vld [vmem:[#allocation2 + $0x100] sm:$0xff]
      %v3831 = vld [vmem:[#allocation2 + $0x108] sm:$0xff]
      %v3832 = vld [vmem:[#allocation2 + $0x110] sm:$0xff]
      %v3833 = vld [vmem:[#allocation2 + $0x118] sm:$0xff]
      %v3834 = vadd.f32 %v3798, %v3709
      %v3835 = vadd.f32 %v3799, %v3711
      %v3836 = vadd.f32 %v3800, %v3714
      %v3837 = vadd.f32 %v3801, %v3716
      %v3838 = vadd.f32 %v3802, %v3719
      %v3839 = vadd.f32 %v3803, %v3721
      %v3840 = vadd.f32 %v3804, %v3724
      %v3841 = vadd.f32 %v3805, %v3726
      %v3842 = vadd.f32 %v3806, %v3729
      %v3843 = vadd.f32 %v3807, %v3731
      %v3844 = vadd.f32 %v3808, %v3734
      %v3845 = vadd.f32 %v3809, %v3736
      %v3846 = vadd.f32 %v3810, %v3739
      %v3847 = vadd.f32 %v3811, %v3741
      %v3848 = vadd.f32 %v3812, %v3744
      %v3849 = vadd.f32 %v3813, %v3746
      %v3850 = vadd.f32 %v3814, %v3749
      %v3851 = vadd.f32 %v3815, %v3751
      %v3852 = vadd.f32 %v3816, %v3754
      %v3853 = vadd.f32 %v3817, %v3756
      %v3854 = vadd.f32 %v3818, %v3759
      %v3855 = vadd.f32 %v3819, %v3761
      %v3856 = vadd.f32 %v3820, %v3764
      %v3857 = vadd.f32 %v3821, %v3766
      %v3858 = vadd.f32 %v3822, %v3769
      %v3859 = vadd.f32 %v3823, %v3771
      %v3860 = vadd.f32 %v3824, %v3774
      %v3861 = vadd.f32 %v3825, %v3776
      %v3862 = vadd.f32 %v3826, %v3779
      %v3863 = vadd.f32 %v3827, %v3781
      %v3864 = vadd.f32 %v3828, %v3784
      %v3865 = vadd.f32 %v3829, %v3786
      %v3866 = vadd.f32 %v3830, %v3789
      %v3867 = vadd.f32 %v3831, %v3791
      %v3868 = vadd.f32 %v3832, %v3794
      %v3869 = vadd.f32 %v3833, %v3796
      %3870 = vst [vmem:[#allocation2] sm:$0xff] %v3834
      %3871 = vst [vmem:[#allocation2 + $0x8] sm:$0xff] %v3835
      %3872 = vst [vmem:[#allocation2 + $0x10] sm:$0xff] %v3836
      %3873 = vst [vmem:[#allocation2 + $0x18] sm:$0xff] %v3837
      %3874 = vst [vmem:[#allocation2 + $0x20] sm:$0xff] %v3838
      %3875 = vst [vmem:[#allocation2 + $0x28] sm:$0xff] %v3839
      %3876 = vst [vmem:[#allocation2 + $0x30] sm:$0xff] %v3840
      %3877 = vst [vmem:[#allocation2 + $0x38] sm:$0xff] %v3841
      %3878 = vst [vmem:[#allocation2 + $0x40] sm:$0xff] %v3842
      %3879 = vst [vmem:[#allocation2 + $0x48] sm:$0xff] %v3843
      %3880 = vst [vmem:[#allocation2 + $0x50] sm:$0xff] %v3844
      %3881 = vst [vmem:[#allocation2 + $0x58] sm:$0xff] %v3845
      %3882 = vst [vmem:[#allocation2 + $0x60] sm:$0xff] %v3846
      %3883 = vst [vmem:[#allocation2 + $0x68] sm:$0xff] %v3847
      %3884 = vst [vmem:[#allocation2 + $0x70] sm:$0xff] %v3848
      %3885 = vst [vmem:[#allocation2 + $0x78] sm:$0xff] %v3849
      %3886 = vst [vmem:[#allocation2 + $0x80] sm:$0xff] %v3850
      %3887 = vst [vmem:[#allocation2 + $0x88] sm:$0xff] %v3851
      %3888 = vst [vmem:[#allocation2 + $0x90] sm:$0xff] %v3852
      %3889 = vst [vmem:[#allocation2 + $0x98] sm:$0xff] %v3853
      %3890 = vst [vmem:[#allocation2 + $0xa0] sm:$0xff] %v3854
      %3891 = vst [vmem:[#allocation2 + $0xa8] sm:$0xff] %v3855
      %3892 = vst [vmem:[#allocation2 + $0xb0] sm:$0xff] %v3856
      %3893 = vst [vmem:[#allocation2 + $0xb8] sm:$0xff] %v3857
      %3894 = vst [vmem:[#allocation2 + $0xc0] sm:$0xff] %v3858
      %3895 = vst [vmem:[#allocation2 + $0xc8] sm:$0xff] %v3859
      %3896 = vst [vmem:[#allocation2 + $0xd0] sm:$0xff] %v3860
      %3897 = vst [vmem:[#allocation2 + $0xd8] sm:$0xff] %v3861
      %3898 = vst [vmem:[#allocation2 + $0xe0] sm:$0xff] %v3862
      %3899 = vst [vmem:[#allocation2 + $0xe8] sm:$0xff] %v3863
      %3900 = vst [vmem:[#allocation2 + $0xf0] sm:$0xff] %v3864
      %3901 = vst [vmem:[#allocation2 + $0xf8] sm:$0xff] %v3865
      %3902 = vst [vmem:[#allocation2 + $0x100] sm:$0xff] %v3866
      %3903 = vst [vmem:[#allocation2 + $0x108] sm:$0xff] %v3867
      %3904 = vst [vmem:[#allocation2 + $0x110] sm:$0xff] %v3868
      %3905 = vst [vmem:[#allocation2 + $0x118] sm:$0xff] %v3869
      %v3906 = vld [vmem:[%s165 + $0x10] sm:$0x8]
      %v3907 = vld [vmem:[%s165 + $0x14] sm:$0xf]
      %v3908 = vld [vmem:[%s165 + $0x18] sm:$0xf]
      %v3909 = vld [vmem:[%s165 + $0x1c] sm:$0xf]
      %v3910 = vld [vmem:[%s165 + $0x20] sm:$0xf]
      %v3911 = vld [vmem:[%s165 + $0x24] sm:$0xf]
      %v3912 = vld [vmem:[%s165 + $0x28] sm:$0xf]
      %v3913 = vld [vmem:[%s165 + $0x2c] sm:$0xf]
      %v3914 = vld [vmem:[%s165 + $0x30] sm:$0xf]
      %v3915 = vld [vmem:[%s165 + $0x34] sm:$0xf]
      %v3916 = vld [vmem:[%s165 + $0x38] sm:$0xf]
      %v3917 = vld [vmem:[%s165 + $0x3c] sm:$0xf]
      %v3918 = vld [vmem:[%s165 + $0x40] sm:$0xf]
      %v3919 = vld [vmem:[%s165 + $0x44] sm:$0xf]
      %v3920 = vld [vmem:[%s165 + $0x48] sm:$0xf]
      %v3921 = vld [vmem:[%s165 + $0x4c] sm:$0xf]
      %v3922 = vld [vmem:[%s165 + $0x50] sm:$0xf]
      %v3923 = vld [vmem:[%s165 + $0x54] sm:$0xf]
      %v3924 = vld [vmem:[%s165 + $0x58] sm:$0xf]
      %v3925 = vld [vmem:[%s165 + $0x5c] sm:$0xf]
      %v3926 = vld [vmem:[%s165 + $0x60] sm:$0xf]
      %v3927 = vld [vmem:[%s165 + $0x64] sm:$0xf]
      %v3928 = vld [vmem:[%s165 + $0x68] sm:$0xf]
      %v3929 = vld [vmem:[%s165 + $0x6c] sm:$0xf]
      %v3930 = vld [vmem:[%s165 + $0x70] sm:$0xf]
      %v3931 = vld [vmem:[%s165 + $0x74] sm:$0xf]
      %v3932 = vld [vmem:[%s165 + $0x78] sm:$0xf]
      %v3933 = vld [vmem:[%s165 + $0x7c] sm:$0xf]
      %v3934 = vld [vmem:[%s165 + $0x80] sm:$0xf]
      %v3935 = vld [vmem:[%s165 + $0x84] sm:$0xf]
      %v3936 = vld [vmem:[%s165 + $0x88] sm:$0xf]
      %v3937 = vld [vmem:[%s165 + $0x8c] sm:$0xf]
      %v3938 = vld [vmem:[%s165 + $0x90] sm:$0xf]
      %v3939 = vld [vmem:[%s165 + $0x94] sm:$0xf]
      %v3940 = vld [vmem:[%s165 + $0x98] sm:$0xf]
      %v3941 = vld [vmem:[%s165 + $0x9c] sm:$0xf]
      %v3942 = vld [vmem:[%s165 + $0xa0] sm:$0x7]
      %s3943 = scalar_lea.vmem %s1, 16
      %v3944 = vld [vmem:[%s3943] sm:$0x3]
      %v3982 = vunpack.c.l.b16 %v3906
      %v3983 = vunpack.c.l.b16 %v3907
      %v3984 = vunpack.c.l.b16 %v3908
      %v3985 = vunpack.c.l.b16 %v3909
      %v3986 = vunpack.c.l.b16 %v3910
      %v3987 = vunpack.c.l.b16 %v3911
      %v3988 = vunpack.c.l.b16 %v3912
      %v3989 = vunpack.c.l.b16 %v3913
      %v3990 = vunpack.c.l.b16 %v3914
      %v3991 = vunpack.c.l.b16 %v3915
      %v3992 = vunpack.c.l.b16 %v3916
      %v3993 = vunpack.c.l.b16 %v3917
      %v3994 = vunpack.c.l.b16 %v3918
      %v3995 = vunpack.c.l.b16 %v3919
      %v3996 = vunpack.c.l.b16 %v3920
      %v3997 = vunpack.c.l.b16 %v3921
      %v3998 = vunpack.c.l.b16 %v3922
      %v3999 = vunpack.c.l.b16 %v3923
      %v4000 = vunpack.c.l.b16 %v3924
      %v4001 = vunpack.c.l.b16 %v3925
      %v4002 = vunpack.c.l.b16 %v3926
      %v4003 = vunpack.c.l.b16 %v3927
      %v4004 = vunpack.c.l.b16 %v3928
      %v4005 = vunpack.c.l.b16 %v3929
      %v4006 = vunpack.c.l.b16 %v3930
      %v4007 = vunpack.c.l.b16 %v3931
      %v4008 = vunpack.c.l.b16 %v3932
      %v4009 = vunpack.c.l.b16 %v3933
      %v4010 = vunpack.c.l.b16 %v3934
      %v4011 = vunpack.c.l.b16 %v3935
      %v4012 = vunpack.c.l.b16 %v3936
      %v4013 = vunpack.c.l.b16 %v3937
      %v4014 = vunpack.c.l.b16 %v3938
      %v4015 = vunpack.c.l.b16 %v3939
      %v4016 = vunpack.c.l.b16 %v3940
      %v4017 = vunpack.c.l.b16 %v3941
      %v4018 = vunpack.c.l.b16 %v3942
      %v4019 = vpack.c.b16 %v3983, %v3982
      %v4020 = vpack.c.b16 %v3985, %v3984
      %v4021 = vpack.c.b16 %v3987, %v3986
      %v4022 = vpack.c.b16 %v3989, %v3988
      %v4023 = vpack.c.b16 %v3991, %v3990
      %v4024 = vpack.c.b16 %v3993, %v3992
      %v4025 = vpack.c.b16 %v3995, %v3994
      %v4026 = vpack.c.b16 %v3997, %v3996
      %v4027 = vpack.c.b16 %v3999, %v3998
      %v4028 = vpack.c.b16 %v4001, %v4000
      %v4029 = vpack.c.b16 %v4003, %v4002
      %v4030 = vpack.c.b16 %v4005, %v4004
      %v4031 = vpack.c.b16 %v4007, %v4006
      %v4032 = vpack.c.b16 %v4009, %v4008
      %v4033 = vpack.c.b16 %v4011, %v4010
      %v4034 = vpack.c.b16 %v4013, %v4012
      %v4035 = vpack.c.b16 %v4015, %v4014
      %v4036 = vpack.c.b16 %v4017, %v4016
      %v4037 = vpack.c.b16 %v4018, %v4018
      %vm4038 = vcmask 1044480
      %v4039 = vrot.slane %v4019, 3
      %v4040 = vrot.slane %v4020, 3
      %v4041 = vsel %vm4038, %v4039, %v4040
      %v4042 = vrot.slane %v4021, 3
      %v4043 = vsel %vm4038, %v4040, %v4042
      %v4044 = vrot.slane %v4022, 3
      %v4045 = vsel %vm4038, %v4042, %v4044
      %v4046 = vrot.slane %v4023, 3
      %v4047 = vsel %vm4038, %v4044, %v4046
      %v4048 = vrot.slane %v4024, 3
      %v4049 = vsel %vm4038, %v4046, %v4048
      %v4050 = vrot.slane %v4025, 3
      %v4051 = vsel %vm4038, %v4048, %v4050
      %v4052 = vrot.slane %v4026, 3
      %v4053 = vsel %vm4038, %v4050, %v4052
      %v4054 = vrot.slane %v4027, 3
      %v4055 = vsel %vm4038, %v4052, %v4054
      %v4056 = vrot.slane %v4028, 3
      %v4057 = vsel %vm4038, %v4054, %v4056
      %v4058 = vrot.slane %v4029, 3
      %v4059 = vsel %vm4038, %v4056, %v4058
      %v4060 = vrot.slane %v4030, 3
      %v4061 = vsel %vm4038, %v4058, %v4060
      %v4062 = vrot.slane %v4031, 3
      %v4063 = vsel %vm4038, %v4060, %v4062
      %v4064 = vrot.slane %v4032, 3
      %v4065 = vsel %vm4038, %v4062, %v4064
      %v4066 = vrot.slane %v4033, 3
      %v4067 = vsel %vm4038, %v4064, %v4066
      %v4068 = vrot.slane %v4034, 3
      %v4069 = vsel %vm4038, %v4066, %v4068
      %v4070 = vrot.slane %v4035, 3
      %v4071 = vsel %vm4038, %v4068, %v4070
      %v4072 = vrot.slane %v4036, 3
      %v4073 = vsel %vm4038, %v4070, %v4072
      %v4074 = vrot.slane %v4037, 3
      %v4075 = vsel %vm4038, %v4072, %v4074
      %v4077 = vsel %vm299, %v4041, 0
      %v4080 = vsel %vm299, %v4043, 0
      %v4083 = vsel %vm299, %v4045, 0
      %v4086 = vsel %vm299, %v4047, 0
      %v4089 = vsel %vm299, %v4049, 0
      %v4092 = vsel %vm299, %v4051, 0
      %v4095 = vsel %vm299, %v4053, 0
      %v4098 = vsel %vm299, %v4055, 0
      %v4101 = vsel %vm299, %v4057, 0
      %v4104 = vsel %vm299, %v4059, 0
      %v4107 = vsel %vm299, %v4061, 0
      %v4110 = vsel %vm299, %v4063, 0
      %v4113 = vsel %vm299, %v4065, 0
      %v4116 = vsel %vm299, %v4067, 0
      %v4119 = vsel %vm299, %v4069, 0
      %v4122 = vsel %vm299, %v4071, 0
      %v4125 = vsel %vm299, %v4073, 0
      %v4128 = vsel %vm299, %v4075, 0
      %v4131 = vsel %vm354, %v3944, 0
      %4133 = vmatpush.bf16.msra.mxu0 0
      %4134 = vmatpush.bf16.msra.mxu0 0
      %4135 = vmatpush.bf16.msra.mxu0 0
      %4136 = vmatpush.bf16.msra.mxu0 0
      %4137 = vmatpush.bf16.msra.mxu0 0
      %4138 = vmatpush.bf16.msra.mxu0 0
      %4139 = vmatpush.bf16.msra.mxu0 0
      %4140 = vmatpush.bf16.msra.mxu0 %v4131
      %4141 = vmatmul.bf16.gmra.mxu0 %v4077
      %v4142 = vpop.f32.mrf.mxu0
      %v4143 = vadd.f32 0.0, %v4142
      %v4144 = vpop.f32.mrf.mxu0
      %v4145 = vadd.f32 0.0, %v4144
      %4146 = vmatmul.bf16.gmra.mxu0 %v4080
      %v4147 = vpop.f32.mrf.mxu0
      %v4148 = vadd.f32 0.0, %v4147
      %v4149 = vpop.f32.mrf.mxu0
      %v4150 = vadd.f32 0.0, %v4149
      %4151 = vmatmul.bf16.gmra.mxu0 %v4083
      %v4152 = vpop.f32.mrf.mxu0
      %v4153 = vadd.f32 0.0, %v4152
      %v4154 = vpop.f32.mrf.mxu0
      %v4155 = vadd.f32 0.0, %v4154
      %4156 = vmatmul.bf16.gmra.mxu0 %v4086
      %v4157 = vpop.f32.mrf.mxu0
      %v4158 = vadd.f32 0.0, %v4157
      %v4159 = vpop.f32.mrf.mxu0
      %v4160 = vadd.f32 0.0, %v4159
      %4161 = vmatmul.bf16.gmra.mxu0 %v4089
      %v4162 = vpop.f32.mrf.mxu0
      %v4163 = vadd.f32 0.0, %v4162
      %v4164 = vpop.f32.mrf.mxu0
      %v4165 = vadd.f32 0.0, %v4164
      %4166 = vmatmul.bf16.gmra.mxu0 %v4092
      %v4167 = vpop.f32.mrf.mxu0
      %v4168 = vadd.f32 0.0, %v4167
      %v4169 = vpop.f32.mrf.mxu0
      %v4170 = vadd.f32 0.0, %v4169
      %4171 = vmatmul.bf16.gmra.mxu0 %v4095
      %v4172 = vpop.f32.mrf.mxu0
      %v4173 = vadd.f32 0.0, %v4172
      %v4174 = vpop.f32.mrf.mxu0
      %v4175 = vadd.f32 0.0, %v4174
      %4176 = vmatmul.bf16.gmra.mxu0 %v4098
      %v4177 = vpop.f32.mrf.mxu0
      %v4178 = vadd.f32 0.0, %v4177
      %v4179 = vpop.f32.mrf.mxu0
      %v4180 = vadd.f32 0.0, %v4179
      %4181 = vmatmul.bf16.gmra.mxu0 %v4101
      %v4182 = vpop.f32.mrf.mxu0
      %v4183 = vadd.f32 0.0, %v4182
      %v4184 = vpop.f32.mrf.mxu0
      %v4185 = vadd.f32 0.0, %v4184
      %4186 = vmatmul.bf16.gmra.mxu0 %v4104
      %v4187 = vpop.f32.mrf.mxu0
      %v4188 = vadd.f32 0.0, %v4187
      %v4189 = vpop.f32.mrf.mxu0
      %v4190 = vadd.f32 0.0, %v4189
      %4191 = vmatmul.bf16.gmra.mxu0 %v4107
      %v4192 = vpop.f32.mrf.mxu0
      %v4193 = vadd.f32 0.0, %v4192
      %v4194 = vpop.f32.mrf.mxu0
      %v4195 = vadd.f32 0.0, %v4194
      %4196 = vmatmul.bf16.gmra.mxu0 %v4110
      %v4197 = vpop.f32.mrf.mxu0
      %v4198 = vadd.f32 0.0, %v4197
      %v4199 = vpop.f32.mrf.mxu0
      %v4200 = vadd.f32 0.0, %v4199
      %4201 = vmatmul.bf16.gmra.mxu0 %v4113
      %v4202 = vpop.f32.mrf.mxu0
      %v4203 = vadd.f32 0.0, %v4202
      %v4204 = vpop.f32.mrf.mxu0
      %v4205 = vadd.f32 0.0, %v4204
      %4206 = vmatmul.bf16.gmra.mxu0 %v4116
      %v4207 = vpop.f32.mrf.mxu0
      %v4208 = vadd.f32 0.0, %v4207
      %v4209 = vpop.f32.mrf.mxu0
      %v4210 = vadd.f32 0.0, %v4209
      %4211 = vmatmul.bf16.gmra.mxu0 %v4119
      %v4212 = vpop.f32.mrf.mxu0
      %v4213 = vadd.f32 0.0, %v4212
      %v4214 = vpop.f32.mrf.mxu0
      %v4215 = vadd.f32 0.0, %v4214
      %4216 = vmatmul.bf16.gmra.mxu0 %v4122
      %v4217 = vpop.f32.mrf.mxu0
      %v4218 = vadd.f32 0.0, %v4217
      %v4219 = vpop.f32.mrf.mxu0
      %v4220 = vadd.f32 0.0, %v4219
      %4221 = vmatmul.bf16.gmra.mxu0 %v4125
      %v4222 = vpop.f32.mrf.mxu0
      %v4223 = vadd.f32 0.0, %v4222
      %v4224 = vpop.f32.mrf.mxu0
      %v4225 = vadd.f32 0.0, %v4224
      %4226 = vmatmul.bf16.gmra.mxu0 %v4128
      %v4227 = vpop.f32.mrf.mxu0
      %v4228 = vadd.f32 0.0, %v4227
      %v4229 = vpop.f32.mrf.mxu0
      %v4230 = vadd.f32 0.0, %v4229
      %4231 = vdwg.mxu0
      %v4232 = vld [vmem:[#allocation2] sm:$0xff]
      %v4233 = vld [vmem:[#allocation2 + $0x8] sm:$0xff]
      %v4234 = vld [vmem:[#allocation2 + $0x10] sm:$0xff]
      %v4235 = vld [vmem:[#allocation2 + $0x18] sm:$0xff]
      %v4236 = vld [vmem:[#allocation2 + $0x20] sm:$0xff]
      %v4237 = vld [vmem:[#allocation2 + $0x28] sm:$0xff]
      %v4238 = vld [vmem:[#allocation2 + $0x30] sm:$0xff]
      %v4239 = vld [vmem:[#allocation2 + $0x38] sm:$0xff]
      %v4240 = vld [vmem:[#allocation2 + $0x40] sm:$0xff]
      %v4241 = vld [vmem:[#allocation2 + $0x48] sm:$0xff]
      %v4242 = vld [vmem:[#allocation2 + $0x50] sm:$0xff]
      %v4243 = vld [vmem:[#allocation2 + $0x58] sm:$0xff]
      %v4244 = vld [vmem:[#allocation2 + $0x60] sm:$0xff]
      %v4245 = vld [vmem:[#allocation2 + $0x68] sm:$0xff]
      %v4246 = vld [vmem:[#allocation2 + $0x70] sm:$0xff]
      %v4247 = vld [vmem:[#allocation2 + $0x78] sm:$0xff]
      %v4248 = vld [vmem:[#allocation2 + $0x80] sm:$0xff]
      %v4249 = vld [vmem:[#allocation2 + $0x88] sm:$0xff]
      %v4250 = vld [vmem:[#allocation2 + $0x90] sm:$0xff]
      %v4251 = vld [vmem:[#allocation2 + $0x98] sm:$0xff]
      %v4252 = vld [vmem:[#allocation2 + $0xa0] sm:$0xff]
      %v4253 = vld [vmem:[#allocation2 + $0xa8] sm:$0xff]
      %v4254 = vld [vmem:[#allocation2 + $0xb0] sm:$0xff]
      %v4255 = vld [vmem:[#allocation2 + $0xb8] sm:$0xff]
      %v4256 = vld [vmem:[#allocation2 + $0xc0] sm:$0xff]
      %v4257 = vld [vmem:[#allocation2 + $0xc8] sm:$0xff]
      %v4258 = vld [vmem:[#allocation2 + $0xd0] sm:$0xff]
      %v4259 = vld [vmem:[#allocation2 + $0xd8] sm:$0xff]
      %v4260 = vld [vmem:[#allocation2 + $0xe0] sm:$0xff]
      %v4261 = vld [vmem:[#allocation2 + $0xe8] sm:$0xff]
      %v4262 = vld [vmem:[#allocation2 + $0xf0] sm:$0xff]
      %v4263 = vld [vmem:[#allocation2 + $0xf8] sm:$0xff]
      %v4264 = vld [vmem:[#allocation2 + $0x100] sm:$0xff]
      %v4265 = vld [vmem:[#allocation2 + $0x108] sm:$0xff]
      %v4266 = vld [vmem:[#allocation2 + $0x110] sm:$0xff]
      %v4267 = vld [vmem:[#allocation2 + $0x118] sm:$0xff]
      %v4268 = vadd.f32 %v4232, %v4143
      %v4269 = vadd.f32 %v4233, %v4145
      %v4270 = vadd.f32 %v4234, %v4148
      %v4271 = vadd.f32 %v4235, %v4150
      %v4272 = vadd.f32 %v4236, %v4153
      %v4273 = vadd.f32 %v4237, %v4155
      %v4274 = vadd.f32 %v4238, %v4158
      %v4275 = vadd.f32 %v4239, %v4160
      %v4276 = vadd.f32 %v4240, %v4163
      %v4277 = vadd.f32 %v4241, %v4165
      %v4278 = vadd.f32 %v4242, %v4168
      %v4279 = vadd.f32 %v4243, %v4170
      %v4280 = vadd.f32 %v4244, %v4173
      %v4281 = vadd.f32 %v4245, %v4175
      %v4282 = vadd.f32 %v4246, %v4178
      %v4283 = vadd.f32 %v4247, %v4180
      %v4284 = vadd.f32 %v4248, %v4183
      %v4285 = vadd.f32 %v4249, %v4185
      %v4286 = vadd.f32 %v4250, %v4188
      %v4287 = vadd.f32 %v4251, %v4190
      %v4288 = vadd.f32 %v4252, %v4193
      %v4289 = vadd.f32 %v4253, %v4195
      %v4290 = vadd.f32 %v4254, %v4198
      %v4291 = vadd.f32 %v4255, %v4200
      %v4292 = vadd.f32 %v4256, %v4203
      %v4293 = vadd.f32 %v4257, %v4205
      %v4294 = vadd.f32 %v4258, %v4208
      %v4295 = vadd.f32 %v4259, %v4210
      %v4296 = vadd.f32 %v4260, %v4213
      %v4297 = vadd.f32 %v4261, %v4215
      %v4298 = vadd.f32 %v4262, %v4218
      %v4299 = vadd.f32 %v4263, %v4220
      %v4300 = vadd.f32 %v4264, %v4223
      %v4301 = vadd.f32 %v4265, %v4225
      %v4302 = vadd.f32 %v4266, %v4228
      %v4303 = vadd.f32 %v4267, %v4230
      %4304 = vst [vmem:[#allocation2] sm:$0xff] %v4268
      %4305 = vst [vmem:[#allocation2 + $0x8] sm:$0xff] %v4269
      %4306 = vst [vmem:[#allocation2 + $0x10] sm:$0xff] %v4270
      %4307 = vst [vmem:[#allocation2 + $0x18] sm:$0xff] %v4271
      %4308 = vst [vmem:[#allocation2 + $0x20] sm:$0xff] %v4272
      %4309 = vst [vmem:[#allocation2 + $0x28] sm:$0xff] %v4273
      %4310 = vst [vmem:[#allocation2 + $0x30] sm:$0xff] %v4274
      %4311 = vst [vmem:[#allocation2 + $0x38] sm:$0xff] %v4275
      %4312 = vst [vmem:[#allocation2 + $0x40] sm:$0xff] %v4276
      %4313 = vst [vmem:[#allocation2 + $0x48] sm:$0xff] %v4277
      %4314 = vst [vmem:[#allocation2 + $0x50] sm:$0xff] %v4278
      %4315 = vst [vmem:[#allocation2 + $0x58] sm:$0xff] %v4279
      %4316 = vst [vmem:[#allocation2 + $0x60] sm:$0xff] %v4280
      %4317 = vst [vmem:[#allocation2 + $0x68] sm:$0xff] %v4281
      %4318 = vst [vmem:[#allocation2 + $0x70] sm:$0xff] %v4282
      %4319 = vst [vmem:[#allocation2 + $0x78] sm:$0xff] %v4283
      %4320 = vst [vmem:[#allocation2 + $0x80] sm:$0xff] %v4284
      %4321 = vst [vmem:[#allocation2 + $0x88] sm:$0xff] %v4285
      %4322 = vst [vmem:[#allocation2 + $0x90] sm:$0xff] %v4286
      %4323 = vst [vmem:[#allocation2 + $0x98] sm:$0xff] %v4287
      %4324 = vst [vmem:[#allocation2 + $0xa0] sm:$0xff] %v4288
      %4325 = vst [vmem:[#allocation2 + $0xa8] sm:$0xff] %v4289
      %4326 = vst [vmem:[#allocation2 + $0xb0] sm:$0xff] %v4290
      %4327 = vst [vmem:[#allocation2 + $0xb8] sm:$0xff] %v4291
      %4328 = vst [vmem:[#allocation2 + $0xc0] sm:$0xff] %v4292
      %4329 = vst [vmem:[#allocation2 + $0xc8] sm:$0xff] %v4293
      %4330 = vst [vmem:[#allocation2 + $0xd0] sm:$0xff] %v4294
      %4331 = vst [vmem:[#allocation2 + $0xd8] sm:$0xff] %v4295
      %4332 = vst [vmem:[#allocation2 + $0xe0] sm:$0xff] %v4296
      %4333 = vst [vmem:[#allocation2 + $0xe8] sm:$0xff] %v4297
      %4334 = vst [vmem:[#allocation2 + $0xf0] sm:$0xff] %v4298
      %4335 = vst [vmem:[#allocation2 + $0xf8] sm:$0xff] %v4299
      %4336 = vst [vmem:[#allocation2 + $0x100] sm:$0xff] %v4300
      %4337 = vst [vmem:[#allocation2 + $0x108] sm:$0xff] %v4301
      %4338 = vst [vmem:[#allocation2 + $0x110] sm:$0xff] %v4302
      %4339 = vst [vmem:[#allocation2 + $0x118] sm:$0xff] %v4303
      %v4340 = vld [vmem:[#allocation2] sm:$0xff]
      %v4341 = vld [vmem:[#allocation2 + $0x8] sm:$0xff]
      %v4342 = vld [vmem:[#allocation2 + $0x10] sm:$0xff]
      %v4343 = vld [vmem:[#allocation2 + $0x18] sm:$0xff]
      %v4344 = vld [vmem:[#allocation2 + $0x20] sm:$0xff]
      %v4345 = vld [vmem:[#allocation2 + $0x28] sm:$0xff]
      %v4346 = vld [vmem:[#allocation2 + $0x30] sm:$0xff]
      %v4347 = vld [vmem:[#allocation2 + $0x38] sm:$0xff]
      %v4348 = vld [vmem:[#allocation2 + $0x40] sm:$0xff]
      %v4349 = vld [vmem:[#allocation2 + $0x48] sm:$0xff]
      %v4350 = vld [vmem:[#allocation2 + $0x50] sm:$0xff]
      %v4351 = vld [vmem:[#allocation2 + $0x58] sm:$0xff]
      %v4352 = vld [vmem:[#allocation2 + $0x60] sm:$0xff]
      %v4353 = vld [vmem:[#allocation2 + $0x68] sm:$0xff]
      %v4354 = vld [vmem:[#allocation2 + $0x70] sm:$0xff]
      %v4355 = vld [vmem:[#allocation2 + $0x78] sm:$0xff]
      %v4356 = vld [vmem:[#allocation2 + $0x80] sm:$0xff]
      %v4357 = vld [vmem:[#allocation2 + $0x88] sm:$0xff]
      %v4358 = vld [vmem:[#allocation2 + $0x90] sm:$0xff]
      %v4359 = vld [vmem:[#allocation2 + $0x98] sm:$0xff]
      %v4360 = vld [vmem:[#allocation2 + $0xa0] sm:$0xff]
      %v4361 = vld [vmem:[#allocation2 + $0xa8] sm:$0xff]
      %v4362 = vld [vmem:[#allocation2 + $0xb0] sm:$0xff]
      %v4363 = vld [vmem:[#allocation2 + $0xb8] sm:$0xff]
      %v4364 = vld [vmem:[#allocation2 + $0xc0] sm:$0xff]
      %v4365 = vld [vmem:[#allocation2 + $0xc8] sm:$0xff]
      %v4366 = vld [vmem:[#allocation2 + $0xd0] sm:$0xff]
      %v4367 = vld [vmem:[#allocation2 + $0xd8] sm:$0xff]
      %v4368 = vld [vmem:[#allocation2 + $0xe0] sm:$0xff]
      %v4369 = vld [vmem:[#allocation2 + $0xe8] sm:$0xff]
      %v4370 = vld [vmem:[#allocation2 + $0xf0] sm:$0xff]
      %v4371 = vld [vmem:[#allocation2 + $0xf8] sm:$0xff]
      %v4372 = vld [vmem:[#allocation2 + $0x100] sm:$0xff]
      %v4373 = vld [vmem:[#allocation2 + $0x108] sm:$0xff]
      %v4374 = vld [vmem:[#allocation2 + $0x110] sm:$0xff]
      %v4375 = vld [vmem:[#allocation2 + $0x118] sm:$0xff]
      %v4376 = vld [vmem:[%s2] sm:$0x1]
      %v4378 = vperm.slane %v4376, 0
      %v4380 = vadd.f32 %v4340, %v4378
      %v4381 = vadd.f32 %v4341, %v4378
      %v4382 = vadd.f32 %v4342, %v4378
      %v4383 = vadd.f32 %v4343, %v4378
      %v4384 = vadd.f32 %v4344, %v4378
      %v4385 = vadd.f32 %v4345, %v4378
      %v4386 = vadd.f32 %v4346, %v4378
      %v4387 = vadd.f32 %v4347, %v4378
      %v4388 = vadd.f32 %v4348, %v4378
      %v4389 = vadd.f32 %v4349, %v4378
      %v4390 = vadd.f32 %v4350, %v4378
      %v4391 = vadd.f32 %v4351, %v4378
      %v4392 = vadd.f32 %v4352, %v4378
      %v4393 = vadd.f32 %v4353, %v4378
      %v4394 = vadd.f32 %v4354, %v4378
      %v4395 = vadd.f32 %v4355, %v4378
      %v4396 = vadd.f32 %v4356, %v4378
      %v4397 = vadd.f32 %v4357, %v4378
      %v4398 = vadd.f32 %v4358, %v4378
      %v4399 = vadd.f32 %v4359, %v4378
      %v4400 = vadd.f32 %v4360, %v4378
      %v4401 = vadd.f32 %v4361, %v4378
      %v4402 = vadd.f32 %v4362, %v4378
      %v4403 = vadd.f32 %v4363, %v4378
      %v4404 = vadd.f32 %v4364, %v4378
      %v4405 = vadd.f32 %v4365, %v4378
      %v4406 = vadd.f32 %v4366, %v4378
      %v4407 = vadd.f32 %v4367, %v4378
      %v4408 = vadd.f32 %v4368, %v4378
      %v4409 = vadd.f32 %v4369, %v4378
      %v4410 = vadd.f32 %v4370, %v4378
      %v4411 = vadd.f32 %v4371, %v4378
      %v4412 = vadd.f32 %v4372, %v4378
      %v4413 = vadd.f32 %v4373, %v4378
      %v4414 = vadd.f32 %v4374, %v4378
      %v4415 = vadd.f32 %v4375, %v4378
      %vm4416 = vcmp.gt.f32.partialorder %v4380, 0.0
      %vm4417 = vcmp.gt.f32.partialorder %v4381, 0.0
      %vm4418 = vcmp.gt.f32.partialorder %v4382, 0.0
      %vm4419 = vcmp.gt.f32.partialorder %v4383, 0.0
      %vm4420 = vcmp.gt.f32.partialorder %v4384, 0.0
      %vm4421 = vcmp.gt.f32.partialorder %v4385, 0.0
      %vm4422 = vcmp.gt.f32.partialorder %v4386, 0.0
      %vm4423 = vcmp.gt.f32.partialorder %v4387, 0.0
      %vm4424 = vcmp.gt.f32.partialorder %v4388, 0.0
      %vm4425 = vcmp.gt.f32.partialorder %v4389, 0.0
      %vm4426 = vcmp.gt.f32.partialorder %v4390, 0.0
      %vm4427 = vcmp.gt.f32.partialorder %v4391, 0.0
      %vm4428 = vcmp.gt.f32.partialorder %v4392, 0.0
      %vm4429 = vcmp.gt.f32.partialorder %v4393, 0.0
      %vm4430 = vcmp.gt.f32.partialorder %v4394, 0.0
      %vm4431 = vcmp.gt.f32.partialorder %v4395, 0.0
      %vm4432 = vcmp.gt.f32.partialorder %v4396, 0.0
      %vm4433 = vcmp.gt.f32.partialorder %v4397, 0.0
      %vm4434 = vcmp.gt.f32.partialorder %v4398, 0.0
      %vm4435 = vcmp.gt.f32.partialorder %v4399, 0.0
      %vm4436 = vcmp.gt.f32.partialorder %v4400, 0.0
      %vm4437 = vcmp.gt.f32.partialorder %v4401, 0.0
      %vm4438 = vcmp.gt.f32.partialorder %v4402, 0.0
      %vm4439 = vcmp.gt.f32.partialorder %v4403, 0.0
      %vm4440 = vcmp.gt.f32.partialorder %v4404, 0.0
      %vm4441 = vcmp.gt.f32.partialorder %v4405, 0.0
      %vm4442 = vcmp.gt.f32.partialorder %v4406, 0.0
      %vm4443 = vcmp.gt.f32.partialorder %v4407, 0.0
      %vm4444 = vcmp.gt.f32.partialorder %v4408, 0.0
      %vm4445 = vcmp.gt.f32.partialorder %v4409, 0.0
      %vm4446 = vcmp.gt.f32.partialorder %v4410, 0.0
      %vm4447 = vcmp.gt.f32.partialorder %v4411, 0.0
      %vm4448 = vcmp.gt.f32.partialorder %v4412, 0.0
      %vm4449 = vcmp.gt.f32.partialorder %v4413, 0.0
      %vm4450 = vcmp.gt.f32.partialorder %v4414, 0.0
      %vm4451 = vcmp.gt.f32.partialorder %v4415, 0.0
      %v4452 = vmul.f32 %v4380, 0.01
      %v4453 = vmul.f32 %v4381, 0.01
      %v4454 = vmul.f32 %v4382, 0.01
      %v4455 = vmul.f32 %v4383, 0.01
      %v4456 = vmul.f32 %v4384, 0.01
      %v4457 = vmul.f32 %v4385, 0.01
      %v4458 = vmul.f32 %v4386, 0.01
      %v4459 = vmul.f32 %v4387, 0.01
      %v4460 = vmul.f32 %v4388, 0.01
      %v4461 = vmul.f32 %v4389, 0.01
      %v4462 = vmul.f32 %v4390, 0.01
      %v4463 = vmul.f32 %v4391, 0.01
      %v4464 = vmul.f32 %v4392, 0.01
      %v4465 = vmul.f32 %v4393, 0.01
      %v4466 = vmul.f32 %v4394, 0.01
      %v4467 = vmul.f32 %v4395, 0.01
      %v4468 = vmul.f32 %v4396, 0.01
      %v4469 = vmul.f32 %v4397, 0.01
      %v4470 = vmul.f32 %v4398, 0.01
      %v4471 = vmul.f32 %v4399, 0.01
      %v4472 = vmul.f32 %v4400, 0.01
      %v4473 = vmul.f32 %v4401, 0.01
      %v4474 = vmul.f32 %v4402, 0.01
      %v4475 = vmul.f32 %v4403, 0.01
      %v4476 = vmul.f32 %v4404, 0.01
      %v4477 = vmul.f32 %v4405, 0.01
      %v4478 = vmul.f32 %v4406, 0.01
      %v4479 = vmul.f32 %v4407, 0.01
      %v4480 = vmul.f32 %v4408, 0.01
      %v4481 = vmul.f32 %v4409, 0.01
      %v4482 = vmul.f32 %v4410, 0.01
      %v4483 = vmul.f32 %v4411, 0.01
      %v4484 = vmul.f32 %v4412, 0.01
      %v4485 = vmul.f32 %v4413, 0.01
      %v4486 = vmul.f32 %v4414, 0.01
      %v4487 = vmul.f32 %v4415, 0.01
      %v4488 = vsel %vm4416, %v4380, %v4452
      %v4489 = vsel %vm4417, %v4381, %v4453
      %v4490 = vsel %vm4418, %v4382, %v4454
      %v4491 = vsel %vm4419, %v4383, %v4455
      %v4492 = vsel %vm4420, %v4384, %v4456
      %v4493 = vsel %vm4421, %v4385, %v4457
      %v4494 = vsel %vm4422, %v4386, %v4458
      %v4495 = vsel %vm4423, %v4387, %v4459
      %v4496 = vsel %vm4424, %v4388, %v4460
      %v4497 = vsel %vm4425, %v4389, %v4461
      %v4498 = vsel %vm4426, %v4390, %v4462
      %v4499 = vsel %vm4427, %v4391, %v4463
      %v4500 = vsel %vm4428, %v4392, %v4464
      %v4501 = vsel %vm4429, %v4393, %v4465
      %v4502 = vsel %vm4430, %v4394, %v4466
      %v4503 = vsel %vm4431, %v4395, %v4467
      %v4504 = vsel %vm4432, %v4396, %v4468
      %v4505 = vsel %vm4433, %v4397, %v4469
      %v4506 = vsel %vm4434, %v4398, %v4470
      %v4507 = vsel %vm4435, %v4399, %v4471
      %v4508 = vsel %vm4436, %v4400, %v4472
      %v4509 = vsel %vm4437, %v4401, %v4473
      %v4510 = vsel %vm4438, %v4402, %v4474
      %v4511 = vsel %vm4439, %v4403, %v4475
      %v4512 = vsel %vm4440, %v4404, %v4476
      %v4513 = vsel %vm4441, %v4405, %v4477
      %v4514 = vsel %vm4442, %v4406, %v4478
      %v4515 = vsel %vm4443, %v4407, %v4479
      %v4516 = vsel %vm4444, %v4408, %v4480
      %v4517 = vsel %vm4445, %v4409, %v4481
      %v4518 = vsel %vm4446, %v4410, %v4482
      %v4519 = vsel %vm4447, %v4411, %v4483
      %v4520 = vsel %vm4448, %v4412, %v4484
      %v4521 = vsel %vm4449, %v4413, %v4485
      %v4522 = vsel %vm4450, %v4414, %v4486
      %v4523 = vsel %vm4451, %v4415, %v4487
      %4524 = vst [vmem:[%s170] sm:$0xff] %v4488
      %4525 = vst [vmem:[%s170 + $0x8] sm:$0xff] %v4489
      %4526 = vst [vmem:[%s170 + $0x10] sm:$0xff] %v4490
      %4527 = vst [vmem:[%s170 + $0x18] sm:$0xff] %v4491
      %4528 = vst [vmem:[%s170 + $0x20] sm:$0xff] %v4492
      %4529 = vst [vmem:[%s170 + $0x28] sm:$0xff] %v4493
      %4530 = vst [vmem:[%s170 + $0x30] sm:$0xff] %v4494
      %4531 = vst [vmem:[%s170 + $0x38] sm:$0xff] %v4495
      %4532 = vst [vmem:[%s170 + $0x40] sm:$0xff] %v4496
      %4533 = vst [vmem:[%s170 + $0x48] sm:$0xff] %v4497
      %4534 = vst [vmem:[%s170 + $0x50] sm:$0xff] %v4498
      %4535 = vst [vmem:[%s170 + $0x58] sm:$0xff] %v4499
      %4536 = vst [vmem:[%s170 + $0x60] sm:$0xff] %v4500
      %4537 = vst [vmem:[%s170 + $0x68] sm:$0xff] %v4501
      %4538 = vst [vmem:[%s170 + $0x70] sm:$0xff] %v4502
      %4539 = vst [vmem:[%s170 + $0x78] sm:$0xff] %v4503
      %4540 = vst [vmem:[%s170 + $0x80] sm:$0xff] %v4504
      %4541 = vst [vmem:[%s170 + $0x88] sm:$0xff] %v4505
      %4542 = vst [vmem:[%s170 + $0x90] sm:$0xff] %v4506
      %4543 = vst [vmem:[%s170 + $0x98] sm:$0xff] %v4507
      %4544 = vst [vmem:[%s170 + $0xa0] sm:$0xff] %v4508
      %4545 = vst [vmem:[%s170 + $0xa8] sm:$0xff] %v4509
      %4546 = vst [vmem:[%s170 + $0xb0] sm:$0xff] %v4510
      %4547 = vst [vmem:[%s170 + $0xb8] sm:$0xff] %v4511
      %4548 = vst [vmem:[%s170 + $0xc0] sm:$0xff] %v4512
      %4549 = vst [vmem:[%s170 + $0xc8] sm:$0xff] %v4513
      %4550 = vst [vmem:[%s170 + $0xd0] sm:$0xff] %v4514
      %4551 = vst [vmem:[%s170 + $0xd8] sm:$0xff] %v4515
      %4552 = vst [vmem:[%s170 + $0xe0] sm:$0xff] %v4516
      %4553 = vst [vmem:[%s170 + $0xe8] sm:$0xff] %v4517
      %4554 = vst [vmem:[%s170 + $0xf0] sm:$0xff] %v4518
      %4555 = vst [vmem:[%s170 + $0xf8] sm:$0xff] %v4519
      %4556 = vst [vmem:[%s170 + $0x100] sm:$0xff] %v4520
      %4557 = vst [vmem:[%s170 + $0x108] sm:$0xff] %v4521
      %4558 = vst [vmem:[%s170 + $0x110] sm:$0xff] %v4522
      %4559 = vst [vmem:[%s170 + $0x118] sm:$0xff] %v4523
      %p4560 = scmp.lt.s32.totalorder %s14, 1
      %s4561 = scalar_select %p4560, %s14, 1
      %s4562 = smul.addr %s4561, 36
      %s4563 = smul.addr %s4562, 8
      %s4564 = scalar_lea.vmem %s3, %s4563
      // Predicated region
      $region33: #{conv_bn_act.1} parent=31 // pred_check
        %p4565 = pneg %p100
      $region34: #{conv_bn_act.1} parent=31 // pred_check_branch
        %4567 = sbr.rel (%p4565) target = $region36
      $region35: #{conv_bn_act.1} parent=31 // pred_region
        _
      $region36: #{conv_bn_act.1} parent=31 // pred_fallthru
        _
    $region32: #{conv_bn_act.1} parent=5 // pred_fallthru
      _
    %p4568 = scmp.le.s32.totalorder 2, %s9
    // Predicated region
    $region37: #{conv_bn_act.1} parent=5 // pred_check
      %p4569 = pneg %p4568
    $region38: #{conv_bn_act.1} parent=5 // pred_check_branch
      %4571 = sbr.rel (%p4569) target = $region40
    $region39: #{conv_bn_act.1} parent=5 // pred_region
      %s4572 = ssub.s32 %s9, 2
      // Predicated region
      $region41: #{conv_bn_act.1} parent=39 // pred_check
        %p4573 = pneg %p106
      $region42: #{conv_bn_act.1} parent=39 // pred_check_branch
        %4575 = sbr.rel (%p4573) target = $region44
      $region43: #{conv_bn_act.1} parent=39 // pred_region
        %p4576 = scmp.lt.s32.totalorder %s15, 1
        %s4577 = scalar_select %p4576, %s15, 1
        %s4578 = smul.addr %s4577, 36
        %s4579 = smul.addr %s4578, 8
        %s4580 = scalar_lea.vmem %s3, %s4579
      $region44: #{conv_bn_act.1} parent=39 // pred_fallthru
        _
    $region40: #{conv_bn_act.1} parent=5 // pred_fallthru
      _
  $region6: #{conv_bn_act.1} parent=0 // loop_footer
    %s13 = sadd.s32 1, %s9
  $region7: #{conv_bn_act.1} parent=0 // loop_footer_branch
    %8 = sbr.rel target = $region3
  $region8: #{conv_bn_act.1} parent=0 // loop_exit
    _

</llo_original>
